<compile_context>
chip_gen: v7x
topology: tpu7x:2x2x1
jax: 0.10.0
libtpu: 0.0.40
codegen_flags: <defaults>
</compile_context>

<pallas_src>
import math
import functools

import jax
import jax.numpy as jnp
from jax import lax
from jax.experimental import pallas as pl
from jax.experimental.pallas import tpu as pltpu  # noqa: F401  (TPU backend assumed)

# ----------------------- small GPT config -----------------------
NUM_LAYERS = 2
VOCAB = 128
HIDDEN = 64
NUM_HEADS = 4
CONTEXT = 16
EXPAND = 128
HEAD_DIM = HIDDEN // NUM_HEADS
LN_EPS = 1e-5


# ----------------------- fused Pallas kernel -----------------------
def _gpt_kernel(x_ref, lbl_ref, wqkv_ref, wo_ref, fc1_ref, fc2_ref, hw_ref, b_ref,
                logits_ref, loss_ref, *, n_layers, B, S, nh, hd):
    """Whole-model forward in a single kernel invocation.

    inputs : x (M,H) f32, labels (M,1) i32,
             wqkvT (L,H,3H) bf16, woT (L,H,H) bf16, fc1T (L,H,E) bf16,
             fc2T (L,E,H) bf16, head_wT (H,V) bf16, biases (4L+1, 3H) f32.
    outputs: logits (M,V) f32, loss (1,1) f32.
    """
    H = nh * hd
    E = fc1_ref.shape[-1]
    V = hw_ref.shape[-1]
    bf16 = jnp.bfloat16

    def ln(v):
        # LN affine (gamma, beta) is folded into the next matmul at pack time.
        mu = jnp.mean(v, axis=-1, keepdims=True)
        var = jnp.mean(jnp.square(v - mu), axis=-1, keepdims=True)
        return (v - mu) * lax.rsqrt(var + LN_EPS)

    x = x_ref[...]                                        # (M, H) f32, stays resident

    # causal mask built once, reused for every (layer, head, batch)
    row = lax.broadcasted_iota(jnp.int32, (S, S), 0)
    col = lax.broadcasted_iota(jnp.int32, (S, S), 1)
    causal = col > row                                    # strict upper triangle masked

    for l in range(n_layers):
        # ---------------- attention sub-block ----------------
        h = ln(x).astype(bf16)
        qkv = jnp.dot(h, wqkv_ref[l], preferred_element_type=jnp.float32)
        qkv = (qkv + b_ref[4 * l:4 * l + 1, :]).astype(bf16)   # bias add in f32 -> bf16
        # 1/sqrt(head_dim) is already folded into the q columns of Wqkv/bqkv.
        q, k, v = qkv[:, :H], qkv[:, H:2 * H], qkv[:, 2 * H:]
        woT_l = wo_ref[l]                                 # (H, H) bf16

        a = None
        for hh in range(nh):                              # static unroll: tiny shapes
            c0 = hh * hd
            outs = []
            for b in range(B):
                r0 = b * S
                # q @ k^T as an NT dot_general (contract dim 1 of both operands):
                # Mosaic lowers this directly on the MXU, no per-head XLU transpose.
                s = lax.dot_general(q[r0:r0 + S, c0:c0 + hd], k[r0:r0 + S, c0:c0 + hd],
                                    (((1,), (1,)), ((), ())),
                                    preferred_element_type=jnp.float32)      # (S, S) f32
                s = jnp.where(causal, float('-inf'), s)    # diag never masked -> no NaN row
                p = jnp.exp(s - jnp.max(s, axis=-1, keepdims=True))
                p = p / jnp.sum(p, axis=-1, keepdims=True)                   # exact softmax
                outs.append(jnp.dot(p.astype(bf16), v[r0:r0 + S, c0:c0 + hd],
                                    preferred_element_type=jnp.float32))     # (S, hd) f32
            # aligned sublane concat over the batch -> (M, hd); no scratch stores.
            oh = jnp.concatenate(outs, axis=0).astype(bf16)
            # Distribute Wo over heads: a = sum_h out_h @ WoT[h*hd:(h+1)*hd, :]
            term = jnp.dot(oh, woT_l[c0:c0 + hd, :], preferred_element_type=jnp.float32)
            a = term if a is None else a + term
        x = x + a + b_ref[4 * l + 1:4 * l + 2, :H]        # Wo bias + residual (in vregs)

        # ---------------- feed-forward sub-block ----------------
        h = ln(x).astype(bf16)
        f = jnp.dot(h, fc1_ref[l], preferred_element_type=jnp.float32) \
            + b_ref[4 * l + 2:4 * l + 3, :E]
        # tanh-approx GELU (EUP tanh instead of a long erf VALU polynomial);
        # ~1e-3 numeric delta vs the exact-erf nn.GELU default.
        f = 0.5 * f * (1.0 + jnp.tanh(0.7978845608028654 * (f + 0.044715 * f * f * f)))
        f = jnp.dot(f.astype(bf16), fc2_ref[l], preferred_element_type=jnp.float32) \
            + b_ref[4 * l + 3:4 * l + 4, :H]
        x = x + f                                         # residual (in vregs)

    # -------- head LN + tied head matmul + cross-entropy (fused) --------
    h = ln(x).astype(bf16)
    logits = jnp.dot(h, hw_ref[...], preferred_element_type=jnp.float32) \
        + b_ref[4 * n_layers:4 * n_layers + 1, :V]
    logits_ref[...] = logits                              # (M, 128): lane-dense store

    lbl = lbl_ref[...]                                    # (M, 1) int32
    mx = jnp.max(logits, axis=-1, keepdims=True)
    lse = jnp.log(jnp.sum(jnp.exp(logits - mx), axis=-1, keepdims=True)) + mx
    ccol = lax.broadcasted_iota(jnp.int32, logits.shape, 1)
    tgt = jnp.sum(jnp.where(ccol == lbl, logits, 0.0), axis=-1, keepdims=True)
    loss_ref[...] = jnp.mean(lse - tgt).reshape(1, 1)


# ----------------------- parameter init (PyTorch layout) -----------------------
def init_params(key):
    """Raw params in PyTorch layout: Linear weights (out_features, in_features),
    LayerNorm (gamma, beta) vectors, tied head weight = vocab embedding."""
    std = 0.02
    fc2_std = 0.02 / math.sqrt(2 * NUM_LAYERS)
    keys = iter(jax.random.split(key, 2 + 4 * NUM_LAYERS))

    def nrm(shape, s=std):
        return s * jax.random.normal(next(keys), shape, dtype=jnp.float32)

    vocab_embed = nrm((VOCAB, HIDDEN))
    params = {
        "vocab_embed": vocab_embed,
        "pos_embed": nrm((CONTEXT, HIDDEN)),
        "head_ln_g": jnp.ones((HIDDEN,), jnp.float32),
        "head_ln_b": jnp.zeros((HIDDEN,), jnp.float32),
        "head_w": vocab_embed,                       # tie_weights=True
        "head_b": jnp.zeros((VOCAB,), jnp.float32),
        "blocks": [],
    }
    for _ in range(NUM_LAYERS):
        params["blocks"].append({
            "ln1_g": jnp.ones((HIDDEN,), jnp.float32),
            "ln1_b": jnp.zeros((HIDDEN,), jnp.float32),
            "Wqkv": nrm((3 * HIDDEN, HIDDEN)),
            "bqkv": jnp.zeros((3 * HIDDEN,), jnp.float32),
            "Wo": nrm((HIDDEN, HIDDEN)),
            "bo": jnp.zeros((HIDDEN,), jnp.float32),
            "ln2_g": jnp.ones((HIDDEN,), jnp.float32),
            "ln2_b": jnp.zeros((HIDDEN,), jnp.float32),
            "fc1": nrm((EXPAND, HIDDEN)),
            "fc1_b": jnp.zeros((EXPAND,), jnp.float32),
            "fc2": nrm((HIDDEN, EXPAND), fc2_std),
            "fc2_b": jnp.zeros((HIDDEN,), jnp.float32),
        })
    return params


def pack_params(raw):
    """One-time parameter prep (outside the hot path):
      * transpose Linear weights to (in, out) so the kernel never transposes,
      * fold LayerNorm affine (gamma, beta) into the following matmul,
      * fold the attention 1/sqrt(head_dim) scale into the q part of Wqkv,
      * stack per-layer weights into 4 arrays (one HBM->VMEM DMA each),
      * cast all MXU operands to bf16 (accumulation stays f32 in-kernel),
      * pack every bias into a single (4L+1, 3H) f32 slab (one row each).
    """
    sc = 1.0 / math.sqrt(HEAD_DIM)
    BW = 3 * HIDDEN
    pad = lambda vec: jnp.pad(vec, (0, BW - vec.shape[0]))[None, :]

    wqkv_s, wo_s, fc1_s, fc2_s, bias_rows = [], [], [], [], []
    for blk in raw["blocks"]:
        WqkvT = blk["Wqkv"].T                              # (H, 3H)
        bqkv = blk["bqkv"] + blk["ln1_b"] @ WqkvT          # fold ln1 shift
        WqkvT = WqkvT * blk["ln1_g"][:, None]              # fold ln1 scale
        WqkvT = WqkvT.at[:, :HIDDEN].multiply(sc)          # fold attention scale (q cols)
        bqkv = bqkv.at[:HIDDEN].multiply(sc)

        fc1T = blk["fc1"].T                                # (H, E)
        fc1b = blk["fc1_b"] + blk["ln2_b"] @ fc1T          # fold ln2 shift
        fc1T = fc1T * blk["ln2_g"][:, None]                # fold ln2 scale

        wqkv_s.append(WqkvT)
        wo_s.append(blk["Wo"].T)
        fc1_s.append(fc1T)
        fc2_s.append(blk["fc2"].T)
        bias_rows += [pad(bqkv), pad(blk["bo"]), pad(fc1b), pad(blk["fc2_b"])]

    head_wT = raw["head_w"].T                              # (H, V), tied weight
    head_b = raw["head_b"] + raw["head_ln_b"] @ head_wT    # fold head-LN shift
    head_wT = head_wT * raw["head_ln_g"][:, None]          # fold head-LN scale
    bias_rows.append(pad(head_b))

    return {
        "vocab_embed": raw["vocab_embed"],                 # (V, H) f32 for the gather
        "pos_embed": raw["pos_embed"],                     # (CONTEXT, H) f32
        "wqkvT": jnp.stack(wqkv_s).astype(jnp.bfloat16),   # (L, H, 3H)
        "woT": jnp.stack(wo_s).astype(jnp.bfloat16),       # (L, H, H)
        "fc1T": jnp.stack(fc1_s).astype(jnp.bfloat16),     # (L, H, E)
        "fc2T": jnp.stack(fc2_s).astype(jnp.bfloat16),     # (L, E, H)
        "head_wT": head_wT.astype(jnp.bfloat16),           # (H, V)
        "biases": jnp.concatenate(bias_rows, axis=0),      # (4L+1, 3H) f32
    }


# ----------------------- forward pass -----------------------
def gpt_forward(params, input_ids, labels):
    B, S = input_ids.shape
    assert S <= CONTEXT
    M = B * S

    # Token/position embedding gather stays in plain JAX (data-dependent gather
    # glue); embed/attn/out/ffn dropout are identity in eval mode.
    tokens = params["vocab_embed"][input_ids]              # (B, S, H)
    pos = params["pos_embed"][:S]                          # (S, H)
    x = (tokens + pos[None, :, :]).reshape(M, HIDDEN)
    labels2d = labels.reshape(M, 1).astype(jnp.int32)

    logits2d, loss = pl.pallas_call(
        functools.partial(_gpt_kernel, n_layers=NUM_LAYERS, B=B, S=S,
                          nh=NUM_HEADS, hd=HEAD_DIM),
        out_shape=(jax.ShapeDtypeStruct((M, VOCAB), jnp.float32),
                   jax.ShapeDtypeStruct((1, 1), jnp.float32)),
    )(x, labels2d, params["wqkvT"], params["woT"], params["fc1T"],
      params["fc2T"], params["head_wT"], params["biases"])

    return {"logits": logits2d.reshape(B, S, VOCAB), "loss": loss[0, 0]}


# ----------------------- main -----------------------
if __name__ == "__main__":
    key = jax.random.PRNGKey(0)
    pkey, ikey, lkey = jax.random.split(key, 3)
    params = pack_params(init_params(pkey))

    B, S = 2, 8
    input_ids = jax.random.randint(ikey, (B, S), 0, VOCAB, dtype=jnp.int32)
    labels = jax.random.randint(lkey, (B, S), 0, VOCAB, dtype=jnp.int32)

    out = jax.jit(gpt_forward)(params, input_ids, labels)
    jax.block_until_ready(out["logits"])
    jax.block_until_ready(out["loss"])

    assert out["logits"].shape == (B, S, VOCAB)
    assert out["loss"].shape == ()
    assert bool(jnp.isfinite(out["loss"]))
    assert bool(jnp.all(jnp.isfinite(out["logits"])))
    print("KERNEL_OK")
</pallas_src>

<mosaic_0001>
module attributes {stable_mosaic.version = 11 : i64} {
  func.func @_gpt_kernel(%arg0: memref<16x64xf32, #tpu.memory_space<vmem>>, %arg1: memref<16x1xi32, #tpu.memory_space<vmem>>, %arg2: memref<2x64x192xbf16, #tpu.memory_space<vmem>>, %arg3: memref<2x64x64xbf16, #tpu.memory_space<vmem>>, %arg4: memref<2x64x128xbf16, #tpu.memory_space<vmem>>, %arg5: memref<2x128x64xbf16, #tpu.memory_space<vmem>>, %arg6: memref<64x128xbf16, #tpu.memory_space<vmem>>, %arg7: memref<9x192xf32, #tpu.memory_space<vmem>>, %arg8: memref<16x128xf32, #tpu.memory_space<vmem>>, %arg9: memref<1x1xf32, #tpu.memory_space<vmem>>) attributes {dimension_semantics = [], scalar_prefetch = 0 : i64, scratch_operands = 0 : i64, tpu.core_type = #tpu.core_type<tc>} {
    %c0 = arith.constant 0 : index
    %c0_0 = arith.constant 0 : index
    %0 = vector.load %arg0[%c0, %c0_0] : memref<16x64xf32, #tpu.memory_space<vmem>>, vector<16x64xf32>
    %1 = tpu.iota {dimensions = array<i32: 0>} : vector<8x8xi32>
    %2 = tpu.iota {dimensions = array<i32: 1>} : vector<8x8xi32>
    %3 = arith.cmpi sgt, %2, %1 : vector<8x8xi32>
    %cst = arith.constant dense<0.000000e+00> : vector<16xf32>
    %4 = vector.multi_reduction <add>, %0, %cst [1] : vector<16x64xf32> to vector<16xf32>
    %5 = vector.shape_cast %4 : vector<16xf32> to vector<16x1xf32>
    %cst_1 = arith.constant 6.400000e+01 : f32
    %6 = vector.broadcast %cst_1 : f32 to vector<16x1xf32>
    %7 = arith.divf %5, %6 : vector<16x1xf32>
    %8 = vector.broadcast %7 : vector<16x1xf32> to vector<16x64xf32>
    %9 = arith.subf %0, %8 : vector<16x64xf32>
    %10 = arith.mulf %9, %9 : vector<16x64xf32>
    %cst_2 = arith.constant dense<0.000000e+00> : vector<16xf32>
    %11 = vector.multi_reduction <add>, %10, %cst_2 [1] : vector<16x64xf32> to vector<16xf32>
    %12 = vector.shape_cast %11 : vector<16xf32> to vector<16x1xf32>
    %cst_3 = arith.constant 6.400000e+01 : f32
    %13 = vector.broadcast %cst_3 : f32 to vector<16x1xf32>
    %14 = arith.divf %12, %13 : vector<16x1xf32>
    %15 = vector.broadcast %7 : vector<16x1xf32> to vector<16x64xf32>
    %16 = arith.subf %0, %15 : vector<16x64xf32>
    %cst_4 = arith.constant 9.99999974E-6 : f32
    %17 = vector.broadcast %cst_4 : f32 to vector<16x1xf32>
    %18 = arith.addf %14, %17 : vector<16x1xf32>
    %19 = math.rsqrt %18 : vector<16x1xf32>
    %20 = vector.broadcast %19 : vector<16x1xf32> to vector<16x64xf32>
    %21 = arith.mulf %16, %20 : vector<16x64xf32>
    %22 = arith.truncf %21 : vector<16x64xf32> to vector<16x64xbf16>
    %c0_5 = arith.constant 0 : index
    %c0_6 = arith.constant 0 : index
    %c0_7 = arith.constant 0 : index
    %23 = vector.load %arg2[%c0_5, %c0_6, %c0_7] : memref<2x64x192xbf16, #tpu.memory_space<vmem>>, vector<1x64x192xbf16>
    %24 = vector.shape_cast %23 : vector<1x64x192xbf16> to vector<64x192xbf16>
    %cst_8 = arith.constant dense<0.000000e+00> : vector<16x192xf32>
    %25 = tpu.matmul %22, %24, %cst_8 {dimension_numbers = #tpu.dot_dimension_numbers<[1], [0], [0], [1], [0, 0, 1, 1], [], []>} : vector<16x64xbf16>, vector<64x192xbf16>, vector<16x192xf32> -> vector<16x192xf32>
    %c0_9 = arith.constant 0 : index
    %c0_10 = arith.constant 0 : index
    %26 = vector.load %arg7[%c0_9, %c0_10] : memref<9x192xf32, #tpu.memory_space<vmem>>, vector<1x192xf32>
    %27 = vector.broadcast %26 : vector<1x192xf32> to vector<16x192xf32>
    %28 = arith.addf %25, %27 : vector<16x192xf32>
    %29 = arith.truncf %28 : vector<16x192xf32> to vector<16x192xbf16>
    %30 = vector.extract_strided_slice %29 {offsets = [0, 0], sizes = [16, 64], strides = [1, 1]} : vector<16x192xbf16> to vector<16x64xbf16>
    %31 = vector.extract_strided_slice %29 {offsets = [0, 64], sizes = [16, 64], strides = [1, 1]} : vector<16x192xbf16> to vector<16x64xbf16>
    %32 = vector.extract_strided_slice %29 {offsets = [0, 128], sizes = [16, 64], strides = [1, 1]} : vector<16x192xbf16> to vector<16x64xbf16>
    %c0_11 = arith.constant 0 : index
    %c0_12 = arith.constant 0 : index
    %c0_13 = arith.constant 0 : index
    %33 = vector.load %arg3[%c0_11, %c0_12, %c0_13] : memref<2x64x64xbf16, #tpu.memory_space<vmem>>, vector<1x64x64xbf16>
    %34 = vector.shape_cast %33 : vector<1x64x64xbf16> to vector<64x64xbf16>
    %35 = vector.extract_strided_slice %30 {offsets = [0, 0], sizes = [8, 16], strides = [1, 1]} : vector<16x64xbf16> to vector<8x16xbf16>
    %36 = vector.extract_strided_slice %31 {offsets = [0, 0], sizes = [8, 16], strides = [1, 1]} : vector<16x64xbf16> to vector<8x16xbf16>
    %cst_14 = arith.constant dense<0.000000e+00> : vector<8x8xf32>
    %37 = tpu.matmul %35, %36, %cst_14 {dimension_numbers = #tpu.dot_dimension_numbers<[1], [1], [0], [0], [0, 0, 1, 0], [], []>} : vector<8x16xbf16>, vector<8x16xbf16>, vector<8x8xf32> -> vector<8x8xf32>
    %cst_15 = arith.constant 0xFF800000 : f32
    %38 = vector.broadcast %cst_15 : f32 to vector<8x8xf32>
    %39 = arith.select %3, %38, %37 : vector<8x8xi1>, vector<8x8xf32>
    %cst_16 = arith.constant dense<0xFF800000> : vector<8xf32>
    %40 = vector.multi_reduction <maximumf>, %39, %cst_16 [1] : vector<8x8xf32> to vector<8xf32>
    %41 = vector.shape_cast %40 : vector<8xf32> to vector<8x1xf32>
    %42 = vector.broadcast %41 : vector<8x1xf32> to vector<8x8xf32>
    %43 = arith.subf %39, %42 : vector<8x8xf32>
    %44 = math.exp %43 : vector<8x8xf32>
    %cst_17 = arith.constant dense<0.000000e+00> : vector<8xf32>
    %45 = vector.multi_reduction <add>, %44, %cst_17 [1] : vector<8x8xf32> to vector<8xf32>
    %46 = vector.shape_cast %45 : vector<8xf32> to vector<8x1xf32>
    %47 = vector.broadcast %46 : vector<8x1xf32> to vector<8x8xf32>
    %48 = arith.divf %44, %47 : vector<8x8xf32>
    %49 = arith.truncf %48 : vector<8x8xf32> to vector<8x8xbf16>
    %50 = vector.extract_strided_slice %32 {offsets = [0, 0], sizes = [8, 16], strides = [1, 1]} : vector<16x64xbf16> to vector<8x16xbf16>
    %cst_18 = arith.constant dense<0.000000e+00> : vector<8x16xf32>
    %51 = tpu.matmul %49, %50, %cst_18 {dimension_numbers = #tpu.dot_dimension_numbers<[1], [0], [0], [1], [0, 0, 1, 1], [], []>} : vector<8x8xbf16>, vector<8x16xbf16>, vector<8x16xf32> -> vector<8x16xf32>
    %52 = vector.extract_strided_slice %30 {offsets = [8, 0], sizes = [8, 16], strides = [1, 1]} : vector<16x64xbf16> to vector<8x16xbf16>
    %53 = vector.extract_strided_slice %31 {offsets = [8, 0], sizes = [8, 16], strides = [1, 1]} : vector<16x64xbf16> to vector<8x16xbf16>
    %cst_19 = arith.constant dense<0.000000e+00> : vector<8x8xf32>
    %54 = tpu.matmul %52, %53, %cst_19 {dimension_numbers = #tpu.dot_dimension_numbers<[1], [1], [0], [0], [0, 0, 1, 0], [], []>} : vector<8x16xbf16>, vector<8x16xbf16>, vector<8x8xf32> -> vector<8x8xf32>
    %cst_20 = arith.constant 0xFF800000 : f32
    %55 = vector.broadcast %cst_20 : f32 to vector<8x8xf32>
    %56 = arith.select %3, %55, %54 : vector<8x8xi1>, vector<8x8xf32>
    %cst_21 = arith.constant dense<0xFF800000> : vector<8xf32>
    %57 = vector.multi_reduction <maximumf>, %56, %cst_21 [1] : vector<8x8xf32> to vector<8xf32>
    %58 = vector.shape_cast %57 : vector<8xf32> to vector<8x1xf32>
    %59 = vector.broadcast %58 : vector<8x1xf32> to vector<8x8xf32>
    %60 = arith.subf %56, %59 : vector<8x8xf32>
    %61 = math.exp %60 : vector<8x8xf32>
    %cst_22 = arith.constant dense<0.000000e+00> : vector<8xf32>
    %62 = vector.multi_reduction <add>, %61, %cst_22 [1] : vector<8x8xf32> to vector<8xf32>
    %63 = vector.shape_cast %62 : vector<8xf32> to vector<8x1xf32>
    %64 = vector.broadcast %63 : vector<8x1xf32> to vector<8x8xf32>
    %65 = arith.divf %61, %64 : vector<8x8xf32>
    %66 = arith.truncf %65 : vector<8x8xf32> to vector<8x8xbf16>
    %67 = vector.extract_strided_slice %32 {offsets = [8, 0], sizes = [8, 16], strides = [1, 1]} : vector<16x64xbf16> to vector<8x16xbf16>
    %cst_23 = arith.constant dense<0.000000e+00> : vector<8x16xf32>
    %68 = tpu.matmul %66, %67, %cst_23 {dimension_numbers = #tpu.dot_dimension_numbers<[1], [0], [0], [1], [0, 0, 1, 1], [], []>} : vector<8x8xbf16>, vector<8x16xbf16>, vector<8x16xf32> -> vector<8x16xf32>
    %69 = tpu.concatenate %51, %68 in 0 : vector<8x16xf32>, vector<8x16xf32> -> vector<16x16xf32>
    %70 = arith.truncf %69 : vector<16x16xf32> to vector<16x16xbf16>
    %71 = vector.extract_strided_slice %34 {offsets = [0, 0], sizes = [16, 64], strides = [1, 1]} : vector<64x64xbf16> to vector<16x64xbf16>
    %cst_24 = arith.constant dense<0.000000e+00> : vector<16x64xf32>
    %72 = tpu.matmul %70, %71, %cst_24 {dimension_numbers = #tpu.dot_dimension_numbers<[1], [0], [0], [1], [0, 0, 1, 1], [], []>} : vector<16x16xbf16>, vector<16x64xbf16>, vector<16x64xf32> -> vector<16x64xf32>
    %73 = vector.extract_strided_slice %30 {offsets = [0, 16], sizes = [8, 16], strides = [1, 1]} : vector<16x64xbf16> to vector<8x16xbf16>
    %74 = vector.extract_strided_slice %31 {offsets = [0, 16], sizes = [8, 16], strides = [1, 1]} : vector<16x64xbf16> to vector<8x16xbf16>
    %cst_25 = arith.constant dense<0.000000e+00> : vector<8x8xf32>
    %75 = tpu.matmul %73, %74, %cst_25 {dimension_numbers = #tpu.dot_dimension_numbers<[1], [1], [0], [0], [0, 0, 1, 0], [], []>} : vector<8x16xbf16>, vector<8x16xbf16>, vector<8x8xf32> -> vector<8x8xf32>
    %cst_26 = arith.constant 0xFF800000 : f32
    %76 = vector.broadcast %cst_26 : f32 to vector<8x8xf32>
    %77 = arith.select %3, %76, %75 : vector<8x8xi1>, vector<8x8xf32>
    %cst_27 = arith.constant dense<0xFF800000> : vector<8xf32>
    %78 = vector.multi_reduction <maximumf>, %77, %cst_27 [1] : vector<8x8xf32> to vector<8xf32>
    %79 = vector.shape_cast %78 : vector<8xf32> to vector<8x1xf32>
    %80 = vector.broadcast %79 : vector<8x1xf32> to vector<8x8xf32>
    %81 = arith.subf %77, %80 : vector<8x8xf32>
    %82 = math.exp %81 : vector<8x8xf32>
    %cst_28 = arith.constant dense<0.000000e+00> : vector<8xf32>
    %83 = vector.multi_reduction <add>, %82, %cst_28 [1] : vector<8x8xf32> to vector<8xf32>
    %84 = vector.shape_cast %83 : vector<8xf32> to vector<8x1xf32>
    %85 = vector.broadcast %84 : vector<8x1xf32> to vector<8x8xf32>
    %86 = arith.divf %82, %85 : vector<8x8xf32>
    %87 = arith.truncf %86 : vector<8x8xf32> to vector<8x8xbf16>
    %88 = vector.extract_strided_slice %32 {offsets = [0, 16], sizes = [8, 16], strides = [1, 1]} : vector<16x64xbf16> to vector<8x16xbf16>
    %cst_29 = arith.constant dense<0.000000e+00> : vector<8x16xf32>
    %89 = tpu.matmul %87, %88, %cst_29 {dimension_numbers = #tpu.dot_dimension_numbers<[1], [0], [0], [1], [0, 0, 1, 1], [], []>} : vector<8x8xbf16>, vector<8x16xbf16>, vector<8x16xf32> -> vector<8x16xf32>
    %90 = vector.extract_strided_slice %30 {offsets = [8, 16], sizes = [8, 16], strides = [1, 1]} : vector<16x64xbf16> to vector<8x16xbf16>
    %91 = vector.extract_strided_slice %31 {offsets = [8, 16], sizes = [8, 16], strides = [1, 1]} : vector<16x64xbf16> to vector<8x16xbf16>
    %cst_30 = arith.constant dense<0.000000e+00> : vector<8x8xf32>
    %92 = tpu.matmul %90, %91, %cst_30 {dimension_numbers = #tpu.dot_dimension_numbers<[1], [1], [0], [0], [0, 0, 1, 0], [], []>} : vector<8x16xbf16>, vector<8x16xbf16>, vector<8x8xf32> -> vector<8x8xf32>
    %cst_31 = arith.constant 0xFF800000 : f32
    %93 = vector.broadcast %cst_31 : f32 to vector<8x8xf32>
    %94 = arith.select %3, %93, %92 : vector<8x8xi1>, vector<8x8xf32>
    %cst_32 = arith.constant dense<0xFF800000> : vector<8xf32>
    %95 = vector.multi_reduction <maximumf>, %94, %cst_32 [1] : vector<8x8xf32> to vector<8xf32>
    %96 = vector.shape_cast %95 : vector<8xf32> to vector<8x1xf32>
    %97 = vector.broadcast %96 : vector<8x1xf32> to vector<8x8xf32>
    %98 = arith.subf %94, %97 : vector<8x8xf32>
    %99 = math.exp %98 : vector<8x8xf32>
    %cst_33 = arith.constant dense<0.000000e+00> : vector<8xf32>
    %100 = vector.multi_reduction <add>, %99, %cst_33 [1] : vector<8x8xf32> to vector<8xf32>
    %101 = vector.shape_cast %100 : vector<8xf32> to vector<8x1xf32>
    %102 = vector.broadcast %101 : vector<8x1xf32> to vector<8x8xf32>
    %103 = arith.divf %99, %102 : vector<8x8xf32>
    %104 = arith.truncf %103 : vector<8x8xf32> to vector<8x8xbf16>
    %105 = vector.extract_strided_slice %32 {offsets = [8, 16], sizes = [8, 16], strides = [1, 1]} : vector<16x64xbf16> to vector<8x16xbf16>
    %cst_34 = arith.constant dense<0.000000e+00> : vector<8x16xf32>
    %106 = tpu.matmul %104, %105, %cst_34 {dimension_numbers = #tpu.dot_dimension_numbers<[1], [0], [0], [1], [0, 0, 1, 1], [], []>} : vector<8x8xbf16>, vector<8x16xbf16>, vector<8x16xf32> -> vector<8x16xf32>
    %107 = tpu.concatenate %89, %106 in 0 : vector<8x16xf32>, vector<8x16xf32> -> vector<16x16xf32>
    %108 = arith.truncf %107 : vector<16x16xf32> to vector<16x16xbf16>
    %109 = vector.extract_strided_slice %34 {offsets = [16, 0], sizes = [16, 64], strides = [1, 1]} : vector<64x64xbf16> to vector<16x64xbf16>
    %cst_35 = arith.constant dense<0.000000e+00> : vector<16x64xf32>
    %110 = tpu.matmul %108, %109, %cst_35 {dimension_numbers = #tpu.dot_dimension_numbers<[1], [0], [0], [1], [0, 0, 1, 1], [], []>} : vector<16x16xbf16>, vector<16x64xbf16>, vector<16x64xf32> -> vector<16x64xf32>
    %111 = arith.addf %72, %110 : vector<16x64xf32>
    %112 = vector.extract_strided_slice %30 {offsets = [0, 32], sizes = [8, 16], strides = [1, 1]} : vector<16x64xbf16> to vector<8x16xbf16>
    %113 = vector.extract_strided_slice %31 {offsets = [0, 32], sizes = [8, 16], strides = [1, 1]} : vector<16x64xbf16> to vector<8x16xbf16>
    %cst_36 = arith.constant dense<0.000000e+00> : vector<8x8xf32>
    %114 = tpu.matmul %112, %113, %cst_36 {dimension_numbers = #tpu.dot_dimension_numbers<[1], [1], [0], [0], [0, 0, 1, 0], [], []>} : vector<8x16xbf16>, vector<8x16xbf16>, vector<8x8xf32> -> vector<8x8xf32>
    %cst_37 = arith.constant 0xFF800000 : f32
    %115 = vector.broadcast %cst_37 : f32 to vector<8x8xf32>
    %116 = arith.select %3, %115, %114 : vector<8x8xi1>, vector<8x8xf32>
    %cst_38 = arith.constant dense<0xFF800000> : vector<8xf32>
    %117 = vector.multi_reduction <maximumf>, %116, %cst_38 [1] : vector<8x8xf32> to vector<8xf32>
    %118 = vector.shape_cast %117 : vector<8xf32> to vector<8x1xf32>
    %119 = vector.broadcast %118 : vector<8x1xf32> to vector<8x8xf32>
    %120 = arith.subf %116, %119 : vector<8x8xf32>
    %121 = math.exp %120 : vector<8x8xf32>
    %cst_39 = arith.constant dense<0.000000e+00> : vector<8xf32>
    %122 = vector.multi_reduction <add>, %121, %cst_39 [1] : vector<8x8xf32> to vector<8xf32>
    %123 = vector.shape_cast %122 : vector<8xf32> to vector<8x1xf32>
    %124 = vector.broadcast %123 : vector<8x1xf32> to vector<8x8xf32>
    %125 = arith.divf %121, %124 : vector<8x8xf32>
    %126 = arith.truncf %125 : vector<8x8xf32> to vector<8x8xbf16>
    %127 = vector.extract_strided_slice %32 {offsets = [0, 32], sizes = [8, 16], strides = [1, 1]} : vector<16x64xbf16> to vector<8x16xbf16>
    %cst_40 = arith.constant dense<0.000000e+00> : vector<8x16xf32>
    %128 = tpu.matmul %126, %127, %cst_40 {dimension_numbers = #tpu.dot_dimension_numbers<[1], [0], [0], [1], [0, 0, 1, 1], [], []>} : vector<8x8xbf16>, vector<8x16xbf16>, vector<8x16xf32> -> vector<8x16xf32>
    %129 = vector.extract_strided_slice %30 {offsets = [8, 32], sizes = [8, 16], strides = [1, 1]} : vector<16x64xbf16> to vector<8x16xbf16>
    %130 = vector.extract_strided_slice %31 {offsets = [8, 32], sizes = [8, 16], strides = [1, 1]} : vector<16x64xbf16> to vector<8x16xbf16>
    %cst_41 = arith.constant dense<0.000000e+00> : vector<8x8xf32>
    %131 = tpu.matmul %129, %130, %cst_41 {dimension_numbers = #tpu.dot_dimension_numbers<[1], [1], [0], [0], [0, 0, 1, 0], [], []>} : vector<8x16xbf16>, vector<8x16xbf16>, vector<8x8xf32> -> vector<8x8xf32>
    %cst_42 = arith.constant 0xFF800000 : f32
    %132 = vector.broadcast %cst_42 : f32 to vector<8x8xf32>
    %133 = arith.select %3, %132, %131 : vector<8x8xi1>, vector<8x8xf32>
    %cst_43 = arith.constant dense<0xFF800000> : vector<8xf32>
    %134 = vector.multi_reduction <maximumf>, %133, %cst_43 [1] : vector<8x8xf32> to vector<8xf32>
    %135 = vector.shape_cast %134 : vector<8xf32> to vector<8x1xf32>
    %136 = vector.broadcast %135 : vector<8x1xf32> to vector<8x8xf32>
    %137 = arith.subf %133, %136 : vector<8x8xf32>
    %138 = math.exp %137 : vector<8x8xf32>
    %cst_44 = arith.constant dense<0.000000e+00> : vector<8xf32>
    %139 = vector.multi_reduction <add>, %138, %cst_44 [1] : vector<8x8xf32> to vector<8xf32>
    %140 = vector.shape_cast %139 : vector<8xf32> to vector<8x1xf32>
    %141 = vector.broadcast %140 : vector<8x1xf32> to vector<8x8xf32>
    %142 = arith.divf %138, %141 : vector<8x8xf32>
    %143 = arith.truncf %142 : vector<8x8xf32> to vector<8x8xbf16>
    %144 = vector.extract_strided_slice %32 {offsets = [8, 32], sizes = [8, 16], strides = [1, 1]} : vector<16x64xbf16> to vector<8x16xbf16>
    %cst_45 = arith.constant dense<0.000000e+00> : vector<8x16xf32>
    %145 = tpu.matmul %143, %144, %cst_45 {dimension_numbers = #tpu.dot_dimension_numbers<[1], [0], [0], [1], [0, 0, 1, 1], [], []>} : vector<8x8xbf16>, vector<8x16xbf16>, vector<8x16xf32> -> vector<8x16xf32>
    %146 = tpu.concatenate %128, %145 in 0 : vector<8x16xf32>, vector<8x16xf32> -> vector<16x16xf32>
    %147 = arith.truncf %146 : vector<16x16xf32> to vector<16x16xbf16>
    %148 = vector.extract_strided_slice %34 {offsets = [32, 0], sizes = [16, 64], strides = [1, 1]} : vector<64x64xbf16> to vector<16x64xbf16>
    %cst_46 = arith.constant dense<0.000000e+00> : vector<16x64xf32>
    %149 = tpu.matmul %147, %148, %cst_46 {dimension_numbers = #tpu.dot_dimension_numbers<[1], [0], [0], [1], [0, 0, 1, 1], [], []>} : vector<16x16xbf16>, vector<16x64xbf16>, vector<16x64xf32> -> vector<16x64xf32>
    %150 = arith.addf %111, %149 : vector<16x64xf32>
    %151 = vector.extract_strided_slice %30 {offsets = [0, 48], sizes = [8, 16], strides = [1, 1]} : vector<16x64xbf16> to vector<8x16xbf16>
    %152 = vector.extract_strided_slice %31 {offsets = [0, 48], sizes = [8, 16], strides = [1, 1]} : vector<16x64xbf16> to vector<8x16xbf16>
    %cst_47 = arith.constant dense<0.000000e+00> : vector<8x8xf32>
    %153 = tpu.matmul %151, %152, %cst_47 {dimension_numbers = #tpu.dot_dimension_numbers<[1], [1], [0], [0], [0, 0, 1, 0], [], []>} : vector<8x16xbf16>, vector<8x16xbf16>, vector<8x8xf32> -> vector<8x8xf32>
    %cst_48 = arith.constant 0xFF800000 : f32
    %154 = vector.broadcast %cst_48 : f32 to vector<8x8xf32>
    %155 = arith.select %3, %154, %153 : vector<8x8xi1>, vector<8x8xf32>
    %cst_49 = arith.constant dense<0xFF800000> : vector<8xf32>
    %156 = vector.multi_reduction <maximumf>, %155, %cst_49 [1] : vector<8x8xf32> to vector<8xf32>
    %157 = vector.shape_cast %156 : vector<8xf32> to vector<8x1xf32>
    %158 = vector.broadcast %157 : vector<8x1xf32> to vector<8x8xf32>
    %159 = arith.subf %155, %158 : vector<8x8xf32>
    %160 = math.exp %159 : vector<8x8xf32>
    %cst_50 = arith.constant dense<0.000000e+00> : vector<8xf32>
    %161 = vector.multi_reduction <add>, %160, %cst_50 [1] : vector<8x8xf32> to vector<8xf32>
    %162 = vector.shape_cast %161 : vector<8xf32> to vector<8x1xf32>
    %163 = vector.broadcast %162 : vector<8x1xf32> to vector<8x8xf32>
    %164 = arith.divf %160, %163 : vector<8x8xf32>
    %165 = arith.truncf %164 : vector<8x8xf32> to vector<8x8xbf16>
    %166 = vector.extract_strided_slice %32 {offsets = [0, 48], sizes = [8, 16], strides = [1, 1]} : vector<16x64xbf16> to vector<8x16xbf16>
    %cst_51 = arith.constant dense<0.000000e+00> : vector<8x16xf32>
    %167 = tpu.matmul %165, %166, %cst_51 {dimension_numbers = #tpu.dot_dimension_numbers<[1], [0], [0], [1], [0, 0, 1, 1], [], []>} : vector<8x8xbf16>, vector<8x16xbf16>, vector<8x16xf32> -> vector<8x16xf32>
    %168 = vector.extract_strided_slice %30 {offsets = [8, 48], sizes = [8, 16], strides = [1, 1]} : vector<16x64xbf16> to vector<8x16xbf16>
    %169 = vector.extract_strided_slice %31 {offsets = [8, 48], sizes = [8, 16], strides = [1, 1]} : vector<16x64xbf16> to vector<8x16xbf16>
    %cst_52 = arith.constant dense<0.000000e+00> : vector<8x8xf32>
    %170 = tpu.matmul %168, %169, %cst_52 {dimension_numbers = #tpu.dot_dimension_numbers<[1], [1], [0], [0], [0, 0, 1, 0], [], []>} : vector<8x16xbf16>, vector<8x16xbf16>, vector<8x8xf32> -> vector<8x8xf32>
    %cst_53 = arith.constant 0xFF800000 : f32
    %171 = vector.broadcast %cst_53 : f32 to vector<8x8xf32>
    %172 = arith.select %3, %171, %170 : vector<8x8xi1>, vector<8x8xf32>
    %cst_54 = arith.constant dense<0xFF800000> : vector<8xf32>
    %173 = vector.multi_reduction <maximumf>, %172, %cst_54 [1] : vector<8x8xf32> to vector<8xf32>
    %174 = vector.shape_cast %173 : vector<8xf32> to vector<8x1xf32>
    %175 = vector.broadcast %174 : vector<8x1xf32> to vector<8x8xf32>
    %176 = arith.subf %172, %175 : vector<8x8xf32>
    %177 = math.exp %176 : vector<8x8xf32>
    %cst_55 = arith.constant dense<0.000000e+00> : vector<8xf32>
    %178 = vector.multi_reduction <add>, %177, %cst_55 [1] : vector<8x8xf32> to vector<8xf32>
    %179 = vector.shape_cast %178 : vector<8xf32> to vector<8x1xf32>
    %180 = vector.broadcast %179 : vector<8x1xf32> to vector<8x8xf32>
    %181 = arith.divf %177, %180 : vector<8x8xf32>
    %182 = arith.truncf %181 : vector<8x8xf32> to vector<8x8xbf16>
    %183 = vector.extract_strided_slice %32 {offsets = [8, 48], sizes = [8, 16], strides = [1, 1]} : vector<16x64xbf16> to vector<8x16xbf16>
    %cst_56 = arith.constant dense<0.000000e+00> : vector<8x16xf32>
    %184 = tpu.matmul %182, %183, %cst_56 {dimension_numbers = #tpu.dot_dimension_numbers<[1], [0], [0], [1], [0, 0, 1, 1], [], []>} : vector<8x8xbf16>, vector<8x16xbf16>, vector<8x16xf32> -> vector<8x16xf32>
    %185 = tpu.concatenate %167, %184 in 0 : vector<8x16xf32>, vector<8x16xf32> -> vector<16x16xf32>
    %186 = arith.truncf %185 : vector<16x16xf32> to vector<16x16xbf16>
    %187 = vector.extract_strided_slice %34 {offsets = [48, 0], sizes = [16, 64], strides = [1, 1]} : vector<64x64xbf16> to vector<16x64xbf16>
    %cst_57 = arith.constant dense<0.000000e+00> : vector<16x64xf32>
    %188 = tpu.matmul %186, %187, %cst_57 {dimension_numbers = #tpu.dot_dimension_numbers<[1], [0], [0], [1], [0, 0, 1, 1], [], []>} : vector<16x16xbf16>, vector<16x64xbf16>, vector<16x64xf32> -> vector<16x64xf32>
    %189 = arith.addf %150, %188 : vector<16x64xf32>
    %190 = arith.addf %0, %189 : vector<16x64xf32>
    %c1 = arith.constant 1 : index
    %c0_58 = arith.constant 0 : index
    %191 = vector.load %arg7[%c1, %c0_58] : memref<9x192xf32, #tpu.memory_space<vmem>>, vector<1x64xf32>
    %192 = vector.broadcast %191 : vector<1x64xf32> to vector<16x64xf32>
    %193 = arith.addf %190, %192 : vector<16x64xf32>
    %cst_59 = arith.constant dense<0.000000e+00> : vector<16xf32>
    %194 = vector.multi_reduction <add>, %193, %cst_59 [1] : vector<16x64xf32> to vector<16xf32>
    %195 = vector.shape_cast %194 : vector<16xf32> to vector<16x1xf32>
    %cst_60 = arith.constant 6.400000e+01 : f32
    %196 = vector.broadcast %cst_60 : f32 to vector<16x1xf32>
    %197 = arith.divf %195, %196 : vector<16x1xf32>
    %198 = vector.broadcast %197 : vector<16x1xf32> to vector<16x64xf32>
    %199 = arith.subf %193, %198 : vector<16x64xf32>
    %200 = arith.mulf %199, %199 : vector<16x64xf32>
    %cst_61 = arith.constant dense<0.000000e+00> : vector<16xf32>
    %201 = vector.multi_reduction <add>, %200, %cst_61 [1] : vector<16x64xf32> to vector<16xf32>
    %202 = vector.shape_cast %201 : vector<16xf32> to vector<16x1xf32>
    %cst_62 = arith.constant 6.400000e+01 : f32
    %203 = vector.broadcast %cst_62 : f32 to vector<16x1xf32>
    %204 = arith.divf %202, %203 : vector<16x1xf32>
    %205 = vector.broadcast %197 : vector<16x1xf32> to vector<16x64xf32>
    %206 = arith.subf %193, %205 : vector<16x64xf32>
    %cst_63 = arith.constant 9.99999974E-6 : f32
    %207 = vector.broadcast %cst_63 : f32 to vector<16x1xf32>
    %208 = arith.addf %204, %207 : vector<16x1xf32>
    %209 = math.rsqrt %208 : vector<16x1xf32>
    %210 = vector.broadcast %209 : vector<16x1xf32> to vector<16x64xf32>
    %211 = arith.mulf %206, %210 : vector<16x64xf32>
    %212 = arith.truncf %211 : vector<16x64xf32> to vector<16x64xbf16>
    %c0_64 = arith.constant 0 : index
    %c0_65 = arith.constant 0 : index
    %c0_66 = arith.constant 0 : index
    %213 = vector.load %arg4[%c0_64, %c0_65, %c0_66] : memref<2x64x128xbf16, #tpu.memory_space<vmem>>, vector<1x64x128xbf16>
    %214 = vector.shape_cast %213 : vector<1x64x128xbf16> to vector<64x128xbf16>
    %cst_67 = arith.constant dense<0.000000e+00> : vector<16x128xf32>
    %215 = tpu.matmul %212, %214, %cst_67 {dimension_numbers = #tpu.dot_dimension_numbers<[1], [0], [0], [1], [0, 0, 1, 1], [], []>} : vector<16x64xbf16>, vector<64x128xbf16>, vector<16x128xf32> -> vector<16x128xf32>
    %c2 = arith.constant 2 : index
    %c0_68 = arith.constant 0 : index
    %216 = vector.load %arg7[%c2, %c0_68] : memref<9x192xf32, #tpu.memory_space<vmem>>, vector<1x128xf32>
    %217 = vector.broadcast %216 : vector<1x128xf32> to vector<16x128xf32>
    %218 = arith.addf %215, %217 : vector<16x128xf32>
    %cst_69 = arith.constant 5.000000e-01 : f32
    %219 = vector.broadcast %cst_69 : f32 to vector<16x128xf32>
    %220 = arith.mulf %219, %218 : vector<16x128xf32>
    %cst_70 = arith.constant 4.471500e-02 : f32
    %221 = vector.broadcast %cst_70 : f32 to vector<16x128xf32>
    %222 = arith.mulf %221, %218 : vector<16x128xf32>
    %223 = arith.mulf %222, %218 : vector<16x128xf32>
    %224 = arith.mulf %223, %218 : vector<16x128xf32>
    %225 = arith.addf %218, %224 : vector<16x128xf32>
    %cst_71 = arith.constant 0.797884583 : f32
    %226 = vector.broadcast %cst_71 : f32 to vector<16x128xf32>
    %227 = arith.mulf %226, %225 : vector<16x128xf32>
    %228 = math.tanh %227 : vector<16x128xf32>
    %cst_72 = arith.constant 1.000000e+00 : f32
    %229 = vector.broadcast %cst_72 : f32 to vector<16x128xf32>
    %230 = arith.addf %229, %228 : vector<16x128xf32>
    %231 = arith.mulf %220, %230 : vector<16x128xf32>
    %232 = arith.truncf %231 : vector<16x128xf32> to vector<16x128xbf16>
    %c0_73 = arith.constant 0 : index
    %c0_74 = arith.constant 0 : index
    %c0_75 = arith.constant 0 : index
    %233 = vector.load %arg5[%c0_73, %c0_74, %c0_75] : memref<2x128x64xbf16, #tpu.memory_space<vmem>>, vector<1x128x64xbf16>
    %234 = vector.shape_cast %233 : vector<1x128x64xbf16> to vector<128x64xbf16>
    %cst_76 = arith.constant dense<0.000000e+00> : vector<16x64xf32>
    %235 = tpu.matmul %232, %234, %cst_76 {dimension_numbers = #tpu.dot_dimension_numbers<[1], [0], [0], [1], [0, 0, 1, 1], [], []>} : vector<16x128xbf16>, vector<128x64xbf16>, vector<16x64xf32> -> vector<16x64xf32>
    %c3 = arith.constant 3 : index
    %c0_77 = arith.constant 0 : index
    %236 = vector.load %arg7[%c3, %c0_77] : memref<9x192xf32, #tpu.memory_space<vmem>>, vector<1x64xf32>
    %237 = vector.broadcast %236 : vector<1x64xf32> to vector<16x64xf32>
    %238 = arith.addf %235, %237 : vector<16x64xf32>
    %239 = arith.addf %193, %238 : vector<16x64xf32>
    %cst_78 = arith.constant dense<0.000000e+00> : vector<16xf32>
    %240 = vector.multi_reduction <add>, %239, %cst_78 [1] : vector<16x64xf32> to vector<16xf32>
    %241 = vector.shape_cast %240 : vector<16xf32> to vector<16x1xf32>
    %cst_79 = arith.constant 6.400000e+01 : f32
    %242 = vector.broadcast %cst_79 : f32 to vector<16x1xf32>
    %243 = arith.divf %241, %242 : vector<16x1xf32>
    %244 = vector.broadcast %243 : vector<16x1xf32> to vector<16x64xf32>
    %245 = arith.subf %239, %244 : vector<16x64xf32>
    %246 = arith.mulf %245, %245 : vector<16x64xf32>
    %cst_80 = arith.constant dense<0.000000e+00> : vector<16xf32>
    %247 = vector.multi_reduction <add>, %246, %cst_80 [1] : vector<16x64xf32> to vector<16xf32>
    %248 = vector.shape_cast %247 : vector<16xf32> to vector<16x1xf32>
    %cst_81 = arith.constant 6.400000e+01 : f32
    %249 = vector.broadcast %cst_81 : f32 to vector<16x1xf32>
    %250 = arith.divf %248, %249 : vector<16x1xf32>
    %251 = vector.broadcast %243 : vector<16x1xf32> to vector<16x64xf32>
    %252 = arith.subf %239, %251 : vector<16x64xf32>
    %cst_82 = arith.constant 9.99999974E-6 : f32
    %253 = vector.broadcast %cst_82 : f32 to vector<16x1xf32>
    %254 = arith.addf %250, %253 : vector<16x1xf32>
    %255 = math.rsqrt %254 : vector<16x1xf32>
    %256 = vector.broadcast %255 : vector<16x1xf32> to vector<16x64xf32>
    %257 = arith.mulf %252, %256 : vector<16x64xf32>
    %258 = arith.truncf %257 : vector<16x64xf32> to vector<16x64xbf16>
    %c1_83 = arith.constant 1 : index
    %c0_84 = arith.constant 0 : index
    %c0_85 = arith.constant 0 : index
    %259 = vector.load %arg2[%c1_83, %c0_84, %c0_85] : memref<2x64x192xbf16, #tpu.memory_space<vmem>>, vector<1x64x192xbf16>
    %260 = vector.shape_cast %259 : vector<1x64x192xbf16> to vector<64x192xbf16>
    %cst_86 = arith.constant dense<0.000000e+00> : vector<16x192xf32>
    %261 = tpu.matmul %258, %260, %cst_86 {dimension_numbers = #tpu.dot_dimension_numbers<[1], [0], [0], [1], [0, 0, 1, 1], [], []>} : vector<16x64xbf16>, vector<64x192xbf16>, vector<16x192xf32> -> vector<16x192xf32>
    %c4 = arith.constant 4 : index
    %c0_87 = arith.constant 0 : index
    %262 = vector.load %arg7[%c4, %c0_87] : memref<9x192xf32, #tpu.memory_space<vmem>>, vector<1x192xf32>
    %263 = vector.broadcast %262 : vector<1x192xf32> to vector<16x192xf32>
    %264 = arith.addf %261, %263 : vector<16x192xf32>
    %265 = arith.truncf %264 : vector<16x192xf32> to vector<16x192xbf16>
    %266 = vector.extract_strided_slice %265 {offsets = [0, 0], sizes = [16, 64], strides = [1, 1]} : vector<16x192xbf16> to vector<16x64xbf16>
    %267 = vector.extract_strided_slice %265 {offsets = [0, 64], sizes = [16, 64], strides = [1, 1]} : vector<16x192xbf16> to vector<16x64xbf16>
    %268 = vector.extract_strided_slice %265 {offsets = [0, 128], sizes = [16, 64], strides = [1, 1]} : vector<16x192xbf16> to vector<16x64xbf16>
    %c1_88 = arith.constant 1 : index
    %c0_89 = arith.constant 0 : index
    %c0_90 = arith.constant 0 : index
    %269 = vector.load %arg3[%c1_88, %c0_89, %c0_90] : memref<2x64x64xbf16, #tpu.memory_space<vmem>>, vector<1x64x64xbf16>
    %270 = vector.shape_cast %269 : vector<1x64x64xbf16> to vector<64x64xbf16>
    %271 = vector.extract_strided_slice %266 {offsets = [0, 0], sizes = [8, 16], strides = [1, 1]} : vector<16x64xbf16> to vector<8x16xbf16>
    %272 = vector.extract_strided_slice %267 {offsets = [0, 0], sizes = [8, 16], strides = [1, 1]} : vector<16x64xbf16> to vector<8x16xbf16>
    %cst_91 = arith.constant dense<0.000000e+00> : vector<8x8xf32>
    %273 = tpu.matmul %271, %272, %cst_91 {dimension_numbers = #tpu.dot_dimension_numbers<[1], [1], [0], [0], [0, 0, 1, 0], [], []>} : vector<8x16xbf16>, vector<8x16xbf16>, vector<8x8xf32> -> vector<8x8xf32>
    %cst_92 = arith.constant 0xFF800000 : f32
    %274 = vector.broadcast %cst_92 : f32 to vector<8x8xf32>
    %275 = arith.select %3, %274, %273 : vector<8x8xi1>, vector<8x8xf32>
    %cst_93 = arith.constant dense<0xFF800000> : vector<8xf32>
    %276 = vector.multi_reduction <maximumf>, %275, %cst_93 [1] : vector<8x8xf32> to vector<8xf32>
    %277 = vector.shape_cast %276 : vector<8xf32> to vector<8x1xf32>
    %278 = vector.broadcast %277 : vector<8x1xf32> to vector<8x8xf32>
    %279 = arith.subf %275, %278 : vector<8x8xf32>
    %280 = math.exp %279 : vector<8x8xf32>
    %cst_94 = arith.constant dense<0.000000e+00> : vector<8xf32>
    %281 = vector.multi_reduction <add>, %280, %cst_94 [1] : vector<8x8xf32> to vector<8xf32>
    %282 = vector.shape_cast %281 : vector<8xf32> to vector<8x1xf32>
    %283 = vector.broadcast %282 : vector<8x1xf32> to vector<8x8xf32>
    %284 = arith.divf %280, %283 : vector<8x8xf32>
    %285 = arith.truncf %284 : vector<8x8xf32> to vector<8x8xbf16>
    %286 = vector.extract_strided_slice %268 {offsets = [0, 0], sizes = [8, 16], strides = [1, 1]} : vector<16x64xbf16> to vector<8x16xbf16>
    %cst_95 = arith.constant dense<0.000000e+00> : vector<8x16xf32>
    %287 = tpu.matmul %285, %286, %cst_95 {dimension_numbers = #tpu.dot_dimension_numbers<[1], [0], [0], [1], [0, 0, 1, 1], [], []>} : vector<8x8xbf16>, vector<8x16xbf16>, vector<8x16xf32> -> vector<8x16xf32>
    %288 = vector.extract_strided_slice %266 {offsets = [8, 0], sizes = [8, 16], strides = [1, 1]} : vector<16x64xbf16> to vector<8x16xbf16>
    %289 = vector.extract_strided_slice %267 {offsets = [8, 0], sizes = [8, 16], strides = [1, 1]} : vector<16x64xbf16> to vector<8x16xbf16>
    %cst_96 = arith.constant dense<0.000000e+00> : vector<8x8xf32>
    %290 = tpu.matmul %288, %289, %cst_96 {dimension_numbers = #tpu.dot_dimension_numbers<[1], [1], [0], [0], [0, 0, 1, 0], [], []>} : vector<8x16xbf16>, vector<8x16xbf16>, vector<8x8xf32> -> vector<8x8xf32>
    %cst_97 = arith.constant 0xFF800000 : f32
    %291 = vector.broadcast %cst_97 : f32 to vector<8x8xf32>
    %292 = arith.select %3, %291, %290 : vector<8x8xi1>, vector<8x8xf32>
    %cst_98 = arith.constant dense<0xFF800000> : vector<8xf32>
    %293 = vector.multi_reduction <maximumf>, %292, %cst_98 [1] : vector<8x8xf32> to vector<8xf32>
    %294 = vector.shape_cast %293 : vector<8xf32> to vector<8x1xf32>
    %295 = vector.broadcast %294 : vector<8x1xf32> to vector<8x8xf32>
    %296 = arith.subf %292, %295 : vector<8x8xf32>
    %297 = math.exp %296 : vector<8x8xf32>
    %cst_99 = arith.constant dense<0.000000e+00> : vector<8xf32>
    %298 = vector.multi_reduction <add>, %297, %cst_99 [1] : vector<8x8xf32> to vector<8xf32>
    %299 = vector.shape_cast %298 : vector<8xf32> to vector<8x1xf32>
    %300 = vector.broadcast %299 : vector<8x1xf32> to vector<8x8xf32>
    %301 = arith.divf %297, %300 : vector<8x8xf32>
    %302 = arith.truncf %301 : vector<8x8xf32> to vector<8x8xbf16>
    %303 = vector.extract_strided_slice %268 {offsets = [8, 0], sizes = [8, 16], strides = [1, 1]} : vector<16x64xbf16> to vector<8x16xbf16>
    %cst_100 = arith.constant dense<0.000000e+00> : vector<8x16xf32>
    %304 = tpu.matmul %302, %303, %cst_100 {dimension_numbers = #tpu.dot_dimension_numbers<[1], [0], [0], [1], [0, 0, 1, 1], [], []>} : vector<8x8xbf16>, vector<8x16xbf16>, vector<8x16xf32> -> vector<8x16xf32>
    %305 = tpu.concatenate %287, %304 in 0 : vector<8x16xf32>, vector<8x16xf32> -> vector<16x16xf32>
    %306 = arith.truncf %305 : vector<16x16xf32> to vector<16x16xbf16>
    %307 = vector.extract_strided_slice %270 {offsets = [0, 0], sizes = [16, 64], strides = [1, 1]} : vector<64x64xbf16> to vector<16x64xbf16>
    %cst_101 = arith.constant dense<0.000000e+00> : vector<16x64xf32>
    %308 = tpu.matmul %306, %307, %cst_101 {dimension_numbers = #tpu.dot_dimension_numbers<[1], [0], [0], [1], [0, 0, 1, 1], [], []>} : vector<16x16xbf16>, vector<16x64xbf16>, vector<16x64xf32> -> vector<16x64xf32>
    %309 = vector.extract_strided_slice %266 {offsets = [0, 16], sizes = [8, 16], strides = [1, 1]} : vector<16x64xbf16> to vector<8x16xbf16>
    %310 = vector.extract_strided_slice %267 {offsets = [0, 16], sizes = [8, 16], strides = [1, 1]} : vector<16x64xbf16> to vector<8x16xbf16>
    %cst_102 = arith.constant dense<0.000000e+00> : vector<8x8xf32>
    %311 = tpu.matmul %309, %310, %cst_102 {dimension_numbers = #tpu.dot_dimension_numbers<[1], [1], [0], [0], [0, 0, 1, 0], [], []>} : vector<8x16xbf16>, vector<8x16xbf16>, vector<8x8xf32> -> vector<8x8xf32>
    %cst_103 = arith.constant 0xFF800000 : f32
    %312 = vector.broadcast %cst_103 : f32 to vector<8x8xf32>
    %313 = arith.select %3, %312, %311 : vector<8x8xi1>, vector<8x8xf32>
    %cst_104 = arith.constant dense<0xFF800000> : vector<8xf32>
    %314 = vector.multi_reduction <maximumf>, %313, %cst_104 [1] : vector<8x8xf32> to vector<8xf32>
    %315 = vector.shape_cast %314 : vector<8xf32> to vector<8x1xf32>
    %316 = vector.broadcast %315 : vector<8x1xf32> to vector<8x8xf32>
    %317 = arith.subf %313, %316 : vector<8x8xf32>
    %318 = math.exp %317 : vector<8x8xf32>
    %cst_105 = arith.constant dense<0.000000e+00> : vector<8xf32>
    %319 = vector.multi_reduction <add>, %318, %cst_105 [1] : vector<8x8xf32> to vector<8xf32>
    %320 = vector.shape_cast %319 : vector<8xf32> to vector<8x1xf32>
    %321 = vector.broadcast %320 : vector<8x1xf32> to vector<8x8xf32>
    %322 = arith.divf %318, %321 : vector<8x8xf32>
    %323 = arith.truncf %322 : vector<8x8xf32> to vector<8x8xbf16>
    %324 = vector.extract_strided_slice %268 {offsets = [0, 16], sizes = [8, 16], strides = [1, 1]} : vector<16x64xbf16> to vector<8x16xbf16>
    %cst_106 = arith.constant dense<0.000000e+00> : vector<8x16xf32>
    %325 = tpu.matmul %323, %324, %cst_106 {dimension_numbers = #tpu.dot_dimension_numbers<[1], [0], [0], [1], [0, 0, 1, 1], [], []>} : vector<8x8xbf16>, vector<8x16xbf16>, vector<8x16xf32> -> vector<8x16xf32>
    %326 = vector.extract_strided_slice %266 {offsets = [8, 16], sizes = [8, 16], strides = [1, 1]} : vector<16x64xbf16> to vector<8x16xbf16>
    %327 = vector.extract_strided_slice %267 {offsets = [8, 16], sizes = [8, 16], strides = [1, 1]} : vector<16x64xbf16> to vector<8x16xbf16>
    %cst_107 = arith.constant dense<0.000000e+00> : vector<8x8xf32>
    %328 = tpu.matmul %326, %327, %cst_107 {dimension_numbers = #tpu.dot_dimension_numbers<[1], [1], [0], [0], [0, 0, 1, 0], [], []>} : vector<8x16xbf16>, vector<8x16xbf16>, vector<8x8xf32> -> vector<8x8xf32>
    %cst_108 = arith.constant 0xFF800000 : f32
    %329 = vector.broadcast %cst_108 : f32 to vector<8x8xf32>
    %330 = arith.select %3, %329, %328 : vector<8x8xi1>, vector<8x8xf32>
    %cst_109 = arith.constant dense<0xFF800000> : vector<8xf32>
    %331 = vector.multi_reduction <maximumf>, %330, %cst_109 [1] : vector<8x8xf32> to vector<8xf32>
    %332 = vector.shape_cast %331 : vector<8xf32> to vector<8x1xf32>
    %333 = vector.broadcast %332 : vector<8x1xf32> to vector<8x8xf32>
    %334 = arith.subf %330, %333 : vector<8x8xf32>
    %335 = math.exp %334 : vector<8x8xf32>
    %cst_110 = arith.constant dense<0.000000e+00> : vector<8xf32>
    %336 = vector.multi_reduction <add>, %335, %cst_110 [1] : vector<8x8xf32> to vector<8xf32>
    %337 = vector.shape_cast %336 : vector<8xf32> to vector<8x1xf32>
    %338 = vector.broadcast %337 : vector<8x1xf32> to vector<8x8xf32>
    %339 = arith.divf %335, %338 : vector<8x8xf32>
    %340 = arith.truncf %339 : vector<8x8xf32> to vector<8x8xbf16>
    %341 = vector.extract_strided_slice %268 {offsets = [8, 16], sizes = [8, 16], strides = [1, 1]} : vector<16x64xbf16> to vector<8x16xbf16>
    %cst_111 = arith.constant dense<0.000000e+00> : vector<8x16xf32>
    %342 = tpu.matmul %340, %341, %cst_111 {dimension_numbers = #tpu.dot_dimension_numbers<[1], [0], [0], [1], [0, 0, 1, 1], [], []>} : vector<8x8xbf16>, vector<8x16xbf16>, vector<8x16xf32> -> vector<8x16xf32>
    %343 = tpu.concatenate %325, %342 in 0 : vector<8x16xf32>, vector<8x16xf32> -> vector<16x16xf32>
    %344 = arith.truncf %343 : vector<16x16xf32> to vector<16x16xbf16>
    %345 = vector.extract_strided_slice %270 {offsets = [16, 0], sizes = [16, 64], strides = [1, 1]} : vector<64x64xbf16> to vector<16x64xbf16>
    %cst_112 = arith.constant dense<0.000000e+00> : vector<16x64xf32>
    %346 = tpu.matmul %344, %345, %cst_112 {dimension_numbers = #tpu.dot_dimension_numbers<[1], [0], [0], [1], [0, 0, 1, 1], [], []>} : vector<16x16xbf16>, vector<16x64xbf16>, vector<16x64xf32> -> vector<16x64xf32>
    %347 = arith.addf %308, %346 : vector<16x64xf32>
    %348 = vector.extract_strided_slice %266 {offsets = [0, 32], sizes = [8, 16], strides = [1, 1]} : vector<16x64xbf16> to vector<8x16xbf16>
    %349 = vector.extract_strided_slice %267 {offsets = [0, 32], sizes = [8, 16], strides = [1, 1]} : vector<16x64xbf16> to vector<8x16xbf16>
    %cst_113 = arith.constant dense<0.000000e+00> : vector<8x8xf32>
    %350 = tpu.matmul %348, %349, %cst_113 {dimension_numbers = #tpu.dot_dimension_numbers<[1], [1], [0], [0], [0, 0, 1, 0], [], []>} : vector<8x16xbf16>, vector<8x16xbf16>, vector<8x8xf32> -> vector<8x8xf32>
    %cst_114 = arith.constant 0xFF800000 : f32
    %351 = vector.broadcast %cst_114 : f32 to vector<8x8xf32>
    %352 = arith.select %3, %351, %350 : vector<8x8xi1>, vector<8x8xf32>
    %cst_115 = arith.constant dense<0xFF800000> : vector<8xf32>
    %353 = vector.multi_reduction <maximumf>, %352, %cst_115 [1] : vector<8x8xf32> to vector<8xf32>
    %354 = vector.shape_cast %353 : vector<8xf32> to vector<8x1xf32>
    %355 = vector.broadcast %354 : vector<8x1xf32> to vector<8x8xf32>
    %356 = arith.subf %352, %355 : vector<8x8xf32>
    %357 = math.exp %356 : vector<8x8xf32>
    %cst_116 = arith.constant dense<0.000000e+00> : vector<8xf32>
    %358 = vector.multi_reduction <add>, %357, %cst_116 [1] : vector<8x8xf32> to vector<8xf32>
    %359 = vector.shape_cast %358 : vector<8xf32> to vector<8x1xf32>
    %360 = vector.broadcast %359 : vector<8x1xf32> to vector<8x8xf32>
    %361 = arith.divf %357, %360 : vector<8x8xf32>
    %362 = arith.truncf %361 : vector<8x8xf32> to vector<8x8xbf16>
    %363 = vector.extract_strided_slice %268 {offsets = [0, 32], sizes = [8, 16], strides = [1, 1]} : vector<16x64xbf16> to vector<8x16xbf16>
    %cst_117 = arith.constant dense<0.000000e+00> : vector<8x16xf32>
    %364 = tpu.matmul %362, %363, %cst_117 {dimension_numbers = #tpu.dot_dimension_numbers<[1], [0], [0], [1], [0, 0, 1, 1], [], []>} : vector<8x8xbf16>, vector<8x16xbf16>, vector<8x16xf32> -> vector<8x16xf32>
    %365 = vector.extract_strided_slice %266 {offsets = [8, 32], sizes = [8, 16], strides = [1, 1]} : vector<16x64xbf16> to vector<8x16xbf16>
    %366 = vector.extract_strided_slice %267 {offsets = [8, 32], sizes = [8, 16], strides = [1, 1]} : vector<16x64xbf16> to vector<8x16xbf16>
    %cst_118 = arith.constant dense<0.000000e+00> : vector<8x8xf32>
    %367 = tpu.matmul %365, %366, %cst_118 {dimension_numbers = #tpu.dot_dimension_numbers<[1], [1], [0], [0], [0, 0, 1, 0], [], []>} : vector<8x16xbf16>, vector<8x16xbf16>, vector<8x8xf32> -> vector<8x8xf32>
    %cst_119 = arith.constant 0xFF800000 : f32
    %368 = vector.broadcast %cst_119 : f32 to vector<8x8xf32>
    %369 = arith.select %3, %368, %367 : vector<8x8xi1>, vector<8x8xf32>
    %cst_120 = arith.constant dense<0xFF800000> : vector<8xf32>
    %370 = vector.multi_reduction <maximumf>, %369, %cst_120 [1] : vector<8x8xf32> to vector<8xf32>
    %371 = vector.shape_cast %370 : vector<8xf32> to vector<8x1xf32>
    %372 = vector.broadcast %371 : vector<8x1xf32> to vector<8x8xf32>
    %373 = arith.subf %369, %372 : vector<8x8xf32>
    %374 = math.exp %373 : vector<8x8xf32>
    %cst_121 = arith.constant dense<0.000000e+00> : vector<8xf32>
    %375 = vector.multi_reduction <add>, %374, %cst_121 [1] : vector<8x8xf32> to vector<8xf32>
    %376 = vector.shape_cast %375 : vector<8xf32> to vector<8x1xf32>
    %377 = vector.broadcast %376 : vector<8x1xf32> to vector<8x8xf32>
    %378 = arith.divf %374, %377 : vector<8x8xf32>
    %379 = arith.truncf %378 : vector<8x8xf32> to vector<8x8xbf16>
    %380 = vector.extract_strided_slice %268 {offsets = [8, 32], sizes = [8, 16], strides = [1, 1]} : vector<16x64xbf16> to vector<8x16xbf16>
    %cst_122 = arith.constant dense<0.000000e+00> : vector<8x16xf32>
    %381 = tpu.matmul %379, %380, %cst_122 {dimension_numbers = #tpu.dot_dimension_numbers<[1], [0], [0], [1], [0, 0, 1, 1], [], []>} : vector<8x8xbf16>, vector<8x16xbf16>, vector<8x16xf32> -> vector<8x16xf32>
    %382 = tpu.concatenate %364, %381 in 0 : vector<8x16xf32>, vector<8x16xf32> -> vector<16x16xf32>
    %383 = arith.truncf %382 : vector<16x16xf32> to vector<16x16xbf16>
    %384 = vector.extract_strided_slice %270 {offsets = [32, 0], sizes = [16, 64], strides = [1, 1]} : vector<64x64xbf16> to vector<16x64xbf16>
    %cst_123 = arith.constant dense<0.000000e+00> : vector<16x64xf32>
    %385 = tpu.matmul %383, %384, %cst_123 {dimension_numbers = #tpu.dot_dimension_numbers<[1], [0], [0], [1], [0, 0, 1, 1], [], []>} : vector<16x16xbf16>, vector<16x64xbf16>, vector<16x64xf32> -> vector<16x64xf32>
    %386 = arith.addf %347, %385 : vector<16x64xf32>
    %387 = vector.extract_strided_slice %266 {offsets = [0, 48], sizes = [8, 16], strides = [1, 1]} : vector<16x64xbf16> to vector<8x16xbf16>
    %388 = vector.extract_strided_slice %267 {offsets = [0, 48], sizes = [8, 16], strides = [1, 1]} : vector<16x64xbf16> to vector<8x16xbf16>
    %cst_124 = arith.constant dense<0.000000e+00> : vector<8x8xf32>
    %389 = tpu.matmul %387, %388, %cst_124 {dimension_numbers = #tpu.dot_dimension_numbers<[1], [1], [0], [0], [0, 0, 1, 0], [], []>} : vector<8x16xbf16>, vector<8x16xbf16>, vector<8x8xf32> -> vector<8x8xf32>
    %cst_125 = arith.constant 0xFF800000 : f32
    %390 = vector.broadcast %cst_125 : f32 to vector<8x8xf32>
    %391 = arith.select %3, %390, %389 : vector<8x8xi1>, vector<8x8xf32>
    %cst_126 = arith.constant dense<0xFF800000> : vector<8xf32>
    %392 = vector.multi_reduction <maximumf>, %391, %cst_126 [1] : vector<8x8xf32> to vector<8xf32>
    %393 = vector.shape_cast %392 : vector<8xf32> to vector<8x1xf32>
    %394 = vector.broadcast %393 : vector<8x1xf32> to vector<8x8xf32>
    %395 = arith.subf %391, %394 : vector<8x8xf32>
    %396 = math.exp %395 : vector<8x8xf32>
    %cst_127 = arith.constant dense<0.000000e+00> : vector<8xf32>
    %397 = vector.multi_reduction <add>, %396, %cst_127 [1] : vector<8x8xf32> to vector<8xf32>
    %398 = vector.shape_cast %397 : vector<8xf32> to vector<8x1xf32>
    %399 = vector.broadcast %398 : vector<8x1xf32> to vector<8x8xf32>
    %400 = arith.divf %396, %399 : vector<8x8xf32>
    %401 = arith.truncf %400 : vector<8x8xf32> to vector<8x8xbf16>
    %402 = vector.extract_strided_slice %268 {offsets = [0, 48], sizes = [8, 16], strides = [1, 1]} : vector<16x64xbf16> to vector<8x16xbf16>
    %cst_128 = arith.constant dense<0.000000e+00> : vector<8x16xf32>
    %403 = tpu.matmul %401, %402, %cst_128 {dimension_numbers = #tpu.dot_dimension_numbers<[1], [0], [0], [1], [0, 0, 1, 1], [], []>} : vector<8x8xbf16>, vector<8x16xbf16>, vector<8x16xf32> -> vector<8x16xf32>
    %404 = vector.extract_strided_slice %266 {offsets = [8, 48], sizes = [8, 16], strides = [1, 1]} : vector<16x64xbf16> to vector<8x16xbf16>
    %405 = vector.extract_strided_slice %267 {offsets = [8, 48], sizes = [8, 16], strides = [1, 1]} : vector<16x64xbf16> to vector<8x16xbf16>
    %cst_129 = arith.constant dense<0.000000e+00> : vector<8x8xf32>
    %406 = tpu.matmul %404, %405, %cst_129 {dimension_numbers = #tpu.dot_dimension_numbers<[1], [1], [0], [0], [0, 0, 1, 0], [], []>} : vector<8x16xbf16>, vector<8x16xbf16>, vector<8x8xf32> -> vector<8x8xf32>
    %cst_130 = arith.constant 0xFF800000 : f32
    %407 = vector.broadcast %cst_130 : f32 to vector<8x8xf32>
    %408 = arith.select %3, %407, %406 : vector<8x8xi1>, vector<8x8xf32>
    %cst_131 = arith.constant dense<0xFF800000> : vector<8xf32>
    %409 = vector.multi_reduction <maximumf>, %408, %cst_131 [1] : vector<8x8xf32> to vector<8xf32>
    %410 = vector.shape_cast %409 : vector<8xf32> to vector<8x1xf32>
    %411 = vector.broadcast %410 : vector<8x1xf32> to vector<8x8xf32>
    %412 = arith.subf %408, %411 : vector<8x8xf32>
    %413 = math.exp %412 : vector<8x8xf32>
    %cst_132 = arith.constant dense<0.000000e+00> : vector<8xf32>
    %414 = vector.multi_reduction <add>, %413, %cst_132 [1] : vector<8x8xf32> to vector<8xf32>
    %415 = vector.shape_cast %414 : vector<8xf32> to vector<8x1xf32>
    %416 = vector.broadcast %415 : vector<8x1xf32> to vector<8x8xf32>
    %417 = arith.divf %413, %416 : vector<8x8xf32>
    %418 = arith.truncf %417 : vector<8x8xf32> to vector<8x8xbf16>
    %419 = vector.extract_strided_slice %268 {offsets = [8, 48], sizes = [8, 16], strides = [1, 1]} : vector<16x64xbf16> to vector<8x16xbf16>
    %cst_133 = arith.constant dense<0.000000e+00> : vector<8x16xf32>
    %420 = tpu.matmul %418, %419, %cst_133 {dimension_numbers = #tpu.dot_dimension_numbers<[1], [0], [0], [1], [0, 0, 1, 1], [], []>} : vector<8x8xbf16>, vector<8x16xbf16>, vector<8x16xf32> -> vector<8x16xf32>
    %421 = tpu.concatenate %403, %420 in 0 : vector<8x16xf32>, vector<8x16xf32> -> vector<16x16xf32>
    %422 = arith.truncf %421 : vector<16x16xf32> to vector<16x16xbf16>
    %423 = vector.extract_strided_slice %270 {offsets = [48, 0], sizes = [16, 64], strides = [1, 1]} : vector<64x64xbf16> to vector<16x64xbf16>
    %cst_134 = arith.constant dense<0.000000e+00> : vector<16x64xf32>
    %424 = tpu.matmul %422, %423, %cst_134 {dimension_numbers = #tpu.dot_dimension_numbers<[1], [0], [0], [1], [0, 0, 1, 1], [], []>} : vector<16x16xbf16>, vector<16x64xbf16>, vector<16x64xf32> -> vector<16x64xf32>
    %425 = arith.addf %386, %424 : vector<16x64xf32>
    %426 = arith.addf %239, %425 : vector<16x64xf32>
    %c5 = arith.constant 5 : index
    %c0_135 = arith.constant 0 : index
    %427 = vector.load %arg7[%c5, %c0_135] : memref<9x192xf32, #tpu.memory_space<vmem>>, vector<1x64xf32>
    %428 = vector.broadcast %427 : vector<1x64xf32> to vector<16x64xf32>
    %429 = arith.addf %426, %428 : vector<16x64xf32>
    %cst_136 = arith.constant dense<0.000000e+00> : vector<16xf32>
    %430 = vector.multi_reduction <add>, %429, %cst_136 [1] : vector<16x64xf32> to vector<16xf32>
    %431 = vector.shape_cast %430 : vector<16xf32> to vector<16x1xf32>
    %cst_137 = arith.constant 6.400000e+01 : f32
    %432 = vector.broadcast %cst_137 : f32 to vector<16x1xf32>
    %433 = arith.divf %431, %432 : vector<16x1xf32>
    %434 = vector.broadcast %433 : vector<16x1xf32> to vector<16x64xf32>
    %435 = arith.subf %429, %434 : vector<16x64xf32>
    %436 = arith.mulf %435, %435 : vector<16x64xf32>
    %cst_138 = arith.constant dense<0.000000e+00> : vector<16xf32>
    %437 = vector.multi_reduction <add>, %436, %cst_138 [1] : vector<16x64xf32> to vector<16xf32>
    %438 = vector.shape_cast %437 : vector<16xf32> to vector<16x1xf32>
    %cst_139 = arith.constant 6.400000e+01 : f32
    %439 = vector.broadcast %cst_139 : f32 to vector<16x1xf32>
    %440 = arith.divf %438, %439 : vector<16x1xf32>
    %441 = vector.broadcast %433 : vector<16x1xf32> to vector<16x64xf32>
    %442 = arith.subf %429, %441 : vector<16x64xf32>
    %cst_140 = arith.constant 9.99999974E-6 : f32
    %443 = vector.broadcast %cst_140 : f32 to vector<16x1xf32>
    %444 = arith.addf %440, %443 : vector<16x1xf32>
    %445 = math.rsqrt %444 : vector<16x1xf32>
    %446 = vector.broadcast %445 : vector<16x1xf32> to vector<16x64xf32>
    %447 = arith.mulf %442, %446 : vector<16x64xf32>
    %448 = arith.truncf %447 : vector<16x64xf32> to vector<16x64xbf16>
    %c1_141 = arith.constant 1 : index
    %c0_142 = arith.constant 0 : index
    %c0_143 = arith.constant 0 : index
    %449 = vector.load %arg4[%c1_141, %c0_142, %c0_143] : memref<2x64x128xbf16, #tpu.memory_space<vmem>>, vector<1x64x128xbf16>
    %450 = vector.shape_cast %449 : vector<1x64x128xbf16> to vector<64x128xbf16>
    %cst_144 = arith.constant dense<0.000000e+00> : vector<16x128xf32>
    %451 = tpu.matmul %448, %450, %cst_144 {dimension_numbers = #tpu.dot_dimension_numbers<[1], [0], [0], [1], [0, 0, 1, 1], [], []>} : vector<16x64xbf16>, vector<64x128xbf16>, vector<16x128xf32> -> vector<16x128xf32>
    %c6 = arith.constant 6 : index
    %c0_145 = arith.constant 0 : index
    %452 = vector.load %arg7[%c6, %c0_145] : memref<9x192xf32, #tpu.memory_space<vmem>>, vector<1x128xf32>
    %453 = vector.broadcast %452 : vector<1x128xf32> to vector<16x128xf32>
    %454 = arith.addf %451, %453 : vector<16x128xf32>
    %cst_146 = arith.constant 5.000000e-01 : f32
    %455 = vector.broadcast %cst_146 : f32 to vector<16x128xf32>
    %456 = arith.mulf %455, %454 : vector<16x128xf32>
    %cst_147 = arith.constant 4.471500e-02 : f32
    %457 = vector.broadcast %cst_147 : f32 to vector<16x128xf32>
    %458 = arith.mulf %457, %454 : vector<16x128xf32>
    %459 = arith.mulf %458, %454 : vector<16x128xf32>
    %460 = arith.mulf %459, %454 : vector<16x128xf32>
    %461 = arith.addf %454, %460 : vector<16x128xf32>
    %cst_148 = arith.constant 0.797884583 : f32
    %462 = vector.broadcast %cst_148 : f32 to vector<16x128xf32>
    %463 = arith.mulf %462, %461 : vector<16x128xf32>
    %464 = math.tanh %463 : vector<16x128xf32>
    %cst_149 = arith.constant 1.000000e+00 : f32
    %465 = vector.broadcast %cst_149 : f32 to vector<16x128xf32>
    %466 = arith.addf %465, %464 : vector<16x128xf32>
    %467 = arith.mulf %456, %466 : vector<16x128xf32>
    %468 = arith.truncf %467 : vector<16x128xf32> to vector<16x128xbf16>
    %c1_150 = arith.constant 1 : index
    %c0_151 = arith.constant 0 : index
    %c0_152 = arith.constant 0 : index
    %469 = vector.load %arg5[%c1_150, %c0_151, %c0_152] : memref<2x128x64xbf16, #tpu.memory_space<vmem>>, vector<1x128x64xbf16>
    %470 = vector.shape_cast %469 : vector<1x128x64xbf16> to vector<128x64xbf16>
    %cst_153 = arith.constant dense<0.000000e+00> : vector<16x64xf32>
    %471 = tpu.matmul %468, %470, %cst_153 {dimension_numbers = #tpu.dot_dimension_numbers<[1], [0], [0], [1], [0, 0, 1, 1], [], []>} : vector<16x128xbf16>, vector<128x64xbf16>, vector<16x64xf32> -> vector<16x64xf32>
    %c7 = arith.constant 7 : index
    %c0_154 = arith.constant 0 : index
    %472 = vector.load %arg7[%c7, %c0_154] : memref<9x192xf32, #tpu.memory_space<vmem>>, vector<1x64xf32>
    %473 = vector.broadcast %472 : vector<1x64xf32> to vector<16x64xf32>
    %474 = arith.addf %471, %473 : vector<16x64xf32>
    %475 = arith.addf %429, %474 : vector<16x64xf32>
    %cst_155 = arith.constant dense<0.000000e+00> : vector<16xf32>
    %476 = vector.multi_reduction <add>, %475, %cst_155 [1] : vector<16x64xf32> to vector<16xf32>
    %477 = vector.shape_cast %476 : vector<16xf32> to vector<16x1xf32>
    %cst_156 = arith.constant 6.400000e+01 : f32
    %478 = vector.broadcast %cst_156 : f32 to vector<16x1xf32>
    %479 = arith.divf %477, %478 : vector<16x1xf32>
    %480 = vector.broadcast %479 : vector<16x1xf32> to vector<16x64xf32>
    %481 = arith.subf %475, %480 : vector<16x64xf32>
    %482 = arith.mulf %481, %481 : vector<16x64xf32>
    %cst_157 = arith.constant dense<0.000000e+00> : vector<16xf32>
    %483 = vector.multi_reduction <add>, %482, %cst_157 [1] : vector<16x64xf32> to vector<16xf32>
    %484 = vector.shape_cast %483 : vector<16xf32> to vector<16x1xf32>
    %cst_158 = arith.constant 6.400000e+01 : f32
    %485 = vector.broadcast %cst_158 : f32 to vector<16x1xf32>
    %486 = arith.divf %484, %485 : vector<16x1xf32>
    %487 = vector.broadcast %479 : vector<16x1xf32> to vector<16x64xf32>
    %488 = arith.subf %475, %487 : vector<16x64xf32>
    %cst_159 = arith.constant 9.99999974E-6 : f32
    %489 = vector.broadcast %cst_159 : f32 to vector<16x1xf32>
    %490 = arith.addf %486, %489 : vector<16x1xf32>
    %491 = math.rsqrt %490 : vector<16x1xf32>
    %492 = vector.broadcast %491 : vector<16x1xf32> to vector<16x64xf32>
    %493 = arith.mulf %488, %492 : vector<16x64xf32>
    %494 = arith.truncf %493 : vector<16x64xf32> to vector<16x64xbf16>
    %c0_160 = arith.constant 0 : index
    %c0_161 = arith.constant 0 : index
    %495 = vector.load %arg6[%c0_160, %c0_161] : memref<64x128xbf16, #tpu.memory_space<vmem>>, vector<64x128xbf16>
    %cst_162 = arith.constant dense<0.000000e+00> : vector<16x128xf32>
    %496 = tpu.matmul %494, %495, %cst_162 {dimension_numbers = #tpu.dot_dimension_numbers<[1], [0], [0], [1], [0, 0, 1, 1], [], []>} : vector<16x64xbf16>, vector<64x128xbf16>, vector<16x128xf32> -> vector<16x128xf32>
    %c8 = arith.constant 8 : index
    %c0_163 = arith.constant 0 : index
    %497 = vector.load %arg7[%c8, %c0_163] : memref<9x192xf32, #tpu.memory_space<vmem>>, vector<1x128xf32>
    %498 = vector.broadcast %497 : vector<1x128xf32> to vector<16x128xf32>
    %499 = arith.addf %496, %498 : vector<16x128xf32>
    %c0_164 = arith.constant 0 : index
    %c0_165 = arith.constant 0 : index
    %500 = vector.load %arg8[%c0_164, %c0_165] : memref<16x128xf32, #tpu.memory_space<vmem>>, vector<16x128xf32>
    tpu.vector_store %arg8[%c0_164, %c0_165], %499 {strides = array<i32>} : memref<16x128xf32, #tpu.memory_space<vmem>>, vector<16x128xf32>,
    %c0_166 = arith.constant 0 : index
    %c0_167 = arith.constant 0 : index
    %501 = vector.load %arg1[%c0_166, %c0_167] : memref<16x1xi32, #tpu.memory_space<vmem>>, vector<16x1xi32>
    %cst_168 = arith.constant dense<0xFF800000> : vector<16xf32>
    %502 = vector.multi_reduction <maximumf>, %499, %cst_168 [1] : vector<16x128xf32> to vector<16xf32>
    %503 = vector.shape_cast %502 : vector<16xf32> to vector<16x1xf32>
    %504 = vector.broadcast %503 : vector<16x1xf32> to vector<16x128xf32>
    %505 = arith.subf %499, %504 : vector<16x128xf32>
    %506 = math.exp %505 : vector<16x128xf32>
    %cst_169 = arith.constant dense<0.000000e+00> : vector<16xf32>
    %507 = vector.multi_reduction <add>, %506, %cst_169 [1] : vector<16x128xf32> to vector<16xf32>
    %508 = vector.shape_cast %507 : vector<16xf32> to vector<16x1xf32>
    %509 = math.log %508 : vector<16x1xf32>
    %510 = arith.addf %509, %503 : vector<16x1xf32>
    %511 = tpu.iota {dimensions = array<i32: 1>} : vector<16x128xi32>
    %512 = vector.broadcast %501 : vector<16x1xi32> to vector<16x128xi32>
    %513 = arith.cmpi eq, %511, %512 : vector<16x128xi32>
    %cst_170 = arith.constant 0.000000e+00 : f32
    %514 = vector.broadcast %cst_170 : f32 to vector<16x128xf32>
    %515 = arith.select %513, %499, %514 : vector<16x128xi1>, vector<16x128xf32>
    %cst_171 = arith.constant dense<0.000000e+00> : vector<16xf32>
    %516 = vector.multi_reduction <add>, %515, %cst_171 [1] : vector<16x128xf32> to vector<16xf32>
    %517 = vector.shape_cast %516 : vector<16xf32> to vector<16x1xf32>
    %518 = arith.subf %510, %517 : vector<16x1xf32>
    %519 = vector.shape_cast %518 : vector<16x1xf32> to vector<1x16x1xf32>
    %cst_172 = arith.constant dense<0.000000e+00> : vector<1xf32>
    %520 = vector.multi_reduction <add>, %519, %cst_172 [1, 2] : vector<1x16x1xf32> to vector<1xf32>
    %521 = vector.shape_cast %520 : vector<1xf32> to vector<1x1x1xf32>
    %522 = vector.extract %521[0, 0, 0] : f32 from vector<1x1x1xf32>
    %cst_173 = arith.constant 1.600000e+01 : f32
    %523 = arith.divf %522, %cst_173 : f32
    %524 = vector.broadcast %523 : f32 to vector<1x1xf32>
    %c0_174 = arith.constant 0 : index
    %c0_175 = arith.constant 0 : index
    %525 = vector.load %arg9[%c0_174, %c0_175] : memref<1x1xf32, #tpu.memory_space<vmem>>, vector<1x1xf32>
    tpu.vector_store %arg9[%c0_174, %c0_175], %524 {strides = array<i32>} : memref<1x1xf32, #tpu.memory_space<vmem>>, vector<1x1xf32>,
    return
  }
}

</mosaic_0001>

<llo_original>
// kernel: gpt_forward.1
$region0: #{gpt_forward.1}
  #allocation0 [shape = 'u32[]', space=smem, size = 0x4, offset = 0x4, fixed_abs, tag = 'smem constant byte address 0x4 - core index']
  #allocation1 [shape = 'u32[144,128]{1,0:T(1,128)}', space=vmem, size = 0x12000, scoped, tag = 'internal scratch']
  %s0 = inlined_call_operand.vmem [shape: f32[16,64], index: 0, kind: input, shape index: {}]
  %s1 = inlined_call_operand.vmem [shape: s32[16,1], index: 1, kind: input, shape index: {}]
  %s2 = inlined_call_operand.vmem [shape: bf16[2,64,192], index: 2, kind: input, shape index: {}]
  %s3 = inlined_call_operand.vmem [shape: bf16[2,64,64], index: 3, kind: input, shape index: {}]
  %s4 = inlined_call_operand.vmem [shape: bf16[2,64,128], index: 4, kind: input, shape index: {}]
  %s5 = inlined_call_operand.vmem [shape: bf16[2,128,64], index: 5, kind: input, shape index: {}]
  %s6 = inlined_call_operand.vmem [shape: bf16[64,128], index: 6, kind: input, shape index: {}]
  %s7 = inlined_call_operand.vmem [shape: f32[9,192], index: 7, kind: input, shape index: {}]
  %s8 = inlined_call_operand.hbm [shape: f32[16,128], index: 8, kind: output, shape index: {0}]
  %s9 = inlined_call_operand.hbm [shape: f32[1,1], index: 9, kind: output, shape index: {1}]
  %10 = xla_tuple %s8, %s9
  %s11 = sld [smem:[#allocation0]]
  $region50: #{gpt_forward.1} parent=0
    _
  %s13 = ssub.s32 1, %s11
  %s14 = scalar_select 0, %s13, %s11
  $region1: #{gpt_forward.1} parent=0
    #allocation2 [shape = 'u8[8192]{0}', space=vmem, size = 0x2000, scoped, tag = 'output window, operand 0, single buffered']
    #allocation3 [shape = 's32[1]{0}', space=sflag, size = 0x4, scoped, tag = 'scoped memory for gpt_forward.1']
    #allocation4 [shape = 'u8[512]{0}', space=vmem, size = 0x400, scoped, tag = 'output window, operand 1, single buffered']
    #allocation5 [shape = 's32[1]{0}', space=sflag, size = 0x4, scoped, tag = 'scoped memory for gpt_forward.1']
    %15 = vsyncpa [#allocation3], 0
    %16 = vsyncpa [#allocation5], 0
    // Predicated region
    $region2: #{gpt_forward.1} parent=1 // pred_check
      _
    $region3: #{gpt_forward.1} parent=1 // pred_check_branch
      %18 = sbr.rel (0) target = $region5
    $region4: #{gpt_forward.1} parent=1 // pred_region
      _
    $region5: #{gpt_forward.1} parent=1 // pred_fallthru
      _
    // Predicated region
    $region6: #{gpt_forward.1} parent=1 // pred_check
      _
    $region7: #{gpt_forward.1} parent=1 // pred_check_branch
      %20 = sbr.rel (0) target = $region9
    $region8: #{gpt_forward.1} parent=1 // pred_region
      _
    $region9: #{gpt_forward.1} parent=1 // pred_fallthru
      _
    // Predicated region
    $region10: #{gpt_forward.1} parent=1 // pred_check
      _
    $region11: #{gpt_forward.1} parent=1 // pred_check_branch
      %22 = sbr.rel (0) target = $region13
    $region12: #{gpt_forward.1} parent=1 // pred_region
      _
    $region13: #{gpt_forward.1} parent=1 // pred_fallthru
      _
    // Predicated region
    $region14: #{gpt_forward.1} parent=1 // pred_check
      _
    $region15: #{gpt_forward.1} parent=1 // pred_check_branch
      %24 = sbr.rel (0) target = $region17
    $region16: #{gpt_forward.1} parent=1 // pred_region
      _
    $region17: #{gpt_forward.1} parent=1 // pred_fallthru
      _
    // Predicated region
    $region18: #{gpt_forward.1} parent=1 // pred_check
      _
    $region19: #{gpt_forward.1} parent=1 // pred_check_branch
      %26 = sbr.rel (0) target = $region21
    $region20: #{gpt_forward.1} parent=1 // pred_region
      _
    $region21: #{gpt_forward.1} parent=1 // pred_fallthru
      _
    // Predicated region
    $region22: #{gpt_forward.1} parent=1 // pred_check
      _
    $region23: #{gpt_forward.1} parent=1 // pred_check_branch
      %28 = sbr.rel (0) target = $region25
    $region24: #{gpt_forward.1} parent=1 // pred_region
      _
    $region25: #{gpt_forward.1} parent=1 // pred_fallthru
      _
    // Predicated region
    $region26: #{gpt_forward.1} parent=1 // pred_check
      _
    $region27: #{gpt_forward.1} parent=1 // pred_check_branch
      %30 = sbr.rel (0) target = $region29
    $region28: #{gpt_forward.1} parent=1 // pred_region
      _
    $region29: #{gpt_forward.1} parent=1 // pred_fallthru
      _
    // Predicated region
    $region30: #{gpt_forward.1} parent=1 // pred_check
      _
    $region31: #{gpt_forward.1} parent=1 // pred_check_branch
      %32 = sbr.rel (0) target = $region33
    $region32: #{gpt_forward.1} parent=1 // pred_region
      _
    $region33: #{gpt_forward.1} parent=1 // pred_fallthru
      _
    %v34 = vld [vmem:[%s0] sm:$0xff]
    %v35 = vld [vmem:[%s0 + $0x8] sm:$0xff]
    %v36 = vlaneseq
    %v37 = vshrl.u32 %v36, 7
    %v38 = vlaneseq
    %v39 = vand.u32 %v38, 127
    %vm40 = vcmp.gt.s32.totalorder %v39, %v37
    %vm41 = vcmask 523264
    %v42 = vsel %vm41, %v34, 0.0
    %43 = vadd.xlane.f32.xlu0 %v42
    %v44 = vpop.xlane.xlu0 %43
    %v45 = vsel %vm41, %v35, 0.0
    %46 = vadd.xlane.f32.xlu0 %v45
    %v47 = vpop.xlane.xlu0 %46
    %v48 = vrcp.pop 64.0
    %v49 = vmul.f32 %v44, %v48
    %v50 = vmul.f32 %v47, %v48
    %v51 = vsub.f32 %v34, %v49
    %v52 = vsub.f32 %v35, %v50
    %v53 = vmul.f32 %v51, %v51
    %v54 = vmul.f32 %v52, %v52
    %v55 = vsel %vm41, %v53, 0.0
    %56 = vadd.xlane.f32.xlu0 %v55
    %v57 = vpop.xlane.xlu0 %56
    %v58 = vsel %vm41, %v54, 0.0
    %59 = vadd.xlane.f32.xlu0 %v58
    %v60 = vpop.xlane.xlu0 %59
    %v61 = vmul.f32 %v57, %v48
    %v62 = vmul.f32 %v60, %v48
    %v63 = vadd.f32 %v61, 1e-05
    %v64 = vadd.f32 %v62, 1e-05
    %v65 = vrsqrt.pop %v63
    %v66 = vrsqrt.pop %v64
    %v67 = vmul.f32 %v51, %v65
    %v68 = vmul.f32 %v52, %v66
    %v69 = vpack.c.bf16 %v68, %v67
    %v70 = vld [vmem:[%s2] sm:$0xff]
    %v71 = vld [vmem:[%s2 + $0x8] sm:$0xff]
    %v72 = vld [vmem:[%s2 + $0x10] sm:$0xff]
    %v73 = vld [vmem:[%s2 + $0x18] sm:$0xff]
    %v74 = vld [vmem:[%s2 + $0x20] sm:$0xff]
    %v75 = vld [vmem:[%s2 + $0x28] sm:$0xff]
    %v76 = vld [vmem:[%s2 + $0x30] sm:$0xff]
    %v77 = vld [vmem:[%s2 + $0x38] sm:$0xff]
    %v78 = vld [vmem:[%s7] ss:$8 sm:$0x3]
    %v80 = vlaneseq
    %v81 = vshrl.u32 %v80, 7
    %v82 = vsub.s32 0, %v81
    %v83 = vrot.slane %v78, %v82
    %v84 = vlaneseq
    %v85 = vshrl.u32 %v84, 7
    %v86 = vsub.s32 1, %v85
    %v87 = vrot.slane %v78, %v86
    %v98 = vunpack.c.l.b16 %v70
    %v99 = vunpack.c.h.b16 %v70
    %v100 = vunpack.c.l.b16 %v71
    %v101 = vunpack.c.h.b16 %v71
    %v102 = vunpack.c.l.b16 %v72
    %v103 = vunpack.c.h.b16 %v72
    %v104 = vunpack.c.l.b16 %v73
    %v105 = vunpack.c.h.b16 %v73
    %v106 = vunpack.c.l.b16 %v74
    %v107 = vunpack.c.h.b16 %v74
    %v108 = vunpack.c.l.b16 %v75
    %v109 = vunpack.c.h.b16 %v75
    %v110 = vunpack.c.l.b16 %v76
    %v111 = vunpack.c.h.b16 %v76
    %v112 = vunpack.c.l.b16 %v77
    %v113 = vunpack.c.h.b16 %v77
    %v114 = vpack.c.b16 %v100, %v98
    %v115 = vpack.c.b16 %v101, %v99
    %v116 = vpack.c.b16 %v104, %v102
    %v117 = vpack.c.b16 %v105, %v103
    %v118 = vpack.c.b16 %v108, %v106
    %v119 = vpack.c.b16 %v109, %v107
    %v120 = vpack.c.b16 %v112, %v110
    %v121 = vpack.c.b16 %v113, %v111
    %v131 = vsel %vm41, %v69, 0
    %133 = vmatprep.subr.bf16.mxu0 %v115
    %134 = vmatpush1.bf16.msra.mxu0 %v114
    %135 = vmatprep.subr.bf16.mxu0 %v117
    %136 = vmatpush1.bf16.msra.mxu0 %v116
    %137 = vmatprep.subr.bf16.mxu0 %v119
    %138 = vmatpush1.bf16.msra.mxu0 %v118
    %139 = vmatprep.subr.bf16.mxu0 %v121
    %140 = vmatpush1.bf16.msra.mxu0 %v120
    %141 = vmatprep.subr.bf16.mxu0 0
    %142 = vmatpush1.bf16.msra.mxu0 0
    %143 = vmatprep.subr.bf16.mxu0 0
    %144 = vmatpush1.bf16.msra.mxu0 0
    %145 = vmatprep.subr.bf16.mxu0 0
    %146 = vmatpush1.bf16.msra.mxu0 0
    %147 = vmatprep.subr.bf16.mxu0 0
    %148 = vmatpush1.bf16.msra.mxu0 0
    %149 = vmatprep.subr.bf16.mxu0 0
    %150 = vmatpush1.bf16.msra.mxu0 0
    %151 = vmatprep.subr.bf16.mxu0 0
    %152 = vmatpush1.bf16.msra.mxu0 0
    %153 = vmatprep.subr.bf16.mxu0 0
    %154 = vmatpush1.bf16.msra.mxu0 0
    %155 = vmatprep.subr.bf16.mxu0 0
    %156 = vmatpush1.bf16.msra.mxu0 0
    %157 = vmatprep.subr.bf16.mxu0 0
    %158 = vmatpush1.bf16.msra.mxu0 0
    %159 = vmatprep.subr.bf16.mxu0 0
    %160 = vmatpush1.bf16.msra.mxu0 0
    %161 = vmatprep.subr.bf16.mxu0 0
    %162 = vmatpush1.bf16.msra.mxu0 0
    %163 = vmatprep.subr.bf16.mxu0 0
    %164 = vmatpush1.bf16.msra.mxu0 0
    %165 = vmatprep.mubr.bf16.mxu0 0
    %166 = vmatmul.mubr.bf16.gmra.mrb[0].mxu0 %v131
    %v167 = vpop.f32.mrb[0].mxu0
    %v168 = vadd.f32 %v83, %v167
    %v169 = vpop.f32.mrb[0].mxu0
    %v170 = vadd.f32 %v87, %v169
    %v171 = vpop.f32.mrb[0].mxu0
    %v172 = vadd.f32 %v83, %v171
    %v173 = vpop.f32.mrb[0].mxu0
    %v174 = vadd.f32 %v87, %v173
    %175 = vdwg.mxu0
    %v176 = vpack.c.bf16 %v172, %v168
    %v177 = vpack.c.bf16 %v174, %v170
    %v178 = vld [vmem:[%s3] sm:$0xf]
    %v179 = vld [vmem:[%s3 + $0x4] sm:$0xf]
    %v180 = vld [vmem:[%s3 + $0x8] sm:$0xf]
    %v181 = vld [vmem:[%s3 + $0xc] sm:$0xf]
    %v182 = vld [vmem:[%s3 + $0x10] sm:$0xf]
    %v183 = vld [vmem:[%s3 + $0x14] sm:$0xf]
    %v184 = vld [vmem:[%s3 + $0x18] sm:$0xf]
    %v185 = vld [vmem:[%s3 + $0x1c] sm:$0xf]
    %187 = vrot.lane.b32.xlu0 %v176, 64
    %v188 = vpop.permute.xlu0 %187
    %vm189 = vcmask 130048
    %v191 = vsel %vm189, %v176, 0
    %v194 = vsel %vm189, %v188, 0
    %196 = vmatprep.subr.bf16.mxu0 0
    %197 = vmatpush1.bf16.xpose.msra.mxu0 %v194
    %198 = vmatprep.subr.bf16.mxu0 0
    %199 = vmatpush1.bf16.xpose.msra.mxu0 0
    %200 = vmatprep.subr.bf16.mxu0 0
    %201 = vmatpush1.bf16.xpose.msra.mxu0 0
    %202 = vmatprep.subr.bf16.mxu0 0
    %203 = vmatpush1.bf16.xpose.msra.mxu0 0
    %204 = vmatprep.subr.bf16.mxu0 0
    %205 = vmatpush1.bf16.xpose.msra.mxu0 0
    %206 = vmatprep.subr.bf16.mxu0 0
    %207 = vmatpush1.bf16.xpose.msra.mxu0 0
    %208 = vmatprep.subr.bf16.mxu0 0
    %209 = vmatpush1.bf16.xpose.msra.mxu0 0
    %210 = vmatprep.subr.bf16.mxu0 0
    %211 = vmatpush1.bf16.xpose.msra.mxu0 0
    %212 = vmatprep.subr.bf16.mxu0 0
    %213 = vmatpush1.bf16.xpose.msra.mxu0 0
    %214 = vmatprep.subr.bf16.mxu0 0
    %215 = vmatpush1.bf16.xpose.msra.mxu0 0
    %216 = vmatprep.subr.bf16.mxu0 0
    %217 = vmatpush1.bf16.xpose.msra.mxu0 0
    %218 = vmatprep.subr.bf16.mxu0 0
    %219 = vmatpush1.bf16.xpose.msra.mxu0 0
    %220 = vmatprep.subr.bf16.mxu0 0
    %221 = vmatpush1.bf16.xpose.msra.mxu0 0
    %222 = vmatprep.subr.bf16.mxu0 0
    %223 = vmatpush1.bf16.xpose.msra.mxu0 0
    %224 = vmatprep.subr.bf16.mxu0 0
    %225 = vmatpush1.bf16.xpose.msra.mxu0 0
    %226 = vmatprep.subr.bf16.mxu0 0
    %227 = vmatpush1.bf16.xpose.msra.mxu0 0
    %228 = vmatprep.mubr.bf16.mxu0 0
    %229 = vmatmul.mubr.bf16.gmra.mrb[0].mxu0 %v191
    %v230 = vpop.f32.mrb[0].mxu0
    %v231 = vadd.f32 0.0, %v230
    %v232 = vpop.f32.mrb[0].mxu0
    %v233 = vpop.f32.mrb[0].mxu0
    %v234 = vpop.f32.mrb[0].mxu0
    %235 = vdwg.mxu0
    %v236 = vsel %vm40, -inf, %v231
    %vm237 = vcmask 64512
    %v238 = vsel %vm237, %v236, -inf
    %239 = vmax.xlane.f32.xlu0 %v238
    %v240 = vpop.xlane.xlu0 %239
    %v241 = vsub.f32 %v236, %v240
    %v242 = vmul.f32 %v241, 1.442695
    %v243 = vpow.pop %v242
    %v244 = vsel %vm237, %v243, 0.0
    %245 = vadd.xlane.f32.xlu0 %v244
    %v246 = vpop.xlane.xlu0 %245
    %v247 = vrcp.pop %v246
    %v248 = vmul.f32 %v243, %v247
    %v249 = vpack.c.bf16 %v248, %v248
    %v251 = vsel %vm237, %v249, 0
    %vm253 = vcmask 1043456
    %v255 = vsel %vm253, %v177, 0
    %257 = vmatprep.subr.bf16.mxu0 0
    %258 = vmatpush1.bf16.msra.mxu0 %v255
    %259 = vmatprep.subr.bf16.mxu0 0
    %260 = vmatpush1.bf16.msra.mxu0 0
    %261 = vmatprep.subr.bf16.mxu0 0
    %262 = vmatpush1.bf16.msra.mxu0 0
    %263 = vmatprep.subr.bf16.mxu0 0
    %264 = vmatpush1.bf16.msra.mxu0 0
    %265 = vmatprep.subr.bf16.mxu0 0
    %266 = vmatpush1.bf16.msra.mxu0 0
    %267 = vmatprep.subr.bf16.mxu0 0
    %268 = vmatpush1.bf16.msra.mxu0 0
    %269 = vmatprep.subr.bf16.mxu0 0
    %270 = vmatpush1.bf16.msra.mxu0 0
    %271 = vmatprep.subr.bf16.mxu0 0
    %272 = vmatpush1.bf16.msra.mxu0 0
    %273 = vmatprep.subr.bf16.mxu0 0
    %274 = vmatpush1.bf16.msra.mxu0 0
    %275 = vmatprep.subr.bf16.mxu0 0
    %276 = vmatpush1.bf16.msra.mxu0 0
    %277 = vmatprep.subr.bf16.mxu0 0
    %278 = vmatpush1.bf16.msra.mxu0 0
    %279 = vmatprep.subr.bf16.mxu0 0
    %280 = vmatpush1.bf16.msra.mxu0 0
    %281 = vmatprep.subr.bf16.mxu0 0
    %282 = vmatpush1.bf16.msra.mxu0 0
    %283 = vmatprep.subr.bf16.mxu0 0
    %284 = vmatpush1.bf16.msra.mxu0 0
    %285 = vmatprep.subr.bf16.mxu0 0
    %286 = vmatpush1.bf16.msra.mxu0 0
    %287 = vmatprep.subr.bf16.mxu0 0
    %288 = vmatpush1.bf16.msra.mxu0 0
    %289 = vmatprep.mubr.bf16.mxu0 0
    %290 = vmatmul.mubr.bf16.gmra.mrb[0].mxu0 %v251
    %v291 = vpop.f32.mrb[0].mxu0
    %v292 = vadd.f32 0.0, %v291
    %v293 = vpop.f32.mrb[0].mxu0
    %v294 = vpop.f32.mrb[0].mxu0
    %v295 = vpop.f32.mrb[0].mxu0
    %296 = vdwg.mxu0
    %v297 = vrot.slane %v176, 4
    %298 = vrot.lane.b32.xlu0 %v297, 64
    %v299 = vpop.permute.xlu0 %298
    %v301 = vsel %vm189, %v297, 0
    %v304 = vsel %vm189, %v299, 0
    %306 = vmatprep.subr.bf16.mxu0 0
    %307 = vmatpush1.bf16.xpose.msra.mxu0 %v304
    %308 = vmatprep.subr.bf16.mxu0 0
    %309 = vmatpush1.bf16.xpose.msra.mxu0 0
    %310 = vmatprep.subr.bf16.mxu0 0
    %311 = vmatpush1.bf16.xpose.msra.mxu0 0
    %312 = vmatprep.subr.bf16.mxu0 0
    %313 = vmatpush1.bf16.xpose.msra.mxu0 0
    %314 = vmatprep.subr.bf16.mxu0 0
    %315 = vmatpush1.bf16.xpose.msra.mxu0 0
    %316 = vmatprep.subr.bf16.mxu0 0
    %317 = vmatpush1.bf16.xpose.msra.mxu0 0
    %318 = vmatprep.subr.bf16.mxu0 0
    %319 = vmatpush1.bf16.xpose.msra.mxu0 0
    %320 = vmatprep.subr.bf16.mxu0 0
    %321 = vmatpush1.bf16.xpose.msra.mxu0 0
    %322 = vmatprep.subr.bf16.mxu0 0
    %323 = vmatpush1.bf16.xpose.msra.mxu0 0
    %324 = vmatprep.subr.bf16.mxu0 0
    %325 = vmatpush1.bf16.xpose.msra.mxu0 0
    %326 = vmatprep.subr.bf16.mxu0 0
    %327 = vmatpush1.bf16.xpose.msra.mxu0 0
    %328 = vmatprep.subr.bf16.mxu0 0
    %329 = vmatpush1.bf16.xpose.msra.mxu0 0
    %330 = vmatprep.subr.bf16.mxu0 0
    %331 = vmatpush1.bf16.xpose.msra.mxu0 0
    %332 = vmatprep.subr.bf16.mxu0 0
    %333 = vmatpush1.bf16.xpose.msra.mxu0 0
    %334 = vmatprep.subr.bf16.mxu0 0
    %335 = vmatpush1.bf16.xpose.msra.mxu0 0
    %336 = vmatprep.subr.bf16.mxu0 0
    %337 = vmatpush1.bf16.xpose.msra.mxu0 0
    %338 = vmatprep.mubr.bf16.mxu0 0
    %339 = vmatmul.mubr.bf16.gmra.mrb[0].mxu0 %v301
    %v340 = vpop.f32.mrb[0].mxu0
    %v341 = vadd.f32 0.0, %v340
    %v342 = vpop.f32.mrb[0].mxu0
    %v343 = vpop.f32.mrb[0].mxu0
    %v344 = vpop.f32.mrb[0].mxu0
    %345 = vdwg.mxu0
    %v346 = vsel %vm40, -inf, %v341
    %v347 = vsel %vm237, %v346, -inf
    %348 = vmax.xlane.f32.xlu0 %v347
    %v349 = vpop.xlane.xlu0 %348
    %v350 = vsub.f32 %v346, %v349
    %v351 = vmul.f32 %v350, 1.442695
    %v352 = vpow.pop %v351
    %v353 = vsel %vm237, %v352, 0.0
    %354 = vadd.xlane.f32.xlu0 %v353
    %v355 = vpop.xlane.xlu0 %354
    %v356 = vrcp.pop %v355
    %v357 = vmul.f32 %v352, %v356
    %v358 = vpack.c.bf16 %v357, %v357
    %v360 = vrot.slane %v177, 4
    %v362 = vsel %vm237, %v358, 0
    %v365 = vsel %vm253, %v360, 0
    %367 = vmatprep.subr.bf16.mxu0 0
    %368 = vmatpush1.bf16.msra.mxu0 %v365
    %369 = vmatprep.subr.bf16.mxu0 0
    %370 = vmatpush1.bf16.msra.mxu0 0
    %371 = vmatprep.subr.bf16.mxu0 0
    %372 = vmatpush1.bf16.msra.mxu0 0
    %373 = vmatprep.subr.bf16.mxu0 0
    %374 = vmatpush1.bf16.msra.mxu0 0
    %375 = vmatprep.subr.bf16.mxu0 0
    %376 = vmatpush1.bf16.msra.mxu0 0
    %377 = vmatprep.subr.bf16.mxu0 0
    %378 = vmatpush1.bf16.msra.mxu0 0
    %379 = vmatprep.subr.bf16.mxu0 0
    %380 = vmatpush1.bf16.msra.mxu0 0
    %381 = vmatprep.subr.bf16.mxu0 0
    %382 = vmatpush1.bf16.msra.mxu0 0
    %383 = vmatprep.subr.bf16.mxu0 0
    %384 = vmatpush1.bf16.msra.mxu0 0
    %385 = vmatprep.subr.bf16.mxu0 0
    %386 = vmatpush1.bf16.msra.mxu0 0
    %387 = vmatprep.subr.bf16.mxu0 0
    %388 = vmatpush1.bf16.msra.mxu0 0
    %389 = vmatprep.subr.bf16.mxu0 0
    %390 = vmatpush1.bf16.msra.mxu0 0
    %391 = vmatprep.subr.bf16.mxu0 0
    %392 = vmatpush1.bf16.msra.mxu0 0
    %393 = vmatprep.subr.bf16.mxu0 0
    %394 = vmatpush1.bf16.msra.mxu0 0
    %395 = vmatprep.subr.bf16.mxu0 0
    %396 = vmatpush1.bf16.msra.mxu0 0
    %397 = vmatprep.subr.bf16.mxu0 0
    %398 = vmatpush1.bf16.msra.mxu0 0
    %399 = vmatprep.mubr.bf16.mxu0 0
    %400 = vmatmul.mubr.bf16.gmra.mrb[0].mxu0 %v362
    %v401 = vpop.f32.mrb[0].mxu0
    %v402 = vadd.f32 0.0, %v401
    %v403 = vpop.f32.mrb[0].mxu0
    %v404 = vpop.f32.mrb[0].mxu0
    %v405 = vpop.f32.mrb[0].mxu0
    %406 = vdwg.mxu0
    %v407 = vpack.c.bf16 %v402, %v292
    %408 = vrot.lane.b32.xlu0 %v176, 112
    %v409 = vpop.permute.xlu0 %408
    %410 = vrot.lane.b32.xlu0 %v176, 48
    %v411 = vpop.permute.xlu0 %410
    %v413 = vsel %vm189, %v409, 0
    %v416 = vsel %vm189, %v411, 0
    %418 = vmatprep.subr.bf16.mxu0 0
    %419 = vmatpush1.bf16.xpose.msra.mxu0 %v416
    %420 = vmatprep.subr.bf16.mxu0 0
    %421 = vmatpush1.bf16.xpose.msra.mxu0 0
    %422 = vmatprep.subr.bf16.mxu0 0
    %423 = vmatpush1.bf16.xpose.msra.mxu0 0
    %424 = vmatprep.subr.bf16.mxu0 0
    %425 = vmatpush1.bf16.xpose.msra.mxu0 0
    %426 = vmatprep.subr.bf16.mxu0 0
    %427 = vmatpush1.bf16.xpose.msra.mxu0 0
    %428 = vmatprep.subr.bf16.mxu0 0
    %429 = vmatpush1.bf16.xpose.msra.mxu0 0
    %430 = vmatprep.subr.bf16.mxu0 0
    %431 = vmatpush1.bf16.xpose.msra.mxu0 0
    %432 = vmatprep.subr.bf16.mxu0 0
    %433 = vmatpush1.bf16.xpose.msra.mxu0 0
    %434 = vmatprep.subr.bf16.mxu0 0
    %435 = vmatpush1.bf16.xpose.msra.mxu0 0
    %436 = vmatprep.subr.bf16.mxu0 0
    %437 = vmatpush1.bf16.xpose.msra.mxu0 0
    %438 = vmatprep.subr.bf16.mxu0 0
    %439 = vmatpush1.bf16.xpose.msra.mxu0 0
    %440 = vmatprep.subr.bf16.mxu0 0
    %441 = vmatpush1.bf16.xpose.msra.mxu0 0
    %442 = vmatprep.subr.bf16.mxu0 0
    %443 = vmatpush1.bf16.xpose.msra.mxu0 0
    %444 = vmatprep.subr.bf16.mxu0 0
    %445 = vmatpush1.bf16.xpose.msra.mxu0 0
    %446 = vmatprep.subr.bf16.mxu0 0
    %447 = vmatpush1.bf16.xpose.msra.mxu0 0
    %448 = vmatprep.subr.bf16.mxu0 0
    %449 = vmatpush1.bf16.xpose.msra.mxu0 0
    %450 = vmatprep.mubr.bf16.mxu0 0
    %451 = vmatmul.mubr.bf16.gmra.mrb[0].mxu0 %v413
    %v452 = vpop.f32.mrb[0].mxu0
    %v453 = vadd.f32 0.0, %v452
    %v454 = vpop.f32.mrb[0].mxu0
    %v455 = vpop.f32.mrb[0].mxu0
    %v456 = vpop.f32.mrb[0].mxu0
    %457 = vdwg.mxu0
    %v458 = vsel %vm40, -inf, %v453
    %v459 = vsel %vm237, %v458, -inf
    %460 = vmax.xlane.f32.xlu0 %v459
    %v461 = vpop.xlane.xlu0 %460
    %v462 = vsub.f32 %v458, %v461
    %v463 = vmul.f32 %v462, 1.442695
    %v464 = vpow.pop %v463
    %v465 = vsel %vm237, %v464, 0.0
    %466 = vadd.xlane.f32.xlu0 %v465
    %v467 = vpop.xlane.xlu0 %466
    %v468 = vrcp.pop %v467
    %v469 = vmul.f32 %v464, %v468
    %v470 = vpack.c.bf16 %v469, %v469
    %471 = vrot.lane.b32.xlu0 %v177, 112
    %v472 = vpop.permute.xlu0 %471
    %v474 = vsel %vm237, %v470, 0
    %v477 = vsel %vm253, %v472, 0
    %479 = vmatprep.subr.bf16.mxu0 0
    %480 = vmatpush1.bf16.msra.mxu0 %v477
    %481 = vmatprep.subr.bf16.mxu0 0
    %482 = vmatpush1.bf16.msra.mxu0 0
    %483 = vmatprep.subr.bf16.mxu0 0
    %484 = vmatpush1.bf16.msra.mxu0 0
    %485 = vmatprep.subr.bf16.mxu0 0
    %486 = vmatpush1.bf16.msra.mxu0 0
    %487 = vmatprep.subr.bf16.mxu0 0
    %488 = vmatpush1.bf16.msra.mxu0 0
    %489 = vmatprep.subr.bf16.mxu0 0
    %490 = vmatpush1.bf16.msra.mxu0 0
    %491 = vmatprep.subr.bf16.mxu0 0
    %492 = vmatpush1.bf16.msra.mxu0 0
    %493 = vmatprep.subr.bf16.mxu0 0
    %494 = vmatpush1.bf16.msra.mxu0 0
    %495 = vmatprep.subr.bf16.mxu0 0
    %496 = vmatpush1.bf16.msra.mxu0 0
    %497 = vmatprep.subr.bf16.mxu0 0
    %498 = vmatpush1.bf16.msra.mxu0 0
    %499 = vmatprep.subr.bf16.mxu0 0
    %500 = vmatpush1.bf16.msra.mxu0 0
    %501 = vmatprep.subr.bf16.mxu0 0
    %502 = vmatpush1.bf16.msra.mxu0 0
    %503 = vmatprep.subr.bf16.mxu0 0
    %504 = vmatpush1.bf16.msra.mxu0 0
    %505 = vmatprep.subr.bf16.mxu0 0
    %506 = vmatpush1.bf16.msra.mxu0 0
    %507 = vmatprep.subr.bf16.mxu0 0
    %508 = vmatpush1.bf16.msra.mxu0 0
    %509 = vmatprep.subr.bf16.mxu0 0
    %510 = vmatpush1.bf16.msra.mxu0 0
    %511 = vmatprep.mubr.bf16.mxu0 0
    %512 = vmatmul.mubr.bf16.gmra.mrb[0].mxu0 %v474
    %v513 = vpop.f32.mrb[0].mxu0
    %v514 = vadd.f32 0.0, %v513
    %v515 = vpop.f32.mrb[0].mxu0
    %v516 = vpop.f32.mrb[0].mxu0
    %v517 = vpop.f32.mrb[0].mxu0
    %518 = vdwg.mxu0
    %519 = vrot.lane.b32.xlu0 %v297, 112
    %v520 = vpop.permute.xlu0 %519
    %521 = vrot.lane.b32.xlu0 %v297, 48
    %v522 = vpop.permute.xlu0 %521
    %v524 = vsel %vm189, %v520, 0
    %v527 = vsel %vm189, %v522, 0
    %529 = vmatprep.subr.bf16.mxu0 0
    %530 = vmatpush1.bf16.xpose.msra.mxu0 %v527
    %531 = vmatprep.subr.bf16.mxu0 0
    %532 = vmatpush1.bf16.xpose.msra.mxu0 0
    %533 = vmatprep.subr.bf16.mxu0 0
    %534 = vmatpush1.bf16.xpose.msra.mxu0 0
    %535 = vmatprep.subr.bf16.mxu0 0
    %536 = vmatpush1.bf16.xpose.msra.mxu0 0
    %537 = vmatprep.subr.bf16.mxu0 0
    %538 = vmatpush1.bf16.xpose.msra.mxu0 0
    %539 = vmatprep.subr.bf16.mxu0 0
    %540 = vmatpush1.bf16.xpose.msra.mxu0 0
    %541 = vmatprep.subr.bf16.mxu0 0
    %542 = vmatpush1.bf16.xpose.msra.mxu0 0
    %543 = vmatprep.subr.bf16.mxu0 0
    %544 = vmatpush1.bf16.xpose.msra.mxu0 0
    %545 = vmatprep.subr.bf16.mxu0 0
    %546 = vmatpush1.bf16.xpose.msra.mxu0 0
    %547 = vmatprep.subr.bf16.mxu0 0
    %548 = vmatpush1.bf16.xpose.msra.mxu0 0
    %549 = vmatprep.subr.bf16.mxu0 0
    %550 = vmatpush1.bf16.xpose.msra.mxu0 0
    %551 = vmatprep.subr.bf16.mxu0 0
    %552 = vmatpush1.bf16.xpose.msra.mxu0 0
    %553 = vmatprep.subr.bf16.mxu0 0
    %554 = vmatpush1.bf16.xpose.msra.mxu0 0
    %555 = vmatprep.subr.bf16.mxu0 0
    %556 = vmatpush1.bf16.xpose.msra.mxu0 0
    %557 = vmatprep.subr.bf16.mxu0 0
    %558 = vmatpush1.bf16.xpose.msra.mxu0 0
    %559 = vmatprep.subr.bf16.mxu0 0
    %560 = vmatpush1.bf16.xpose.msra.mxu0 0
    %561 = vmatprep.mubr.bf16.mxu0 0
    %562 = vmatmul.mubr.bf16.gmra.mrb[0].mxu0 %v524
    %v563 = vpop.f32.mrb[0].mxu0
    %v564 = vadd.f32 0.0, %v563
    %v565 = vpop.f32.mrb[0].mxu0
    %v566 = vpop.f32.mrb[0].mxu0
    %v567 = vpop.f32.mrb[0].mxu0
    %568 = vdwg.mxu0
    %v569 = vsel %vm40, -inf, %v564
    %v570 = vsel %vm237, %v569, -inf
    %571 = vmax.xlane.f32.xlu0 %v570
    %v572 = vpop.xlane.xlu0 %571
    %v573 = vsub.f32 %v569, %v572
    %v574 = vmul.f32 %v573, 1.442695
    %v575 = vpow.pop %v574
    %v576 = vsel %vm237, %v575, 0.0
    %577 = vadd.xlane.f32.xlu0 %v576
    %v578 = vpop.xlane.xlu0 %577
    %v579 = vrcp.pop %v578
    %v580 = vmul.f32 %v575, %v579
    %v581 = vpack.c.bf16 %v580, %v580
    %582 = vrot.lane.b32.xlu0 %v360, 112
    %v583 = vpop.permute.xlu0 %582
    %v585 = vsel %vm237, %v581, 0
    %v588 = vsel %vm253, %v583, 0
    %590 = vmatprep.subr.bf16.mxu0 0
    %591 = vmatpush1.bf16.msra.mxu0 %v588
    %592 = vmatprep.subr.bf16.mxu0 0
    %593 = vmatpush1.bf16.msra.mxu0 0
    %594 = vmatprep.subr.bf16.mxu0 0
    %595 = vmatpush1.bf16.msra.mxu0 0
    %596 = vmatprep.subr.bf16.mxu0 0
    %597 = vmatpush1.bf16.msra.mxu0 0
    %598 = vmatprep.subr.bf16.mxu0 0
    %599 = vmatpush1.bf16.msra.mxu0 0
    %600 = vmatprep.subr.bf16.mxu0 0
    %601 = vmatpush1.bf16.msra.mxu0 0
    %602 = vmatprep.subr.bf16.mxu0 0
    %603 = vmatpush1.bf16.msra.mxu0 0
    %604 = vmatprep.subr.bf16.mxu0 0
    %605 = vmatpush1.bf16.msra.mxu0 0
    %606 = vmatprep.subr.bf16.mxu0 0
    %607 = vmatpush1.bf16.msra.mxu0 0
    %608 = vmatprep.subr.bf16.mxu0 0
    %609 = vmatpush1.bf16.msra.mxu0 0
    %610 = vmatprep.subr.bf16.mxu0 0
    %611 = vmatpush1.bf16.msra.mxu0 0
    %612 = vmatprep.subr.bf16.mxu0 0
    %613 = vmatpush1.bf16.msra.mxu0 0
    %614 = vmatprep.subr.bf16.mxu0 0
    %615 = vmatpush1.bf16.msra.mxu0 0
    %616 = vmatprep.subr.bf16.mxu0 0
    %617 = vmatpush1.bf16.msra.mxu0 0
    %618 = vmatprep.subr.bf16.mxu0 0
    %619 = vmatpush1.bf16.msra.mxu0 0
    %620 = vmatprep.subr.bf16.mxu0 0
    %621 = vmatpush1.bf16.msra.mxu0 0
    %622 = vmatprep.mubr.bf16.mxu0 0
    %623 = vmatmul.mubr.bf16.gmra.mrb[0].mxu0 %v585
    %v624 = vpop.f32.mrb[0].mxu0
    %v625 = vadd.f32 0.0, %v624
    %v626 = vpop.f32.mrb[0].mxu0
    %v627 = vpop.f32.mrb[0].mxu0
    %v628 = vpop.f32.mrb[0].mxu0
    %629 = vdwg.mxu0
    %v630 = vpack.c.bf16 %v625, %v514
    %v633 = vunpack.c.l.b16 %v180
    %v634 = vunpack.c.l.b16 %v181
    %v635 = vpack.c.b16 %v634, %v633
    %v638 = vsel %vm189, %v630, 0
    %640 = vmatprep.subr.bf16.mxu0 0
    %641 = vmatpush1.bf16.msra.mxu0 %v635
    %642 = vmatprep.subr.bf16.mxu0 0
    %643 = vmatpush1.bf16.msra.mxu0 0
    %644 = vmatprep.subr.bf16.mxu0 0
    %645 = vmatpush1.bf16.msra.mxu0 0
    %646 = vmatprep.subr.bf16.mxu0 0
    %647 = vmatpush1.bf16.msra.mxu0 0
    %648 = vmatprep.subr.bf16.mxu0 0
    %649 = vmatpush1.bf16.msra.mxu0 0
    %650 = vmatprep.subr.bf16.mxu0 0
    %651 = vmatpush1.bf16.msra.mxu0 0
    %652 = vmatprep.subr.bf16.mxu0 0
    %653 = vmatpush1.bf16.msra.mxu0 0
    %654 = vmatprep.subr.bf16.mxu0 0
    %655 = vmatpush1.bf16.msra.mxu0 0
    %656 = vmatprep.subr.bf16.mxu0 0
    %657 = vmatpush1.bf16.msra.mxu0 0
    %658 = vmatprep.subr.bf16.mxu0 0
    %659 = vmatpush1.bf16.msra.mxu0 0
    %660 = vmatprep.subr.bf16.mxu0 0
    %661 = vmatpush1.bf16.msra.mxu0 0
    %662 = vmatprep.subr.bf16.mxu0 0
    %663 = vmatpush1.bf16.msra.mxu0 0
    %664 = vmatprep.subr.bf16.mxu0 0
    %665 = vmatpush1.bf16.msra.mxu0 0
    %666 = vmatprep.subr.bf16.mxu0 0
    %667 = vmatpush1.bf16.msra.mxu0 0
    %668 = vmatprep.subr.bf16.mxu0 0
    %669 = vmatpush1.bf16.msra.mxu0 0
    %670 = vmatprep.subr.bf16.mxu0 0
    %671 = vmatpush1.bf16.msra.mxu0 0
    %672 = vmatprep.mubr.bf16.mxu0 0
    %673 = vmatmul.mubr.bf16.gmra.mrb[0].mxu0 %v638
    %v674 = vpop.f32.mrb[0].mxu0
    %v675 = vadd.f32 0.0, %v674
    %v676 = vpop.f32.mrb[0].mxu0
    %v677 = vpop.f32.mrb[0].mxu0
    %v678 = vadd.f32 0.0, %v677
    %v679 = vpop.f32.mrb[0].mxu0
    %680 = vdwg.mxu0
    %v683 = vunpack.c.l.b16 %v178
    %v684 = vunpack.c.l.b16 %v179
    %v685 = vpack.c.b16 %v684, %v683
    %v688 = vsel %vm189, %v407, 0
    %690 = vmatprep.subr.bf16.mxu0 0
    %691 = vmatpush1.bf16.msra.mxu0 %v685
    %692 = vmatprep.subr.bf16.mxu0 0
    %693 = vmatpush1.bf16.msra.mxu0 0
    %694 = vmatprep.subr.bf16.mxu0 0
    %695 = vmatpush1.bf16.msra.mxu0 0
    %696 = vmatprep.subr.bf16.mxu0 0
    %697 = vmatpush1.bf16.msra.mxu0 0
    %698 = vmatprep.subr.bf16.mxu0 0
    %699 = vmatpush1.bf16.msra.mxu0 0
    %700 = vmatprep.subr.bf16.mxu0 0
    %701 = vmatpush1.bf16.msra.mxu0 0
    %702 = vmatprep.subr.bf16.mxu0 0
    %703 = vmatpush1.bf16.msra.mxu0 0
    %704 = vmatprep.subr.bf16.mxu0 0
    %705 = vmatpush1.bf16.msra.mxu0 0
    %706 = vmatprep.subr.bf16.mxu0 0
    %707 = vmatpush1.bf16.msra.mxu0 0
    %708 = vmatprep.subr.bf16.mxu0 0
    %709 = vmatpush1.bf16.msra.mxu0 0
    %710 = vmatprep.subr.bf16.mxu0 0
    %711 = vmatpush1.bf16.msra.mxu0 0
    %712 = vmatprep.subr.bf16.mxu0 0
    %713 = vmatpush1.bf16.msra.mxu0 0
    %714 = vmatprep.subr.bf16.mxu0 0
    %715 = vmatpush1.bf16.msra.mxu0 0
    %716 = vmatprep.subr.bf16.mxu0 0
    %717 = vmatpush1.bf16.msra.mxu0 0
    %718 = vmatprep.subr.bf16.mxu0 0
    %719 = vmatpush1.bf16.msra.mxu0 0
    %720 = vmatprep.subr.bf16.mxu0 0
    %721 = vmatpush1.bf16.msra.mxu0 0
    %722 = vmatprep.mubr.bf16.mxu0 0
    %723 = vmatmul.mubr.bf16.gmra.mrb[0].mxu0 %v688
    %v724 = vpop.f32.mrb[0].mxu0
    %v725 = vadd.f32 %v675, %v724
    %v726 = vpop.f32.mrb[0].mxu0
    %v727 = vpop.f32.mrb[0].mxu0
    %v728 = vadd.f32 %v678, %v727
    %v729 = vpop.f32.mrb[0].mxu0
    %730 = vdwg.mxu0
    %731 = vrot.lane.b32.xlu0 %v176, 96
    %v732 = vpop.permute.xlu0 %731
    %733 = vrot.lane.b32.xlu0 %v176, 32
    %v734 = vpop.permute.xlu0 %733
    %v736 = vsel %vm189, %v732, 0
    %v739 = vsel %vm189, %v734, 0
    %741 = vmatprep.subr.bf16.mxu0 0
    %742 = vmatpush1.bf16.xpose.msra.mxu0 %v739
    %743 = vmatprep.subr.bf16.mxu0 0
    %744 = vmatpush1.bf16.xpose.msra.mxu0 0
    %745 = vmatprep.subr.bf16.mxu0 0
    %746 = vmatpush1.bf16.xpose.msra.mxu0 0
    %747 = vmatprep.subr.bf16.mxu0 0
    %748 = vmatpush1.bf16.xpose.msra.mxu0 0
    %749 = vmatprep.subr.bf16.mxu0 0
    %750 = vmatpush1.bf16.xpose.msra.mxu0 0
    %751 = vmatprep.subr.bf16.mxu0 0
    %752 = vmatpush1.bf16.xpose.msra.mxu0 0
    %753 = vmatprep.subr.bf16.mxu0 0
    %754 = vmatpush1.bf16.xpose.msra.mxu0 0
    %755 = vmatprep.subr.bf16.mxu0 0
    %756 = vmatpush1.bf16.xpose.msra.mxu0 0
    %757 = vmatprep.subr.bf16.mxu0 0
    %758 = vmatpush1.bf16.xpose.msra.mxu0 0
    %759 = vmatprep.subr.bf16.mxu0 0
    %760 = vmatpush1.bf16.xpose.msra.mxu0 0
    %761 = vmatprep.subr.bf16.mxu0 0
    %762 = vmatpush1.bf16.xpose.msra.mxu0 0
    %763 = vmatprep.subr.bf16.mxu0 0
    %764 = vmatpush1.bf16.xpose.msra.mxu0 0
    %765 = vmatprep.subr.bf16.mxu0 0
    %766 = vmatpush1.bf16.xpose.msra.mxu0 0
    %767 = vmatprep.subr.bf16.mxu0 0
    %768 = vmatpush1.bf16.xpose.msra.mxu0 0
    %769 = vmatprep.subr.bf16.mxu0 0
    %770 = vmatpush1.bf16.xpose.msra.mxu0 0
    %771 = vmatprep.subr.bf16.mxu0 0
    %772 = vmatpush1.bf16.xpose.msra.mxu0 0
    %773 = vmatprep.mubr.bf16.mxu0 0
    %774 = vmatmul.mubr.bf16.gmra.mrb[0].mxu0 %v736
    %v775 = vpop.f32.mrb[0].mxu0
    %v776 = vadd.f32 0.0, %v775
    %v777 = vpop.f32.mrb[0].mxu0
    %v778 = vpop.f32.mrb[0].mxu0
    %v779 = vpop.f32.mrb[0].mxu0
    %780 = vdwg.mxu0
    %v781 = vsel %vm40, -inf, %v776
    %v782 = vsel %vm237, %v781, -inf
    %783 = vmax.xlane.f32.xlu0 %v782
    %v784 = vpop.xlane.xlu0 %783
    %v785 = vsub.f32 %v781, %v784
    %v786 = vmul.f32 %v785, 1.442695
    %v787 = vpow.pop %v786
    %v788 = vsel %vm237, %v787, 0.0
    %789 = vadd.xlane.f32.xlu0 %v788
    %v790 = vpop.xlane.xlu0 %789
    %v791 = vrcp.pop %v790
    %v792 = vmul.f32 %v787, %v791
    %v793 = vpack.c.bf16 %v792, %v792
    %794 = vrot.lane.b32.xlu0 %v177, 96
    %v795 = vpop.permute.xlu0 %794
    %v797 = vsel %vm237, %v793, 0
    %v800 = vsel %vm253, %v795, 0
    %802 = vmatprep.subr.bf16.mxu0 0
    %803 = vmatpush1.bf16.msra.mxu0 %v800
    %804 = vmatprep.subr.bf16.mxu0 0
    %805 = vmatpush1.bf16.msra.mxu0 0
    %806 = vmatprep.subr.bf16.mxu0 0
    %807 = vmatpush1.bf16.msra.mxu0 0
    %808 = vmatprep.subr.bf16.mxu0 0
    %809 = vmatpush1.bf16.msra.mxu0 0
    %810 = vmatprep.subr.bf16.mxu0 0
    %811 = vmatpush1.bf16.msra.mxu0 0
    %812 = vmatprep.subr.bf16.mxu0 0
    %813 = vmatpush1.bf16.msra.mxu0 0
    %814 = vmatprep.subr.bf16.mxu0 0
    %815 = vmatpush1.bf16.msra.mxu0 0
    %816 = vmatprep.subr.bf16.mxu0 0
    %817 = vmatpush1.bf16.msra.mxu0 0
    %818 = vmatprep.subr.bf16.mxu0 0
    %819 = vmatpush1.bf16.msra.mxu0 0
    %820 = vmatprep.subr.bf16.mxu0 0
    %821 = vmatpush1.bf16.msra.mxu0 0
    %822 = vmatprep.subr.bf16.mxu0 0
    %823 = vmatpush1.bf16.msra.mxu0 0
    %824 = vmatprep.subr.bf16.mxu0 0
    %825 = vmatpush1.bf16.msra.mxu0 0
    %826 = vmatprep.subr.bf16.mxu0 0
    %827 = vmatpush1.bf16.msra.mxu0 0
    %828 = vmatprep.subr.bf16.mxu0 0
    %829 = vmatpush1.bf16.msra.mxu0 0
    %830 = vmatprep.subr.bf16.mxu0 0
    %831 = vmatpush1.bf16.msra.mxu0 0
    %832 = vmatprep.subr.bf16.mxu0 0
    %833 = vmatpush1.bf16.msra.mxu0 0
    %834 = vmatprep.mubr.bf16.mxu0 0
    %835 = vmatmul.mubr.bf16.gmra.mrb[0].mxu0 %v797
    %v836 = vpop.f32.mrb[0].mxu0
    %v837 = vadd.f32 0.0, %v836
    %v838 = vpop.f32.mrb[0].mxu0
    %v839 = vpop.f32.mrb[0].mxu0
    %v840 = vpop.f32.mrb[0].mxu0
    %841 = vdwg.mxu0
    %842 = vrot.lane.b32.xlu0 %v297, 96
    %v843 = vpop.permute.xlu0 %842
    %844 = vrot.lane.b32.xlu0 %v297, 32
    %v845 = vpop.permute.xlu0 %844
    %v847 = vsel %vm189, %v843, 0
    %v850 = vsel %vm189, %v845, 0
    %852 = vmatprep.subr.bf16.mxu0 0
    %853 = vmatpush1.bf16.xpose.msra.mxu0 %v850
    %854 = vmatprep.subr.bf16.mxu0 0
    %855 = vmatpush1.bf16.xpose.msra.mxu0 0
    %856 = vmatprep.subr.bf16.mxu0 0
    %857 = vmatpush1.bf16.xpose.msra.mxu0 0
    %858 = vmatprep.subr.bf16.mxu0 0
    %859 = vmatpush1.bf16.xpose.msra.mxu0 0
    %860 = vmatprep.subr.bf16.mxu0 0
    %861 = vmatpush1.bf16.xpose.msra.mxu0 0
    %862 = vmatprep.subr.bf16.mxu0 0
    %863 = vmatpush1.bf16.xpose.msra.mxu0 0
    %864 = vmatprep.subr.bf16.mxu0 0
    %865 = vmatpush1.bf16.xpose.msra.mxu0 0
    %866 = vmatprep.subr.bf16.mxu0 0
    %867 = vmatpush1.bf16.xpose.msra.mxu0 0
    %868 = vmatprep.subr.bf16.mxu0 0
    %869 = vmatpush1.bf16.xpose.msra.mxu0 0
    %870 = vmatprep.subr.bf16.mxu0 0
    %871 = vmatpush1.bf16.xpose.msra.mxu0 0
    %872 = vmatprep.subr.bf16.mxu0 0
    %873 = vmatpush1.bf16.xpose.msra.mxu0 0
    %874 = vmatprep.subr.bf16.mxu0 0
    %875 = vmatpush1.bf16.xpose.msra.mxu0 0
    %876 = vmatprep.subr.bf16.mxu0 0
    %877 = vmatpush1.bf16.xpose.msra.mxu0 0
    %878 = vmatprep.subr.bf16.mxu0 0
    %879 = vmatpush1.bf16.xpose.msra.mxu0 0
    %880 = vmatprep.subr.bf16.mxu0 0
    %881 = vmatpush1.bf16.xpose.msra.mxu0 0
    %882 = vmatprep.subr.bf16.mxu0 0
    %883 = vmatpush1.bf16.xpose.msra.mxu0 0
    %884 = vmatprep.mubr.bf16.mxu0 0
    %885 = vmatmul.mubr.bf16.gmra.mrb[0].mxu0 %v847
    %v886 = vpop.f32.mrb[0].mxu0
    %v887 = vadd.f32 0.0, %v886
    %v888 = vpop.f32.mrb[0].mxu0
    %v889 = vpop.f32.mrb[0].mxu0
    %v890 = vpop.f32.mrb[0].mxu0
    %891 = vdwg.mxu0
    %v892 = vsel %vm40, -inf, %v887
    %v893 = vsel %vm237, %v892, -inf
    %894 = vmax.xlane.f32.xlu0 %v893
    %v895 = vpop.xlane.xlu0 %894
    %v896 = vsub.f32 %v892, %v895
    %v897 = vmul.f32 %v896, 1.442695
    %v898 = vpow.pop %v897
    %v899 = vsel %vm237, %v898, 0.0
    %900 = vadd.xlane.f32.xlu0 %v899
    %v901 = vpop.xlane.xlu0 %900
    %v902 = vrcp.pop %v901
    %v903 = vmul.f32 %v898, %v902
    %v904 = vpack.c.bf16 %v903, %v903
    %905 = vrot.lane.b32.xlu0 %v360, 96
    %v906 = vpop.permute.xlu0 %905
    %v908 = vsel %vm237, %v904, 0
    %v911 = vsel %vm253, %v906, 0
    %913 = vmatprep.subr.bf16.mxu0 0
    %914 = vmatpush1.bf16.msra.mxu0 %v911
    %915 = vmatprep.subr.bf16.mxu0 0
    %916 = vmatpush1.bf16.msra.mxu0 0
    %917 = vmatprep.subr.bf16.mxu0 0
    %918 = vmatpush1.bf16.msra.mxu0 0
    %919 = vmatprep.subr.bf16.mxu0 0
    %920 = vmatpush1.bf16.msra.mxu0 0
    %921 = vmatprep.subr.bf16.mxu0 0
    %922 = vmatpush1.bf16.msra.mxu0 0
    %923 = vmatprep.subr.bf16.mxu0 0
    %924 = vmatpush1.bf16.msra.mxu0 0
    %925 = vmatprep.subr.bf16.mxu0 0
    %926 = vmatpush1.bf16.msra.mxu0 0
    %927 = vmatprep.subr.bf16.mxu0 0
    %928 = vmatpush1.bf16.msra.mxu0 0
    %929 = vmatprep.subr.bf16.mxu0 0
    %930 = vmatpush1.bf16.msra.mxu0 0
    %931 = vmatprep.subr.bf16.mxu0 0
    %932 = vmatpush1.bf16.msra.mxu0 0
    %933 = vmatprep.subr.bf16.mxu0 0
    %934 = vmatpush1.bf16.msra.mxu0 0
    %935 = vmatprep.subr.bf16.mxu0 0
    %936 = vmatpush1.bf16.msra.mxu0 0
    %937 = vmatprep.subr.bf16.mxu0 0
    %938 = vmatpush1.bf16.msra.mxu0 0
    %939 = vmatprep.subr.bf16.mxu0 0
    %940 = vmatpush1.bf16.msra.mxu0 0
    %941 = vmatprep.subr.bf16.mxu0 0
    %942 = vmatpush1.bf16.msra.mxu0 0
    %943 = vmatprep.subr.bf16.mxu0 0
    %944 = vmatpush1.bf16.msra.mxu0 0
    %945 = vmatprep.mubr.bf16.mxu0 0
    %946 = vmatmul.mubr.bf16.gmra.mrb[0].mxu0 %v908
    %v947 = vpop.f32.mrb[0].mxu0
    %v948 = vadd.f32 0.0, %v947
    %v949 = vpop.f32.mrb[0].mxu0
    %v950 = vpop.f32.mrb[0].mxu0
    %v951 = vpop.f32.mrb[0].mxu0
    %952 = vdwg.mxu0
    %v953 = vpack.c.bf16 %v948, %v837
    %v956 = vunpack.c.l.b16 %v182
    %v957 = vunpack.c.l.b16 %v183
    %v958 = vpack.c.b16 %v957, %v956
    %v961 = vsel %vm189, %v953, 0
    %963 = vmatprep.subr.bf16.mxu0 0
    %964 = vmatpush1.bf16.msra.mxu0 %v958
    %965 = vmatprep.subr.bf16.mxu0 0
    %966 = vmatpush1.bf16.msra.mxu0 0
    %967 = vmatprep.subr.bf16.mxu0 0
    %968 = vmatpush1.bf16.msra.mxu0 0
    %969 = vmatprep.subr.bf16.mxu0 0
    %970 = vmatpush1.bf16.msra.mxu0 0
    %971 = vmatprep.subr.bf16.mxu0 0
    %972 = vmatpush1.bf16.msra.mxu0 0
    %973 = vmatprep.subr.bf16.mxu0 0
    %974 = vmatpush1.bf16.msra.mxu0 0
    %975 = vmatprep.subr.bf16.mxu0 0
    %976 = vmatpush1.bf16.msra.mxu0 0
    %977 = vmatprep.subr.bf16.mxu0 0
    %978 = vmatpush1.bf16.msra.mxu0 0
    %979 = vmatprep.subr.bf16.mxu0 0
    %980 = vmatpush1.bf16.msra.mxu0 0
    %981 = vmatprep.subr.bf16.mxu0 0
    %982 = vmatpush1.bf16.msra.mxu0 0
    %983 = vmatprep.subr.bf16.mxu0 0
    %984 = vmatpush1.bf16.msra.mxu0 0
    %985 = vmatprep.subr.bf16.mxu0 0
    %986 = vmatpush1.bf16.msra.mxu0 0
    %987 = vmatprep.subr.bf16.mxu0 0
    %988 = vmatpush1.bf16.msra.mxu0 0
    %989 = vmatprep.subr.bf16.mxu0 0
    %990 = vmatpush1.bf16.msra.mxu0 0
    %991 = vmatprep.subr.bf16.mxu0 0
    %992 = vmatpush1.bf16.msra.mxu0 0
    %993 = vmatprep.subr.bf16.mxu0 0
    %994 = vmatpush1.bf16.msra.mxu0 0
    %995 = vmatprep.mubr.bf16.mxu0 0
    %996 = vmatmul.mubr.bf16.gmra.mrb[0].mxu0 %v961
    %v997 = vpop.f32.mrb[0].mxu0
    %v998 = vadd.f32 0.0, %v997
    %v999 = vpop.f32.mrb[0].mxu0
    %v1000 = vpop.f32.mrb[0].mxu0
    %v1001 = vadd.f32 0.0, %v1000
    %v1002 = vpop.f32.mrb[0].mxu0
    %1003 = vdwg.mxu0
    %v1004 = vadd.f32 %v725, %v998
    %v1005 = vadd.f32 %v728, %v1001
    %1006 = vrot.lane.b32.xlu0 %v176, 80
    %v1007 = vpop.permute.xlu0 %1006
    %1008 = vrot.lane.b32.xlu0 %v176, 16
    %v1009 = vpop.permute.xlu0 %1008
    %v1011 = vsel %vm189, %v1007, 0
    %v1014 = vsel %vm189, %v1009, 0
    %1016 = vmatprep.subr.bf16.mxu0 0
    %1017 = vmatpush1.bf16.xpose.msra.mxu0 %v1014
    %1018 = vmatprep.subr.bf16.mxu0 0
    %1019 = vmatpush1.bf16.xpose.msra.mxu0 0
    %1020 = vmatprep.subr.bf16.mxu0 0
    %1021 = vmatpush1.bf16.xpose.msra.mxu0 0
    %1022 = vmatprep.subr.bf16.mxu0 0
    %1023 = vmatpush1.bf16.xpose.msra.mxu0 0
    %1024 = vmatprep.subr.bf16.mxu0 0
    %1025 = vmatpush1.bf16.xpose.msra.mxu0 0
    %1026 = vmatprep.subr.bf16.mxu0 0
    %1027 = vmatpush1.bf16.xpose.msra.mxu0 0
    %1028 = vmatprep.subr.bf16.mxu0 0
    %1029 = vmatpush1.bf16.xpose.msra.mxu0 0
    %1030 = vmatprep.subr.bf16.mxu0 0
    %1031 = vmatpush1.bf16.xpose.msra.mxu0 0
    %1032 = vmatprep.subr.bf16.mxu0 0
    %1033 = vmatpush1.bf16.xpose.msra.mxu0 0
    %1034 = vmatprep.subr.bf16.mxu0 0
    %1035 = vmatpush1.bf16.xpose.msra.mxu0 0
    %1036 = vmatprep.subr.bf16.mxu0 0
    %1037 = vmatpush1.bf16.xpose.msra.mxu0 0
    %1038 = vmatprep.subr.bf16.mxu0 0
    %1039 = vmatpush1.bf16.xpose.msra.mxu0 0
    %1040 = vmatprep.subr.bf16.mxu0 0
    %1041 = vmatpush1.bf16.xpose.msra.mxu0 0
    %1042 = vmatprep.subr.bf16.mxu0 0
    %1043 = vmatpush1.bf16.xpose.msra.mxu0 0
    %1044 = vmatprep.subr.bf16.mxu0 0
    %1045 = vmatpush1.bf16.xpose.msra.mxu0 0
    %1046 = vmatprep.subr.bf16.mxu0 0
    %1047 = vmatpush1.bf16.xpose.msra.mxu0 0
    %1048 = vmatprep.mubr.bf16.mxu0 0
    %1049 = vmatmul.mubr.bf16.gmra.mrb[0].mxu0 %v1011
    %v1050 = vpop.f32.mrb[0].mxu0
    %v1051 = vadd.f32 0.0, %v1050
    %v1052 = vpop.f32.mrb[0].mxu0
    %v1053 = vpop.f32.mrb[0].mxu0
    %v1054 = vpop.f32.mrb[0].mxu0
    %1055 = vdwg.mxu0
    %v1056 = vsel %vm40, -inf, %v1051
    %v1057 = vsel %vm237, %v1056, -inf
    %1058 = vmax.xlane.f32.xlu0 %v1057
    %v1059 = vpop.xlane.xlu0 %1058
    %v1060 = vsub.f32 %v1056, %v1059
    %v1061 = vmul.f32 %v1060, 1.442695
    %v1062 = vpow.pop %v1061
    %v1063 = vsel %vm237, %v1062, 0.0
    %1064 = vadd.xlane.f32.xlu0 %v1063
    %v1065 = vpop.xlane.xlu0 %1064
    %v1066 = vrcp.pop %v1065
    %v1067 = vmul.f32 %v1062, %v1066
    %v1068 = vpack.c.bf16 %v1067, %v1067
    %1069 = vrot.lane.b32.xlu0 %v177, 80
    %v1070 = vpop.permute.xlu0 %1069
    %v1072 = vsel %vm237, %v1068, 0
    %v1075 = vsel %vm253, %v1070, 0
    %1077 = vmatprep.subr.bf16.mxu0 0
    %1078 = vmatpush1.bf16.msra.mxu0 %v1075
    %1079 = vmatprep.subr.bf16.mxu0 0
    %1080 = vmatpush1.bf16.msra.mxu0 0
    %1081 = vmatprep.subr.bf16.mxu0 0
    %1082 = vmatpush1.bf16.msra.mxu0 0
    %1083 = vmatprep.subr.bf16.mxu0 0
    %1084 = vmatpush1.bf16.msra.mxu0 0
    %1085 = vmatprep.subr.bf16.mxu0 0
    %1086 = vmatpush1.bf16.msra.mxu0 0
    %1087 = vmatprep.subr.bf16.mxu0 0
    %1088 = vmatpush1.bf16.msra.mxu0 0
    %1089 = vmatprep.subr.bf16.mxu0 0
    %1090 = vmatpush1.bf16.msra.mxu0 0
    %1091 = vmatprep.subr.bf16.mxu0 0
    %1092 = vmatpush1.bf16.msra.mxu0 0
    %1093 = vmatprep.subr.bf16.mxu0 0
    %1094 = vmatpush1.bf16.msra.mxu0 0
    %1095 = vmatprep.subr.bf16.mxu0 0
    %1096 = vmatpush1.bf16.msra.mxu0 0
    %1097 = vmatprep.subr.bf16.mxu0 0
    %1098 = vmatpush1.bf16.msra.mxu0 0
    %1099 = vmatprep.subr.bf16.mxu0 0
    %1100 = vmatpush1.bf16.msra.mxu0 0
    %1101 = vmatprep.subr.bf16.mxu0 0
    %1102 = vmatpush1.bf16.msra.mxu0 0
    %1103 = vmatprep.subr.bf16.mxu0 0
    %1104 = vmatpush1.bf16.msra.mxu0 0
    %1105 = vmatprep.subr.bf16.mxu0 0
    %1106 = vmatpush1.bf16.msra.mxu0 0
    %1107 = vmatprep.subr.bf16.mxu0 0
    %1108 = vmatpush1.bf16.msra.mxu0 0
    %1109 = vmatprep.mubr.bf16.mxu0 0
    %1110 = vmatmul.mubr.bf16.gmra.mrb[0].mxu0 %v1072
    %v1111 = vpop.f32.mrb[0].mxu0
    %v1112 = vadd.f32 0.0, %v1111
    %v1113 = vpop.f32.mrb[0].mxu0
    %v1114 = vpop.f32.mrb[0].mxu0
    %v1115 = vpop.f32.mrb[0].mxu0
    %1116 = vdwg.mxu0
    %1117 = vrot.lane.b32.xlu0 %v297, 80
    %v1118 = vpop.permute.xlu0 %1117
    %1119 = vrot.lane.b32.xlu0 %v297, 16
    %v1120 = vpop.permute.xlu0 %1119
    %v1122 = vsel %vm189, %v1118, 0
    %v1125 = vsel %vm189, %v1120, 0
    %1127 = vmatprep.subr.bf16.mxu0 0
    %1128 = vmatpush1.bf16.xpose.msra.mxu0 %v1125
    %1129 = vmatprep.subr.bf16.mxu0 0
    %1130 = vmatpush1.bf16.xpose.msra.mxu0 0
    %1131 = vmatprep.subr.bf16.mxu0 0
    %1132 = vmatpush1.bf16.xpose.msra.mxu0 0
    %1133 = vmatprep.subr.bf16.mxu0 0
    %1134 = vmatpush1.bf16.xpose.msra.mxu0 0
    %1135 = vmatprep.subr.bf16.mxu0 0
    %1136 = vmatpush1.bf16.xpose.msra.mxu0 0
    %1137 = vmatprep.subr.bf16.mxu0 0
    %1138 = vmatpush1.bf16.xpose.msra.mxu0 0
    %1139 = vmatprep.subr.bf16.mxu0 0
    %1140 = vmatpush1.bf16.xpose.msra.mxu0 0
    %1141 = vmatprep.subr.bf16.mxu0 0
    %1142 = vmatpush1.bf16.xpose.msra.mxu0 0
    %1143 = vmatprep.subr.bf16.mxu0 0
    %1144 = vmatpush1.bf16.xpose.msra.mxu0 0
    %1145 = vmatprep.subr.bf16.mxu0 0
    %1146 = vmatpush1.bf16.xpose.msra.mxu0 0
    %1147 = vmatprep.subr.bf16.mxu0 0
    %1148 = vmatpush1.bf16.xpose.msra.mxu0 0
    %1149 = vmatprep.subr.bf16.mxu0 0
    %1150 = vmatpush1.bf16.xpose.msra.mxu0 0
    %1151 = vmatprep.subr.bf16.mxu0 0
    %1152 = vmatpush1.bf16.xpose.msra.mxu0 0
    %1153 = vmatprep.subr.bf16.mxu0 0
    %1154 = vmatpush1.bf16.xpose.msra.mxu0 0
    %1155 = vmatprep.subr.bf16.mxu0 0
    %1156 = vmatpush1.bf16.xpose.msra.mxu0 0
    %1157 = vmatprep.subr.bf16.mxu0 0
    %1158 = vmatpush1.bf16.xpose.msra.mxu0 0
    %1159 = vmatprep.mubr.bf16.mxu0 0
    %1160 = vmatmul.mubr.bf16.gmra.mrb[0].mxu0 %v1122
    %v1161 = vpop.f32.mrb[0].mxu0
    %v1162 = vadd.f32 0.0, %v1161
    %v1163 = vpop.f32.mrb[0].mxu0
    %v1164 = vpop.f32.mrb[0].mxu0
    %v1165 = vpop.f32.mrb[0].mxu0
    %1166 = vdwg.mxu0
    %v1167 = vsel %vm40, -inf, %v1162
    %v1168 = vsel %vm237, %v1167, -inf
    %1169 = vmax.xlane.f32.xlu0 %v1168
    %v1170 = vpop.xlane.xlu0 %1169
    %v1171 = vsub.f32 %v1167, %v1170
    %v1172 = vmul.f32 %v1171, 1.442695
    %v1173 = vpow.pop %v1172
    %v1174 = vsel %vm237, %v1173, 0.0
    %1175 = vadd.xlane.f32.xlu0 %v1174
    %v1176 = vpop.xlane.xlu0 %1175
    %v1177 = vrcp.pop %v1176
    %v1178 = vmul.f32 %v1173, %v1177
    %v1179 = vpack.c.bf16 %v1178, %v1178
    %1180 = vrot.lane.b32.xlu0 %v360, 80
    %v1181 = vpop.permute.xlu0 %1180
    %v1183 = vsel %vm237, %v1179, 0
    %v1186 = vsel %vm253, %v1181, 0
    %1188 = vmatprep.subr.bf16.mxu0 0
    %1189 = vmatpush1.bf16.msra.mxu0 %v1186
    %1190 = vmatprep.subr.bf16.mxu0 0
    %1191 = vmatpush1.bf16.msra.mxu0 0
    %1192 = vmatprep.subr.bf16.mxu0 0
    %1193 = vmatpush1.bf16.msra.mxu0 0
    %1194 = vmatprep.subr.bf16.mxu0 0
    %1195 = vmatpush1.bf16.msra.mxu0 0
    %1196 = vmatprep.subr.bf16.mxu0 0
    %1197 = vmatpush1.bf16.msra.mxu0 0
    %1198 = vmatprep.subr.bf16.mxu0 0
    %1199 = vmatpush1.bf16.msra.mxu0 0
    %1200 = vmatprep.subr.bf16.mxu0 0
    %1201 = vmatpush1.bf16.msra.mxu0 0
    %1202 = vmatprep.subr.bf16.mxu0 0
    %1203 = vmatpush1.bf16.msra.mxu0 0
    %1204 = vmatprep.subr.bf16.mxu0 0
    %1205 = vmatpush1.bf16.msra.mxu0 0
    %1206 = vmatprep.subr.bf16.mxu0 0
    %1207 = vmatpush1.bf16.msra.mxu0 0
    %1208 = vmatprep.subr.bf16.mxu0 0
    %1209 = vmatpush1.bf16.msra.mxu0 0
    %1210 = vmatprep.subr.bf16.mxu0 0
    %1211 = vmatpush1.bf16.msra.mxu0 0
    %1212 = vmatprep.subr.bf16.mxu0 0
    %1213 = vmatpush1.bf16.msra.mxu0 0
    %1214 = vmatprep.subr.bf16.mxu0 0
    %1215 = vmatpush1.bf16.msra.mxu0 0
    %1216 = vmatprep.subr.bf16.mxu0 0
    %1217 = vmatpush1.bf16.msra.mxu0 0
    %1218 = vmatprep.subr.bf16.mxu0 0
    %1219 = vmatpush1.bf16.msra.mxu0 0
    %1220 = vmatprep.mubr.bf16.mxu0 0
    %1221 = vmatmul.mubr.bf16.gmra.mrb[0].mxu0 %v1183
    %v1222 = vpop.f32.mrb[0].mxu0
    %v1223 = vadd.f32 0.0, %v1222
    %v1224 = vpop.f32.mrb[0].mxu0
    %v1225 = vpop.f32.mrb[0].mxu0
    %v1226 = vpop.f32.mrb[0].mxu0
    %1227 = vdwg.mxu0
    %v1228 = vpack.c.bf16 %v1223, %v1112
    %v1231 = vunpack.c.l.b16 %v184
    %v1232 = vunpack.c.l.b16 %v185
    %v1233 = vpack.c.b16 %v1232, %v1231
    %v1236 = vsel %vm189, %v1228, 0
    %1238 = vmatprep.subr.bf16.mxu0 0
    %1239 = vmatpush1.bf16.msra.mxu0 %v1233
    %1240 = vmatprep.subr.bf16.mxu0 0
    %1241 = vmatpush1.bf16.msra.mxu0 0
    %1242 = vmatprep.subr.bf16.mxu0 0
    %1243 = vmatpush1.bf16.msra.mxu0 0
    %1244 = vmatprep.subr.bf16.mxu0 0
    %1245 = vmatpush1.bf16.msra.mxu0 0
    %1246 = vmatprep.subr.bf16.mxu0 0
    %1247 = vmatpush1.bf16.msra.mxu0 0
    %1248 = vmatprep.subr.bf16.mxu0 0
    %1249 = vmatpush1.bf16.msra.mxu0 0
    %1250 = vmatprep.subr.bf16.mxu0 0
    %1251 = vmatpush1.bf16.msra.mxu0 0
    %1252 = vmatprep.subr.bf16.mxu0 0
    %1253 = vmatpush1.bf16.msra.mxu0 0
    %1254 = vmatprep.subr.bf16.mxu0 0
    %1255 = vmatpush1.bf16.msra.mxu0 0
    %1256 = vmatprep.subr.bf16.mxu0 0
    %1257 = vmatpush1.bf16.msra.mxu0 0
    %1258 = vmatprep.subr.bf16.mxu0 0
    %1259 = vmatpush1.bf16.msra.mxu0 0
    %1260 = vmatprep.subr.bf16.mxu0 0
    %1261 = vmatpush1.bf16.msra.mxu0 0
    %1262 = vmatprep.subr.bf16.mxu0 0
    %1263 = vmatpush1.bf16.msra.mxu0 0
    %1264 = vmatprep.subr.bf16.mxu0 0
    %1265 = vmatpush1.bf16.msra.mxu0 0
    %1266 = vmatprep.subr.bf16.mxu0 0
    %1267 = vmatpush1.bf16.msra.mxu0 0
    %1268 = vmatprep.subr.bf16.mxu0 0
    %1269 = vmatpush1.bf16.msra.mxu0 0
    %1270 = vmatprep.mubr.bf16.mxu0 0
    %1271 = vmatmul.mubr.bf16.gmra.mrb[0].mxu0 %v1236
    %v1272 = vpop.f32.mrb[0].mxu0
    %v1273 = vadd.f32 0.0, %v1272
    %v1274 = vpop.f32.mrb[0].mxu0
    %v1275 = vpop.f32.mrb[0].mxu0
    %v1276 = vadd.f32 0.0, %v1275
    %v1277 = vpop.f32.mrb[0].mxu0
    %1278 = vdwg.mxu0
    %v1279 = vadd.f32 %v1004, %v1273
    %v1280 = vadd.f32 %v1005, %v1276
    %v1281 = vadd.f32 %v34, %v1279
    %v1282 = vadd.f32 %v35, %v1280
    %v1283 = vld [vmem:[%s7 + $0x1] ss:$0 sm:$0xff]
    %v1284 = vadd.f32 %v1281, %v1283
    %v1285 = vadd.f32 %v1282, %v1283
    %v1286 = vsel %vm41, %v1284, 0.0
    %1287 = vadd.xlane.f32.xlu0 %v1286
    %v1288 = vpop.xlane.xlu0 %1287
    %v1289 = vsel %vm41, %v1285, 0.0
    %1290 = vadd.xlane.f32.xlu0 %v1289
    %v1291 = vpop.xlane.xlu0 %1290
    %v1292 = vmul.f32 %v1288, %v48
    %v1293 = vmul.f32 %v1291, %v48
    %v1294 = vsub.f32 %v1284, %v1292
    %v1295 = vsub.f32 %v1285, %v1293
    %v1296 = vmul.f32 %v1294, %v1294
    %v1297 = vmul.f32 %v1295, %v1295
    %v1298 = vsel %vm41, %v1296, 0.0
    %1299 = vadd.xlane.f32.xlu0 %v1298
    %v1300 = vpop.xlane.xlu0 %1299
    %v1301 = vsel %vm41, %v1297, 0.0
    %1302 = vadd.xlane.f32.xlu0 %v1301
    %v1303 = vpop.xlane.xlu0 %1302
    %v1304 = vmul.f32 %v1300, %v48
    %v1305 = vmul.f32 %v1303, %v48
    %v1306 = vadd.f32 %v1304, 1e-05
    %v1307 = vadd.f32 %v1305, 1e-05
    %v1308 = vrsqrt.pop %v1306
    %v1309 = vrsqrt.pop %v1307
    %v1310 = vmul.f32 %v1294, %v1308
    %v1311 = vmul.f32 %v1295, %v1309
    %v1312 = vpack.c.bf16 %v1311, %v1310
    %v1313 = vld [vmem:[%s4] sm:$0xf]
    %v1314 = vld [vmem:[%s4 + $0x4] sm:$0xf]
    %v1315 = vld [vmem:[%s4 + $0x8] sm:$0xf]
    %v1316 = vld [vmem:[%s4 + $0xc] sm:$0xf]
    %v1317 = vld [vmem:[%s4 + $0x10] sm:$0xf]
    %v1318 = vld [vmem:[%s4 + $0x14] sm:$0xf]
    %v1319 = vld [vmem:[%s4 + $0x18] sm:$0xf]
    %v1320 = vld [vmem:[%s4 + $0x1c] sm:$0xf]
    %v1321 = vld [vmem:[%s7 + $0x2] ss:$0 sm:$0xff]
    %v1330 = vunpack.c.l.b16 %v1313
    %v1331 = vunpack.c.l.b16 %v1314
    %v1332 = vunpack.c.l.b16 %v1315
    %v1333 = vunpack.c.l.b16 %v1316
    %v1334 = vunpack.c.l.b16 %v1317
    %v1335 = vunpack.c.l.b16 %v1318
    %v1336 = vunpack.c.l.b16 %v1319
    %v1337 = vunpack.c.l.b16 %v1320
    %v1338 = vpack.c.b16 %v1331, %v1330
    %v1339 = vpack.c.b16 %v1333, %v1332
    %v1340 = vpack.c.b16 %v1335, %v1334
    %v1341 = vpack.c.b16 %v1337, %v1336
    %v1347 = vsel %vm41, %v1312, 0
    %1349 = vmatprep.subr.bf16.mxu0 0
    %1350 = vmatpush1.bf16.msra.mxu0 %v1338
    %1351 = vmatprep.subr.bf16.mxu0 0
    %1352 = vmatpush1.bf16.msra.mxu0 %v1339
    %1353 = vmatprep.subr.bf16.mxu0 0
    %1354 = vmatpush1.bf16.msra.mxu0 %v1340
    %1355 = vmatprep.subr.bf16.mxu0 0
    %1356 = vmatpush1.bf16.msra.mxu0 %v1341
    %1357 = vmatprep.subr.bf16.mxu0 0
    %1358 = vmatpush1.bf16.msra.mxu0 0
    %1359 = vmatprep.subr.bf16.mxu0 0
    %1360 = vmatpush1.bf16.msra.mxu0 0
    %1361 = vmatprep.subr.bf16.mxu0 0
    %1362 = vmatpush1.bf16.msra.mxu0 0
    %1363 = vmatprep.subr.bf16.mxu0 0
    %1364 = vmatpush1.bf16.msra.mxu0 0
    %1365 = vmatprep.subr.bf16.mxu0 0
    %1366 = vmatpush1.bf16.msra.mxu0 0
    %1367 = vmatprep.subr.bf16.mxu0 0
    %1368 = vmatpush1.bf16.msra.mxu0 0
    %1369 = vmatprep.subr.bf16.mxu0 0
    %1370 = vmatpush1.bf16.msra.mxu0 0
    %1371 = vmatprep.subr.bf16.mxu0 0
    %1372 = vmatpush1.bf16.msra.mxu0 0
    %1373 = vmatprep.subr.bf16.mxu0 0
    %1374 = vmatpush1.bf16.msra.mxu0 0
    %1375 = vmatprep.subr.bf16.mxu0 0
    %1376 = vmatpush1.bf16.msra.mxu0 0
    %1377 = vmatprep.subr.bf16.mxu0 0
    %1378 = vmatpush1.bf16.msra.mxu0 0
    %1379 = vmatprep.subr.bf16.mxu0 0
    %1380 = vmatpush1.bf16.msra.mxu0 0
    %1381 = vmatprep.mubr.bf16.mxu0 0
    %1382 = vmatmul.mubr.bf16.gmra.mrb[0].mxu0 %v1347
    %v1383 = vpop.f32.mrb[0].mxu0
    %v1384 = vadd.f32 %v1321, %v1383
    %v1385 = vpop.f32.mrb[0].mxu0
    %v1386 = vpop.f32.mrb[0].mxu0
    %v1387 = vadd.f32 %v1321, %v1386
    %v1388 = vpop.f32.mrb[0].mxu0
    %1389 = vdwg.mxu0
    %v1390 = vmul.f32 %v1384, 0.5
    %v1391 = vmul.f32 %v1387, 0.5
    %v1392 = vmul.f32 %v1384, 0.044715
    %v1393 = vmul.f32 %v1387, 0.044715
    %v1394 = vmul.f32 %v1392, %v1384
    %v1395 = vmul.f32 %v1393, %v1387
    %v1396 = vmul.f32 %v1394, %v1384
    %v1397 = vmul.f32 %v1395, %v1387
    %v1398 = vadd.f32 %v1384, %v1396
    %v1399 = vadd.f32 %v1387, %v1397
    %v1400 = vmul.f32 %v1398, 0.7978846
    %v1401 = vmul.f32 %v1399, 0.7978846
    %v1402 = vtanh.pop %v1400
    %v1403 = vtanh.pop %v1401
    %v1404 = vadd.f32 %v1402, 1.0
    %v1405 = vadd.f32 %v1403, 1.0
    %v1406 = vmul.f32 %v1390, %v1404
    %v1407 = vmul.f32 %v1391, %v1405
    %v1408 = vpack.c.bf16 %v1407, %v1406
    %v1409 = vld [vmem:[%s5] sm:$0xf]
    %v1410 = vld [vmem:[%s5 + $0x4] sm:$0xf]
    %v1411 = vld [vmem:[%s5 + $0x8] sm:$0xf]
    %v1412 = vld [vmem:[%s5 + $0xc] sm:$0xf]
    %v1413 = vld [vmem:[%s5 + $0x10] sm:$0xf]
    %v1414 = vld [vmem:[%s5 + $0x14] sm:$0xf]
    %v1415 = vld [vmem:[%s5 + $0x18] sm:$0xf]
    %v1416 = vld [vmem:[%s5 + $0x1c] sm:$0xf]
    %v1417 = vld [vmem:[%s5 + $0x20] sm:$0xf]
    %v1418 = vld [vmem:[%s5 + $0x24] sm:$0xf]
    %v1419 = vld [vmem:[%s5 + $0x28] sm:$0xf]
    %v1420 = vld [vmem:[%s5 + $0x2c] sm:$0xf]
    %v1421 = vld [vmem:[%s5 + $0x30] sm:$0xf]
    %v1422 = vld [vmem:[%s5 + $0x34] sm:$0xf]
    %v1423 = vld [vmem:[%s5 + $0x38] sm:$0xf]
    %v1424 = vld [vmem:[%s5 + $0x3c] sm:$0xf]
    %v1425 = vld [vmem:[%s7 + $0x3] ss:$0 sm:$0xff]
    %v1442 = vunpack.c.l.b16 %v1409
    %v1443 = vunpack.c.l.b16 %v1410
    %v1444 = vunpack.c.l.b16 %v1411
    %v1445 = vunpack.c.l.b16 %v1412
    %v1446 = vunpack.c.l.b16 %v1413
    %v1447 = vunpack.c.l.b16 %v1414
    %v1448 = vunpack.c.l.b16 %v1415
    %v1449 = vunpack.c.l.b16 %v1416
    %v1450 = vunpack.c.l.b16 %v1417
    %v1451 = vunpack.c.l.b16 %v1418
    %v1452 = vunpack.c.l.b16 %v1419
    %v1453 = vunpack.c.l.b16 %v1420
    %v1454 = vunpack.c.l.b16 %v1421
    %v1455 = vunpack.c.l.b16 %v1422
    %v1456 = vunpack.c.l.b16 %v1423
    %v1457 = vunpack.c.l.b16 %v1424
    %v1458 = vpack.c.b16 %v1443, %v1442
    %v1459 = vpack.c.b16 %v1445, %v1444
    %v1460 = vpack.c.b16 %v1447, %v1446
    %v1461 = vpack.c.b16 %v1449, %v1448
    %v1462 = vpack.c.b16 %v1451, %v1450
    %v1463 = vpack.c.b16 %v1453, %v1452
    %v1464 = vpack.c.b16 %v1455, %v1454
    %v1465 = vpack.c.b16 %v1457, %v1456
    %1474 = vmatprep.subr.bf16.mxu0 0
    %1475 = vmatpush1.bf16.msra.mxu0 %v1458
    %1476 = vmatprep.subr.bf16.mxu0 0
    %1477 = vmatpush1.bf16.msra.mxu0 %v1459
    %1478 = vmatprep.subr.bf16.mxu0 0
    %1479 = vmatpush1.bf16.msra.mxu0 %v1460
    %1480 = vmatprep.subr.bf16.mxu0 0
    %1481 = vmatpush1.bf16.msra.mxu0 %v1461
    %1482 = vmatprep.subr.bf16.mxu0 0
    %1483 = vmatpush1.bf16.msra.mxu0 %v1462
    %1484 = vmatprep.subr.bf16.mxu0 0
    %1485 = vmatpush1.bf16.msra.mxu0 %v1463
    %1486 = vmatprep.subr.bf16.mxu0 0
    %1487 = vmatpush1.bf16.msra.mxu0 %v1464
    %1488 = vmatprep.subr.bf16.mxu0 0
    %1489 = vmatpush1.bf16.msra.mxu0 %v1465
    %1490 = vmatprep.subr.bf16.mxu0 0
    %1491 = vmatpush1.bf16.msra.mxu0 0
    %1492 = vmatprep.subr.bf16.mxu0 0
    %1493 = vmatpush1.bf16.msra.mxu0 0
    %1494 = vmatprep.subr.bf16.mxu0 0
    %1495 = vmatpush1.bf16.msra.mxu0 0
    %1496 = vmatprep.subr.bf16.mxu0 0
    %1497 = vmatpush1.bf16.msra.mxu0 0
    %1498 = vmatprep.subr.bf16.mxu0 0
    %1499 = vmatpush1.bf16.msra.mxu0 0
    %1500 = vmatprep.subr.bf16.mxu0 0
    %1501 = vmatpush1.bf16.msra.mxu0 0
    %1502 = vmatprep.subr.bf16.mxu0 0
    %1503 = vmatpush1.bf16.msra.mxu0 0
    %1504 = vmatprep.subr.bf16.mxu0 0
    %1505 = vmatpush1.bf16.msra.mxu0 0
    %1506 = vmatprep.mubr.bf16.mxu0 0
    %1507 = vmatmul.mubr.bf16.gmra.mrb[0].mxu0 %v1408
    %v1508 = vpop.f32.mrb[0].mxu0
    %v1509 = vadd.f32 %v1425, %v1508
    %v1510 = vpop.f32.mrb[0].mxu0
    %v1511 = vpop.f32.mrb[0].mxu0
    %v1512 = vadd.f32 %v1425, %v1511
    %v1513 = vpop.f32.mrb[0].mxu0
    %1514 = vdwg.mxu0
    %v1515 = vadd.f32 %v1284, %v1509
    %v1516 = vadd.f32 %v1285, %v1512
    %v1517 = vsel %vm41, %v1515, 0.0
    %1518 = vadd.xlane.f32.xlu0 %v1517
    %v1519 = vpop.xlane.xlu0 %1518
    %v1520 = vsel %vm41, %v1516, 0.0
    %1521 = vadd.xlane.f32.xlu0 %v1520
    %v1522 = vpop.xlane.xlu0 %1521
    %v1523 = vmul.f32 %v1519, %v48
    %v1524 = vmul.f32 %v1522, %v48
    %v1525 = vsub.f32 %v1515, %v1523
    %v1526 = vsub.f32 %v1516, %v1524
    %v1527 = vmul.f32 %v1525, %v1525
    %v1528 = vmul.f32 %v1526, %v1526
    %v1529 = vsel %vm41, %v1527, 0.0
    %1530 = vadd.xlane.f32.xlu0 %v1529
    %v1531 = vpop.xlane.xlu0 %1530
    %v1532 = vsel %vm41, %v1528, 0.0
    %1533 = vadd.xlane.f32.xlu0 %v1532
    %v1534 = vpop.xlane.xlu0 %1533
    %v1535 = vmul.f32 %v1531, %v48
    %v1536 = vmul.f32 %v1534, %v48
    %v1537 = vadd.f32 %v1535, 1e-05
    %v1538 = vadd.f32 %v1536, 1e-05
    %v1539 = vrsqrt.pop %v1537
    %v1540 = vrsqrt.pop %v1538
    %v1541 = vmul.f32 %v1525, %v1539
    %v1542 = vmul.f32 %v1526, %v1540
    %v1543 = vpack.c.bf16 %v1542, %v1541
    %s1544 = scalar_lea.vmem %s2, 64
    %v1545 = vld [vmem:[%s1544] sm:$0xff]
    %v1546 = vld [vmem:[%s1544 + $0x8] sm:$0xff]
    %v1547 = vld [vmem:[%s1544 + $0x10] sm:$0xff]
    %v1548 = vld [vmem:[%s1544 + $0x18] sm:$0xff]
    %v1549 = vld [vmem:[%s1544 + $0x20] sm:$0xff]
    %v1550 = vld [vmem:[%s1544 + $0x28] sm:$0xff]
    %v1551 = vld [vmem:[%s1544 + $0x30] sm:$0xff]
    %v1552 = vld [vmem:[%s1544 + $0x38] sm:$0xff]
    %s1553 = scalar_lea.vmem %s7, 4
    %v1554 = vld [vmem:[%s1553] ss:$8 sm:$0x3]
    %v1556 = vlaneseq
    %v1557 = vshrl.u32 %v1556, 7
    %v1558 = vsub.s32 0, %v1557
    %v1559 = vrot.slane %v1554, %v1558
    %v1560 = vlaneseq
    %v1561 = vshrl.u32 %v1560, 7
    %v1562 = vsub.s32 1, %v1561
    %v1563 = vrot.slane %v1554, %v1562
    %v1574 = vunpack.c.l.b16 %v1545
    %v1575 = vunpack.c.h.b16 %v1545
    %v1576 = vunpack.c.l.b16 %v1546
    %v1577 = vunpack.c.h.b16 %v1546
    %v1578 = vunpack.c.l.b16 %v1547
    %v1579 = vunpack.c.h.b16 %v1547
    %v1580 = vunpack.c.l.b16 %v1548
    %v1581 = vunpack.c.h.b16 %v1548
    %v1582 = vunpack.c.l.b16 %v1549
    %v1583 = vunpack.c.h.b16 %v1549
    %v1584 = vunpack.c.l.b16 %v1550
    %v1585 = vunpack.c.h.b16 %v1550
    %v1586 = vunpack.c.l.b16 %v1551
    %v1587 = vunpack.c.h.b16 %v1551
    %v1588 = vunpack.c.l.b16 %v1552
    %v1589 = vunpack.c.h.b16 %v1552
    %v1590 = vpack.c.b16 %v1576, %v1574
    %v1591 = vpack.c.b16 %v1577, %v1575
    %v1592 = vpack.c.b16 %v1580, %v1578
    %v1593 = vpack.c.b16 %v1581, %v1579
    %v1594 = vpack.c.b16 %v1584, %v1582
    %v1595 = vpack.c.b16 %v1585, %v1583
    %v1596 = vpack.c.b16 %v1588, %v1586
    %v1597 = vpack.c.b16 %v1589, %v1587
    %v1607 = vsel %vm41, %v1543, 0
    %1609 = vmatprep.subr.bf16.mxu0 %v1591
    %1610 = vmatpush1.bf16.msra.mxu0 %v1590
    %1611 = vmatprep.subr.bf16.mxu0 %v1593
    %1612 = vmatpush1.bf16.msra.mxu0 %v1592
    %1613 = vmatprep.subr.bf16.mxu0 %v1595
    %1614 = vmatpush1.bf16.msra.mxu0 %v1594
    %1615 = vmatprep.subr.bf16.mxu0 %v1597
    %1616 = vmatpush1.bf16.msra.mxu0 %v1596
    %1617 = vmatprep.subr.bf16.mxu0 0
    %1618 = vmatpush1.bf16.msra.mxu0 0
    %1619 = vmatprep.subr.bf16.mxu0 0
    %1620 = vmatpush1.bf16.msra.mxu0 0
    %1621 = vmatprep.subr.bf16.mxu0 0
    %1622 = vmatpush1.bf16.msra.mxu0 0
    %1623 = vmatprep.subr.bf16.mxu0 0
    %1624 = vmatpush1.bf16.msra.mxu0 0
    %1625 = vmatprep.subr.bf16.mxu0 0
    %1626 = vmatpush1.bf16.msra.mxu0 0
    %1627 = vmatprep.subr.bf16.mxu0 0
    %1628 = vmatpush1.bf16.msra.mxu0 0
    %1629 = vmatprep.subr.bf16.mxu0 0
    %1630 = vmatpush1.bf16.msra.mxu0 0
    %1631 = vmatprep.subr.bf16.mxu0 0
    %1632 = vmatpush1.bf16.msra.mxu0 0
    %1633 = vmatprep.subr.bf16.mxu0 0
    %1634 = vmatpush1.bf16.msra.mxu0 0
    %1635 = vmatprep.subr.bf16.mxu0 0
    %1636 = vmatpush1.bf16.msra.mxu0 0
    %1637 = vmatprep.subr.bf16.mxu0 0
    %1638 = vmatpush1.bf16.msra.mxu0 0
    %1639 = vmatprep.subr.bf16.mxu0 0
    %1640 = vmatpush1.bf16.msra.mxu0 0
    %1641 = vmatprep.mubr.bf16.mxu0 0
    %1642 = vmatmul.mubr.bf16.gmra.mrb[0].mxu0 %v1607
    %v1643 = vpop.f32.mrb[0].mxu0
    %v1644 = vadd.f32 %v1559, %v1643
    %v1645 = vpop.f32.mrb[0].mxu0
    %v1646 = vadd.f32 %v1563, %v1645
    %v1647 = vpop.f32.mrb[0].mxu0
    %v1648 = vadd.f32 %v1559, %v1647
    %v1649 = vpop.f32.mrb[0].mxu0
    %v1650 = vadd.f32 %v1563, %v1649
    %1651 = vdwg.mxu0
    %v1652 = vpack.c.bf16 %v1648, %v1644
    %v1653 = vpack.c.bf16 %v1650, %v1646
    %s1654 = scalar_lea.vmem %s3, 32
    %v1655 = vld [vmem:[%s1654] sm:$0xf]
    %v1656 = vld [vmem:[%s1654 + $0x4] sm:$0xf]
    %v1657 = vld [vmem:[%s1654 + $0x8] sm:$0xf]
    %v1658 = vld [vmem:[%s1654 + $0xc] sm:$0xf]
    %v1659 = vld [vmem:[%s1654 + $0x10] sm:$0xf]
    %v1660 = vld [vmem:[%s1654 + $0x14] sm:$0xf]
    %v1661 = vld [vmem:[%s1654 + $0x18] sm:$0xf]
    %v1662 = vld [vmem:[%s1654 + $0x1c] sm:$0xf]
    %1664 = vrot.lane.b32.xlu0 %v1652, 64
    %v1665 = vpop.permute.xlu0 %1664
    %v1667 = vsel %vm189, %v1652, 0
    %v1670 = vsel %vm189, %v1665, 0
    %1672 = vmatprep.subr.bf16.mxu0 0
    %1673 = vmatpush1.bf16.xpose.msra.mxu0 %v1670
    %1674 = vmatprep.subr.bf16.mxu0 0
    %1675 = vmatpush1.bf16.xpose.msra.mxu0 0
    %1676 = vmatprep.subr.bf16.mxu0 0
    %1677 = vmatpush1.bf16.xpose.msra.mxu0 0
    %1678 = vmatprep.subr.bf16.mxu0 0
    %1679 = vmatpush1.bf16.xpose.msra.mxu0 0
    %1680 = vmatprep.subr.bf16.mxu0 0
    %1681 = vmatpush1.bf16.xpose.msra.mxu0 0
    %1682 = vmatprep.subr.bf16.mxu0 0
    %1683 = vmatpush1.bf16.xpose.msra.mxu0 0
    %1684 = vmatprep.subr.bf16.mxu0 0
    %1685 = vmatpush1.bf16.xpose.msra.mxu0 0
    %1686 = vmatprep.subr.bf16.mxu0 0
    %1687 = vmatpush1.bf16.xpose.msra.mxu0 0
    %1688 = vmatprep.subr.bf16.mxu0 0
    %1689 = vmatpush1.bf16.xpose.msra.mxu0 0
    %1690 = vmatprep.subr.bf16.mxu0 0
    %1691 = vmatpush1.bf16.xpose.msra.mxu0 0
    %1692 = vmatprep.subr.bf16.mxu0 0
    %1693 = vmatpush1.bf16.xpose.msra.mxu0 0
    %1694 = vmatprep.subr.bf16.mxu0 0
    %1695 = vmatpush1.bf16.xpose.msra.mxu0 0
    %1696 = vmatprep.subr.bf16.mxu0 0
    %1697 = vmatpush1.bf16.xpose.msra.mxu0 0
    %1698 = vmatprep.subr.bf16.mxu0 0
    %1699 = vmatpush1.bf16.xpose.msra.mxu0 0
    %1700 = vmatprep.subr.bf16.mxu0 0
    %1701 = vmatpush1.bf16.xpose.msra.mxu0 0
    %1702 = vmatprep.subr.bf16.mxu0 0
    %1703 = vmatpush1.bf16.xpose.msra.mxu0 0
    %1704 = vmatprep.mubr.bf16.mxu0 0
    %1705 = vmatmul.mubr.bf16.gmra.mrb[0].mxu0 %v1667
    %v1706 = vpop.f32.mrb[0].mxu0
    %v1707 = vadd.f32 0.0, %v1706
    %v1708 = vpop.f32.mrb[0].mxu0
    %v1709 = vpop.f32.mrb[0].mxu0
    %v1710 = vpop.f32.mrb[0].mxu0
    %1711 = vdwg.mxu0
    %v1712 = vsel %vm40, -inf, %v1707
    %v1713 = vsel %vm237, %v1712, -inf
    %1714 = vmax.xlane.f32.xlu0 %v1713
    %v1715 = vpop.xlane.xlu0 %1714
    %v1716 = vsub.f32 %v1712, %v1715
    %v1717 = vmul.f32 %v1716, 1.442695
    %v1718 = vpow.pop %v1717
    %v1719 = vsel %vm237, %v1718, 0.0
    %1720 = vadd.xlane.f32.xlu0 %v1719
    %v1721 = vpop.xlane.xlu0 %1720
    %v1722 = vrcp.pop %v1721
    %v1723 = vmul.f32 %v1718, %v1722
    %v1724 = vpack.c.bf16 %v1723, %v1723
    %v1726 = vsel %vm237, %v1724, 0
    %v1729 = vsel %vm253, %v1653, 0
    %1731 = vmatprep.subr.bf16.mxu0 0
    %1732 = vmatpush1.bf16.msra.mxu0 %v1729
    %1733 = vmatprep.subr.bf16.mxu0 0
    %1734 = vmatpush1.bf16.msra.mxu0 0
    %1735 = vmatprep.subr.bf16.mxu0 0
    %1736 = vmatpush1.bf16.msra.mxu0 0
    %1737 = vmatprep.subr.bf16.mxu0 0
    %1738 = vmatpush1.bf16.msra.mxu0 0
    %1739 = vmatprep.subr.bf16.mxu0 0
    %1740 = vmatpush1.bf16.msra.mxu0 0
    %1741 = vmatprep.subr.bf16.mxu0 0
    %1742 = vmatpush1.bf16.msra.mxu0 0
    %1743 = vmatprep.subr.bf16.mxu0 0
    %1744 = vmatpush1.bf16.msra.mxu0 0
    %1745 = vmatprep.subr.bf16.mxu0 0
    %1746 = vmatpush1.bf16.msra.mxu0 0
    %1747 = vmatprep.subr.bf16.mxu0 0
    %1748 = vmatpush1.bf16.msra.mxu0 0
    %1749 = vmatprep.subr.bf16.mxu0 0
    %1750 = vmatpush1.bf16.msra.mxu0 0
    %1751 = vmatprep.subr.bf16.mxu0 0
    %1752 = vmatpush1.bf16.msra.mxu0 0
    %1753 = vmatprep.subr.bf16.mxu0 0
    %1754 = vmatpush1.bf16.msra.mxu0 0
    %1755 = vmatprep.subr.bf16.mxu0 0
    %1756 = vmatpush1.bf16.msra.mxu0 0
    %1757 = vmatprep.subr.bf16.mxu0 0
    %1758 = vmatpush1.bf16.msra.mxu0 0
    %1759 = vmatprep.subr.bf16.mxu0 0
    %1760 = vmatpush1.bf16.msra.mxu0 0
    %1761 = vmatprep.subr.bf16.mxu0 0
    %1762 = vmatpush1.bf16.msra.mxu0 0
    %1763 = vmatprep.mubr.bf16.mxu0 0
    %1764 = vmatmul.mubr.bf16.gmra.mrb[0].mxu0 %v1726
    %v1765 = vpop.f32.mrb[0].mxu0
    %v1766 = vadd.f32 0.0, %v1765
    %v1767 = vpop.f32.mrb[0].mxu0
    %v1768 = vpop.f32.mrb[0].mxu0
    %v1769 = vpop.f32.mrb[0].mxu0
    %1770 = vdwg.mxu0
    %v1771 = vrot.slane %v1652, 4
    %1772 = vrot.lane.b32.xlu0 %v1771, 64
    %v1773 = vpop.permute.xlu0 %1772
    %v1775 = vsel %vm189, %v1771, 0
    %v1778 = vsel %vm189, %v1773, 0
    %1780 = vmatprep.subr.bf16.mxu0 0
    %1781 = vmatpush1.bf16.xpose.msra.mxu0 %v1778
    %1782 = vmatprep.subr.bf16.mxu0 0
    %1783 = vmatpush1.bf16.xpose.msra.mxu0 0
    %1784 = vmatprep.subr.bf16.mxu0 0
    %1785 = vmatpush1.bf16.xpose.msra.mxu0 0
    %1786 = vmatprep.subr.bf16.mxu0 0
    %1787 = vmatpush1.bf16.xpose.msra.mxu0 0
    %1788 = vmatprep.subr.bf16.mxu0 0
    %1789 = vmatpush1.bf16.xpose.msra.mxu0 0
    %1790 = vmatprep.subr.bf16.mxu0 0
    %1791 = vmatpush1.bf16.xpose.msra.mxu0 0
    %1792 = vmatprep.subr.bf16.mxu0 0
    %1793 = vmatpush1.bf16.xpose.msra.mxu0 0
    %1794 = vmatprep.subr.bf16.mxu0 0
    %1795 = vmatpush1.bf16.xpose.msra.mxu0 0
    %1796 = vmatprep.subr.bf16.mxu0 0
    %1797 = vmatpush1.bf16.xpose.msra.mxu0 0
    %1798 = vmatprep.subr.bf16.mxu0 0
    %1799 = vmatpush1.bf16.xpose.msra.mxu0 0
    %1800 = vmatprep.subr.bf16.mxu0 0
    %1801 = vmatpush1.bf16.xpose.msra.mxu0 0
    %1802 = vmatprep.subr.bf16.mxu0 0
    %1803 = vmatpush1.bf16.xpose.msra.mxu0 0
    %1804 = vmatprep.subr.bf16.mxu0 0
    %1805 = vmatpush1.bf16.xpose.msra.mxu0 0
    %1806 = vmatprep.subr.bf16.mxu0 0
    %1807 = vmatpush1.bf16.xpose.msra.mxu0 0
    %1808 = vmatprep.subr.bf16.mxu0 0
    %1809 = vmatpush1.bf16.xpose.msra.mxu0 0
    %1810 = vmatprep.subr.bf16.mxu0 0
    %1811 = vmatpush1.bf16.xpose.msra.mxu0 0
    %1812 = vmatprep.mubr.bf16.mxu0 0
    %1813 = vmatmul.mubr.bf16.gmra.mrb[0].mxu0 %v1775
    %v1814 = vpop.f32.mrb[0].mxu0
    %v1815 = vadd.f32 0.0, %v1814
    %v1816 = vpop.f32.mrb[0].mxu0
    %v1817 = vpop.f32.mrb[0].mxu0
    %v1818 = vpop.f32.mrb[0].mxu0
    %1819 = vdwg.mxu0
    %v1820 = vsel %vm40, -inf, %v1815
    %v1821 = vsel %vm237, %v1820, -inf
    %1822 = vmax.xlane.f32.xlu0 %v1821
    %v1823 = vpop.xlane.xlu0 %1822
    %v1824 = vsub.f32 %v1820, %v1823
    %v1825 = vmul.f32 %v1824, 1.442695
    %v1826 = vpow.pop %v1825
    %v1827 = vsel %vm237, %v1826, 0.0
    %1828 = vadd.xlane.f32.xlu0 %v1827
    %v1829 = vpop.xlane.xlu0 %1828
    %v1830 = vrcp.pop %v1829
    %v1831 = vmul.f32 %v1826, %v1830
    %v1832 = vpack.c.bf16 %v1831, %v1831
    %v1834 = vrot.slane %v1653, 4
    %v1836 = vsel %vm237, %v1832, 0
    %v1839 = vsel %vm253, %v1834, 0
    %1841 = vmatprep.subr.bf16.mxu0 0
    %1842 = vmatpush1.bf16.msra.mxu0 %v1839
    %1843 = vmatprep.subr.bf16.mxu0 0
    %1844 = vmatpush1.bf16.msra.mxu0 0
    %1845 = vmatprep.subr.bf16.mxu0 0
    %1846 = vmatpush1.bf16.msra.mxu0 0
    %1847 = vmatprep.subr.bf16.mxu0 0
    %1848 = vmatpush1.bf16.msra.mxu0 0
    %1849 = vmatprep.subr.bf16.mxu0 0
    %1850 = vmatpush1.bf16.msra.mxu0 0
    %1851 = vmatprep.subr.bf16.mxu0 0
    %1852 = vmatpush1.bf16.msra.mxu0 0
    %1853 = vmatprep.subr.bf16.mxu0 0
    %1854 = vmatpush1.bf16.msra.mxu0 0
    %1855 = vmatprep.subr.bf16.mxu0 0
    %1856 = vmatpush1.bf16.msra.mxu0 0
    %1857 = vmatprep.subr.bf16.mxu0 0
    %1858 = vmatpush1.bf16.msra.mxu0 0
    %1859 = vmatprep.subr.bf16.mxu0 0
    %1860 = vmatpush1.bf16.msra.mxu0 0
    %1861 = vmatprep.subr.bf16.mxu0 0
    %1862 = vmatpush1.bf16.msra.mxu0 0
    %1863 = vmatprep.subr.bf16.mxu0 0
    %1864 = vmatpush1.bf16.msra.mxu0 0
    %1865 = vmatprep.subr.bf16.mxu0 0
    %1866 = vmatpush1.bf16.msra.mxu0 0
    %1867 = vmatprep.subr.bf16.mxu0 0
    %1868 = vmatpush1.bf16.msra.mxu0 0
    %1869 = vmatprep.subr.bf16.mxu0 0
    %1870 = vmatpush1.bf16.msra.mxu0 0
    %1871 = vmatprep.subr.bf16.mxu0 0
    %1872 = vmatpush1.bf16.msra.mxu0 0
    %1873 = vmatprep.mubr.bf16.mxu0 0
    %1874 = vmatmul.mubr.bf16.gmra.mrb[0].mxu0 %v1836
    %v1875 = vpop.f32.mrb[0].mxu0
    %v1876 = vadd.f32 0.0, %v1875
    %v1877 = vpop.f32.mrb[0].mxu0
    %v1878 = vpop.f32.mrb[0].mxu0
    %v1879 = vpop.f32.mrb[0].mxu0
    %1880 = vdwg.mxu0
    %v1881 = vpack.c.bf16 %v1876, %v1766
    %1882 = vrot.lane.b32.xlu0 %v1652, 112
    %v1883 = vpop.permute.xlu0 %1882
    %1884 = vrot.lane.b32.xlu0 %v1652, 48
    %v1885 = vpop.permute.xlu0 %1884
    %v1887 = vsel %vm189, %v1883, 0
    %v1890 = vsel %vm189, %v1885, 0
    %1892 = vmatprep.subr.bf16.mxu0 0
    %1893 = vmatpush1.bf16.xpose.msra.mxu0 %v1890
    %1894 = vmatprep.subr.bf16.mxu0 0
    %1895 = vmatpush1.bf16.xpose.msra.mxu0 0
    %1896 = vmatprep.subr.bf16.mxu0 0
    %1897 = vmatpush1.bf16.xpose.msra.mxu0 0
    %1898 = vmatprep.subr.bf16.mxu0 0
    %1899 = vmatpush1.bf16.xpose.msra.mxu0 0
    %1900 = vmatprep.subr.bf16.mxu0 0
    %1901 = vmatpush1.bf16.xpose.msra.mxu0 0
    %1902 = vmatprep.subr.bf16.mxu0 0
    %1903 = vmatpush1.bf16.xpose.msra.mxu0 0
    %1904 = vmatprep.subr.bf16.mxu0 0
    %1905 = vmatpush1.bf16.xpose.msra.mxu0 0
    %1906 = vmatprep.subr.bf16.mxu0 0
    %1907 = vmatpush1.bf16.xpose.msra.mxu0 0
    %1908 = vmatprep.subr.bf16.mxu0 0
    %1909 = vmatpush1.bf16.xpose.msra.mxu0 0
    %1910 = vmatprep.subr.bf16.mxu0 0
    %1911 = vmatpush1.bf16.xpose.msra.mxu0 0
    %1912 = vmatprep.subr.bf16.mxu0 0
    %1913 = vmatpush1.bf16.xpose.msra.mxu0 0
    %1914 = vmatprep.subr.bf16.mxu0 0
    %1915 = vmatpush1.bf16.xpose.msra.mxu0 0
    %1916 = vmatprep.subr.bf16.mxu0 0
    %1917 = vmatpush1.bf16.xpose.msra.mxu0 0
    %1918 = vmatprep.subr.bf16.mxu0 0
    %1919 = vmatpush1.bf16.xpose.msra.mxu0 0
    %1920 = vmatprep.subr.bf16.mxu0 0
    %1921 = vmatpush1.bf16.xpose.msra.mxu0 0
    %1922 = vmatprep.subr.bf16.mxu0 0
    %1923 = vmatpush1.bf16.xpose.msra.mxu0 0
    %1924 = vmatprep.mubr.bf16.mxu0 0
    %1925 = vmatmul.mubr.bf16.gmra.mrb[0].mxu0 %v1887
    %v1926 = vpop.f32.mrb[0].mxu0
    %v1927 = vadd.f32 0.0, %v1926
    %v1928 = vpop.f32.mrb[0].mxu0
    %v1929 = vpop.f32.mrb[0].mxu0
    %v1930 = vpop.f32.mrb[0].mxu0
    %1931 = vdwg.mxu0
    %v1932 = vsel %vm40, -inf, %v1927
    %v1933 = vsel %vm237, %v1932, -inf
    %1934 = vmax.xlane.f32.xlu0 %v1933
    %v1935 = vpop.xlane.xlu0 %1934
    %v1936 = vsub.f32 %v1932, %v1935
    %v1937 = vmul.f32 %v1936, 1.442695
    %v1938 = vpow.pop %v1937
    %v1939 = vsel %vm237, %v1938, 0.0
    %1940 = vadd.xlane.f32.xlu0 %v1939
    %v1941 = vpop.xlane.xlu0 %1940
    %v1942 = vrcp.pop %v1941
    %v1943 = vmul.f32 %v1938, %v1942
    %v1944 = vpack.c.bf16 %v1943, %v1943
    %1945 = vrot.lane.b32.xlu0 %v1653, 112
    %v1946 = vpop.permute.xlu0 %1945
    %v1948 = vsel %vm237, %v1944, 0
    %v1951 = vsel %vm253, %v1946, 0
    %1953 = vmatprep.subr.bf16.mxu0 0
    %1954 = vmatpush1.bf16.msra.mxu0 %v1951
    %1955 = vmatprep.subr.bf16.mxu0 0
    %1956 = vmatpush1.bf16.msra.mxu0 0
    %1957 = vmatprep.subr.bf16.mxu0 0
    %1958 = vmatpush1.bf16.msra.mxu0 0
    %1959 = vmatprep.subr.bf16.mxu0 0
    %1960 = vmatpush1.bf16.msra.mxu0 0
    %1961 = vmatprep.subr.bf16.mxu0 0
    %1962 = vmatpush1.bf16.msra.mxu0 0
    %1963 = vmatprep.subr.bf16.mxu0 0
    %1964 = vmatpush1.bf16.msra.mxu0 0
    %1965 = vmatprep.subr.bf16.mxu0 0
    %1966 = vmatpush1.bf16.msra.mxu0 0
    %1967 = vmatprep.subr.bf16.mxu0 0
    %1968 = vmatpush1.bf16.msra.mxu0 0
    %1969 = vmatprep.subr.bf16.mxu0 0
    %1970 = vmatpush1.bf16.msra.mxu0 0
    %1971 = vmatprep.subr.bf16.mxu0 0
    %1972 = vmatpush1.bf16.msra.mxu0 0
    %1973 = vmatprep.subr.bf16.mxu0 0
    %1974 = vmatpush1.bf16.msra.mxu0 0
    %1975 = vmatprep.subr.bf16.mxu0 0
    %1976 = vmatpush1.bf16.msra.mxu0 0
    %1977 = vmatprep.subr.bf16.mxu0 0
    %1978 = vmatpush1.bf16.msra.mxu0 0
    %1979 = vmatprep.subr.bf16.mxu0 0
    %1980 = vmatpush1.bf16.msra.mxu0 0
    %1981 = vmatprep.subr.bf16.mxu0 0
    %1982 = vmatpush1.bf16.msra.mxu0 0
    %1983 = vmatprep.subr.bf16.mxu0 0
    %1984 = vmatpush1.bf16.msra.mxu0 0
    %1985 = vmatprep.mubr.bf16.mxu0 0
    %1986 = vmatmul.mubr.bf16.gmra.mrb[0].mxu0 %v1948
    %v1987 = vpop.f32.mrb[0].mxu0
    %v1988 = vadd.f32 0.0, %v1987
    %v1989 = vpop.f32.mrb[0].mxu0
    %v1990 = vpop.f32.mrb[0].mxu0
    %v1991 = vpop.f32.mrb[0].mxu0
    %1992 = vdwg.mxu0
    %1993 = vrot.lane.b32.xlu0 %v1771, 112
    %v1994 = vpop.permute.xlu0 %1993
    %1995 = vrot.lane.b32.xlu0 %v1771, 48
    %v1996 = vpop.permute.xlu0 %1995
    %v1998 = vsel %vm189, %v1994, 0
    %v2001 = vsel %vm189, %v1996, 0
    %2003 = vmatprep.subr.bf16.mxu0 0
    %2004 = vmatpush1.bf16.xpose.msra.mxu0 %v2001
    %2005 = vmatprep.subr.bf16.mxu0 0
    %2006 = vmatpush1.bf16.xpose.msra.mxu0 0
    %2007 = vmatprep.subr.bf16.mxu0 0
    %2008 = vmatpush1.bf16.xpose.msra.mxu0 0
    %2009 = vmatprep.subr.bf16.mxu0 0
    %2010 = vmatpush1.bf16.xpose.msra.mxu0 0
    %2011 = vmatprep.subr.bf16.mxu0 0
    %2012 = vmatpush1.bf16.xpose.msra.mxu0 0
    %2013 = vmatprep.subr.bf16.mxu0 0
    %2014 = vmatpush1.bf16.xpose.msra.mxu0 0
    %2015 = vmatprep.subr.bf16.mxu0 0
    %2016 = vmatpush1.bf16.xpose.msra.mxu0 0
    %2017 = vmatprep.subr.bf16.mxu0 0
    %2018 = vmatpush1.bf16.xpose.msra.mxu0 0
    %2019 = vmatprep.subr.bf16.mxu0 0
    %2020 = vmatpush1.bf16.xpose.msra.mxu0 0
    %2021 = vmatprep.subr.bf16.mxu0 0
    %2022 = vmatpush1.bf16.xpose.msra.mxu0 0
    %2023 = vmatprep.subr.bf16.mxu0 0
    %2024 = vmatpush1.bf16.xpose.msra.mxu0 0
    %2025 = vmatprep.subr.bf16.mxu0 0
    %2026 = vmatpush1.bf16.xpose.msra.mxu0 0
    %2027 = vmatprep.subr.bf16.mxu0 0
    %2028 = vmatpush1.bf16.xpose.msra.mxu0 0
    %2029 = vmatprep.subr.bf16.mxu0 0
    %2030 = vmatpush1.bf16.xpose.msra.mxu0 0
    %2031 = vmatprep.subr.bf16.mxu0 0
    %2032 = vmatpush1.bf16.xpose.msra.mxu0 0
    %2033 = vmatprep.subr.bf16.mxu0 0
    %2034 = vmatpush1.bf16.xpose.msra.mxu0 0
    %2035 = vmatprep.mubr.bf16.mxu0 0
    %2036 = vmatmul.mubr.bf16.gmra.mrb[0].mxu0 %v1998
    %v2037 = vpop.f32.mrb[0].mxu0
    %v2038 = vadd.f32 0.0, %v2037
    %v2039 = vpop.f32.mrb[0].mxu0
    %v2040 = vpop.f32.mrb[0].mxu0
    %v2041 = vpop.f32.mrb[0].mxu0
    %2042 = vdwg.mxu0
    %v2043 = vsel %vm40, -inf, %v2038
    %v2044 = vsel %vm237, %v2043, -inf
    %2045 = vmax.xlane.f32.xlu0 %v2044
    %v2046 = vpop.xlane.xlu0 %2045
    %v2047 = vsub.f32 %v2043, %v2046
    %v2048 = vmul.f32 %v2047, 1.442695
    %v2049 = vpow.pop %v2048
    %v2050 = vsel %vm237, %v2049, 0.0
    %2051 = vadd.xlane.f32.xlu0 %v2050
    %v2052 = vpop.xlane.xlu0 %2051
    %v2053 = vrcp.pop %v2052
    %v2054 = vmul.f32 %v2049, %v2053
    %v2055 = vpack.c.bf16 %v2054, %v2054
    %2056 = vrot.lane.b32.xlu0 %v1834, 112
    %v2057 = vpop.permute.xlu0 %2056
    %v2059 = vsel %vm237, %v2055, 0
    %v2062 = vsel %vm253, %v2057, 0
    %2064 = vmatprep.subr.bf16.mxu0 0
    %2065 = vmatpush1.bf16.msra.mxu0 %v2062
    %2066 = vmatprep.subr.bf16.mxu0 0
    %2067 = vmatpush1.bf16.msra.mxu0 0
    %2068 = vmatprep.subr.bf16.mxu0 0
    %2069 = vmatpush1.bf16.msra.mxu0 0
    %2070 = vmatprep.subr.bf16.mxu0 0
    %2071 = vmatpush1.bf16.msra.mxu0 0
    %2072 = vmatprep.subr.bf16.mxu0 0
    %2073 = vmatpush1.bf16.msra.mxu0 0
    %2074 = vmatprep.subr.bf16.mxu0 0
    %2075 = vmatpush1.bf16.msra.mxu0 0
    %2076 = vmatprep.subr.bf16.mxu0 0
    %2077 = vmatpush1.bf16.msra.mxu0 0
    %2078 = vmatprep.subr.bf16.mxu0 0
    %2079 = vmatpush1.bf16.msra.mxu0 0
    %2080 = vmatprep.subr.bf16.mxu0 0
    %2081 = vmatpush1.bf16.msra.mxu0 0
    %2082 = vmatprep.subr.bf16.mxu0 0
    %2083 = vmatpush1.bf16.msra.mxu0 0
    %2084 = vmatprep.subr.bf16.mxu0 0
    %2085 = vmatpush1.bf16.msra.mxu0 0
    %2086 = vmatprep.subr.bf16.mxu0 0
    %2087 = vmatpush1.bf16.msra.mxu0 0
    %2088 = vmatprep.subr.bf16.mxu0 0
    %2089 = vmatpush1.bf16.msra.mxu0 0
    %2090 = vmatprep.subr.bf16.mxu0 0
    %2091 = vmatpush1.bf16.msra.mxu0 0
    %2092 = vmatprep.subr.bf16.mxu0 0
    %2093 = vmatpush1.bf16.msra.mxu0 0
    %2094 = vmatprep.subr.bf16.mxu0 0
    %2095 = vmatpush1.bf16.msra.mxu0 0
    %2096 = vmatprep.mubr.bf16.mxu0 0
    %2097 = vmatmul.mubr.bf16.gmra.mrb[0].mxu0 %v2059
    %v2098 = vpop.f32.mrb[0].mxu0
    %v2099 = vadd.f32 0.0, %v2098
    %v2100 = vpop.f32.mrb[0].mxu0
    %v2101 = vpop.f32.mrb[0].mxu0
    %v2102 = vpop.f32.mrb[0].mxu0
    %2103 = vdwg.mxu0
    %v2104 = vpack.c.bf16 %v2099, %v1988
    %v2107 = vunpack.c.l.b16 %v1657
    %v2108 = vunpack.c.l.b16 %v1658
    %v2109 = vpack.c.b16 %v2108, %v2107
    %v2112 = vsel %vm189, %v2104, 0
    %2114 = vmatprep.subr.bf16.mxu0 0
    %2115 = vmatpush1.bf16.msra.mxu0 %v2109
    %2116 = vmatprep.subr.bf16.mxu0 0
    %2117 = vmatpush1.bf16.msra.mxu0 0
    %2118 = vmatprep.subr.bf16.mxu0 0
    %2119 = vmatpush1.bf16.msra.mxu0 0
    %2120 = vmatprep.subr.bf16.mxu0 0
    %2121 = vmatpush1.bf16.msra.mxu0 0
    %2122 = vmatprep.subr.bf16.mxu0 0
    %2123 = vmatpush1.bf16.msra.mxu0 0
    %2124 = vmatprep.subr.bf16.mxu0 0
    %2125 = vmatpush1.bf16.msra.mxu0 0
    %2126 = vmatprep.subr.bf16.mxu0 0
    %2127 = vmatpush1.bf16.msra.mxu0 0
    %2128 = vmatprep.subr.bf16.mxu0 0
    %2129 = vmatpush1.bf16.msra.mxu0 0
    %2130 = vmatprep.subr.bf16.mxu0 0
    %2131 = vmatpush1.bf16.msra.mxu0 0
    %2132 = vmatprep.subr.bf16.mxu0 0
    %2133 = vmatpush1.bf16.msra.mxu0 0
    %2134 = vmatprep.subr.bf16.mxu0 0
    %2135 = vmatpush1.bf16.msra.mxu0 0
    %2136 = vmatprep.subr.bf16.mxu0 0
    %2137 = vmatpush1.bf16.msra.mxu0 0
    %2138 = vmatprep.subr.bf16.mxu0 0
    %2139 = vmatpush1.bf16.msra.mxu0 0
    %2140 = vmatprep.subr.bf16.mxu0 0
    %2141 = vmatpush1.bf16.msra.mxu0 0
    %2142 = vmatprep.subr.bf16.mxu0 0
    %2143 = vmatpush1.bf16.msra.mxu0 0
    %2144 = vmatprep.subr.bf16.mxu0 0
    %2145 = vmatpush1.bf16.msra.mxu0 0
    %2146 = vmatprep.mubr.bf16.mxu0 0
    %2147 = vmatmul.mubr.bf16.gmra.mrb[0].mxu0 %v2112
    %v2148 = vpop.f32.mrb[0].mxu0
    %v2149 = vadd.f32 0.0, %v2148
    %v2150 = vpop.f32.mrb[0].mxu0
    %v2151 = vpop.f32.mrb[0].mxu0
    %v2152 = vadd.f32 0.0, %v2151
    %v2153 = vpop.f32.mrb[0].mxu0
    %2154 = vdwg.mxu0
    %v2157 = vunpack.c.l.b16 %v1655
    %v2158 = vunpack.c.l.b16 %v1656
    %v2159 = vpack.c.b16 %v2158, %v2157
    %v2162 = vsel %vm189, %v1881, 0
    %2164 = vmatprep.subr.bf16.mxu0 0
    %2165 = vmatpush1.bf16.msra.mxu0 %v2159
    %2166 = vmatprep.subr.bf16.mxu0 0
    %2167 = vmatpush1.bf16.msra.mxu0 0
    %2168 = vmatprep.subr.bf16.mxu0 0
    %2169 = vmatpush1.bf16.msra.mxu0 0
    %2170 = vmatprep.subr.bf16.mxu0 0
    %2171 = vmatpush1.bf16.msra.mxu0 0
    %2172 = vmatprep.subr.bf16.mxu0 0
    %2173 = vmatpush1.bf16.msra.mxu0 0
    %2174 = vmatprep.subr.bf16.mxu0 0
    %2175 = vmatpush1.bf16.msra.mxu0 0
    %2176 = vmatprep.subr.bf16.mxu0 0
    %2177 = vmatpush1.bf16.msra.mxu0 0
    %2178 = vmatprep.subr.bf16.mxu0 0
    %2179 = vmatpush1.bf16.msra.mxu0 0
    %2180 = vmatprep.subr.bf16.mxu0 0
    %2181 = vmatpush1.bf16.msra.mxu0 0
    %2182 = vmatprep.subr.bf16.mxu0 0
    %2183 = vmatpush1.bf16.msra.mxu0 0
    %2184 = vmatprep.subr.bf16.mxu0 0
    %2185 = vmatpush1.bf16.msra.mxu0 0
    %2186 = vmatprep.subr.bf16.mxu0 0
    %2187 = vmatpush1.bf16.msra.mxu0 0
    %2188 = vmatprep.subr.bf16.mxu0 0
    %2189 = vmatpush1.bf16.msra.mxu0 0
    %2190 = vmatprep.subr.bf16.mxu0 0
    %2191 = vmatpush1.bf16.msra.mxu0 0
    %2192 = vmatprep.subr.bf16.mxu0 0
    %2193 = vmatpush1.bf16.msra.mxu0 0
    %2194 = vmatprep.subr.bf16.mxu0 0
    %2195 = vmatpush1.bf16.msra.mxu0 0
    %2196 = vmatprep.mubr.bf16.mxu0 0
    %2197 = vmatmul.mubr.bf16.gmra.mrb[0].mxu0 %v2162
    %v2198 = vpop.f32.mrb[0].mxu0
    %v2199 = vadd.f32 %v2149, %v2198
    %v2200 = vpop.f32.mrb[0].mxu0
    %v2201 = vpop.f32.mrb[0].mxu0
    %v2202 = vadd.f32 %v2152, %v2201
    %v2203 = vpop.f32.mrb[0].mxu0
    %2204 = vdwg.mxu0
    %2205 = vrot.lane.b32.xlu0 %v1652, 96
    %v2206 = vpop.permute.xlu0 %2205
    %2207 = vrot.lane.b32.xlu0 %v1652, 32
    %v2208 = vpop.permute.xlu0 %2207
    %v2210 = vsel %vm189, %v2206, 0
    %v2213 = vsel %vm189, %v2208, 0
    %2215 = vmatprep.subr.bf16.mxu0 0
    %2216 = vmatpush1.bf16.xpose.msra.mxu0 %v2213
    %2217 = vmatprep.subr.bf16.mxu0 0
    %2218 = vmatpush1.bf16.xpose.msra.mxu0 0
    %2219 = vmatprep.subr.bf16.mxu0 0
    %2220 = vmatpush1.bf16.xpose.msra.mxu0 0
    %2221 = vmatprep.subr.bf16.mxu0 0
    %2222 = vmatpush1.bf16.xpose.msra.mxu0 0
    %2223 = vmatprep.subr.bf16.mxu0 0
    %2224 = vmatpush1.bf16.xpose.msra.mxu0 0
    %2225 = vmatprep.subr.bf16.mxu0 0
    %2226 = vmatpush1.bf16.xpose.msra.mxu0 0
    %2227 = vmatprep.subr.bf16.mxu0 0
    %2228 = vmatpush1.bf16.xpose.msra.mxu0 0
    %2229 = vmatprep.subr.bf16.mxu0 0
    %2230 = vmatpush1.bf16.xpose.msra.mxu0 0
    %2231 = vmatprep.subr.bf16.mxu0 0
    %2232 = vmatpush1.bf16.xpose.msra.mxu0 0
    %2233 = vmatprep.subr.bf16.mxu0 0
    %2234 = vmatpush1.bf16.xpose.msra.mxu0 0
    %2235 = vmatprep.subr.bf16.mxu0 0
    %2236 = vmatpush1.bf16.xpose.msra.mxu0 0
    %2237 = vmatprep.subr.bf16.mxu0 0
    %2238 = vmatpush1.bf16.xpose.msra.mxu0 0
    %2239 = vmatprep.subr.bf16.mxu0 0
    %2240 = vmatpush1.bf16.xpose.msra.mxu0 0
    %2241 = vmatprep.subr.bf16.mxu0 0
    %2242 = vmatpush1.bf16.xpose.msra.mxu0 0
    %2243 = vmatprep.subr.bf16.mxu0 0
    %2244 = vmatpush1.bf16.xpose.msra.mxu0 0
    %2245 = vmatprep.subr.bf16.mxu0 0
    %2246 = vmatpush1.bf16.xpose.msra.mxu0 0
    %2247 = vmatprep.mubr.bf16.mxu0 0
    %2248 = vmatmul.mubr.bf16.gmra.mrb[0].mxu0 %v2210
    %v2249 = vpop.f32.mrb[0].mxu0
    %v2250 = vadd.f32 0.0, %v2249
    %v2251 = vpop.f32.mrb[0].mxu0
    %v2252 = vpop.f32.mrb[0].mxu0
    %v2253 = vpop.f32.mrb[0].mxu0
    %2254 = vdwg.mxu0
    %v2255 = vsel %vm40, -inf, %v2250
    %v2256 = vsel %vm237, %v2255, -inf
    %2257 = vmax.xlane.f32.xlu0 %v2256
    %v2258 = vpop.xlane.xlu0 %2257
    %v2259 = vsub.f32 %v2255, %v2258
    %v2260 = vmul.f32 %v2259, 1.442695
    %v2261 = vpow.pop %v2260
    %v2262 = vsel %vm237, %v2261, 0.0
    %2263 = vadd.xlane.f32.xlu0 %v2262
    %v2264 = vpop.xlane.xlu0 %2263
    %v2265 = vrcp.pop %v2264
    %v2266 = vmul.f32 %v2261, %v2265
    %v2267 = vpack.c.bf16 %v2266, %v2266
    %2268 = vrot.lane.b32.xlu0 %v1653, 96
    %v2269 = vpop.permute.xlu0 %2268
    %v2271 = vsel %vm237, %v2267, 0
    %v2274 = vsel %vm253, %v2269, 0
    %2276 = vmatprep.subr.bf16.mxu0 0
    %2277 = vmatpush1.bf16.msra.mxu0 %v2274
    %2278 = vmatprep.subr.bf16.mxu0 0
    %2279 = vmatpush1.bf16.msra.mxu0 0
    %2280 = vmatprep.subr.bf16.mxu0 0
    %2281 = vmatpush1.bf16.msra.mxu0 0
    %2282 = vmatprep.subr.bf16.mxu0 0
    %2283 = vmatpush1.bf16.msra.mxu0 0
    %2284 = vmatprep.subr.bf16.mxu0 0
    %2285 = vmatpush1.bf16.msra.mxu0 0
    %2286 = vmatprep.subr.bf16.mxu0 0
    %2287 = vmatpush1.bf16.msra.mxu0 0
    %2288 = vmatprep.subr.bf16.mxu0 0
    %2289 = vmatpush1.bf16.msra.mxu0 0
    %2290 = vmatprep.subr.bf16.mxu0 0
    %2291 = vmatpush1.bf16.msra.mxu0 0
    %2292 = vmatprep.subr.bf16.mxu0 0
    %2293 = vmatpush1.bf16.msra.mxu0 0
    %2294 = vmatprep.subr.bf16.mxu0 0
    %2295 = vmatpush1.bf16.msra.mxu0 0
    %2296 = vmatprep.subr.bf16.mxu0 0
    %2297 = vmatpush1.bf16.msra.mxu0 0
    %2298 = vmatprep.subr.bf16.mxu0 0
    %2299 = vmatpush1.bf16.msra.mxu0 0
    %2300 = vmatprep.subr.bf16.mxu0 0
    %2301 = vmatpush1.bf16.msra.mxu0 0
    %2302 = vmatprep.subr.bf16.mxu0 0
    %2303 = vmatpush1.bf16.msra.mxu0 0
    %2304 = vmatprep.subr.bf16.mxu0 0
    %2305 = vmatpush1.bf16.msra.mxu0 0
    %2306 = vmatprep.subr.bf16.mxu0 0
    %2307 = vmatpush1.bf16.msra.mxu0 0
    %2308 = vmatprep.mubr.bf16.mxu0 0
    %2309 = vmatmul.mubr.bf16.gmra.mrb[0].mxu0 %v2271
    %v2310 = vpop.f32.mrb[0].mxu0
    %v2311 = vadd.f32 0.0, %v2310
    %v2312 = vpop.f32.mrb[0].mxu0
    %v2313 = vpop.f32.mrb[0].mxu0
    %v2314 = vpop.f32.mrb[0].mxu0
    %2315 = vdwg.mxu0
    %2316 = vrot.lane.b32.xlu0 %v1771, 96
    %v2317 = vpop.permute.xlu0 %2316
    %2318 = vrot.lane.b32.xlu0 %v1771, 32
    %v2319 = vpop.permute.xlu0 %2318
    %v2321 = vsel %vm189, %v2317, 0
    %v2324 = vsel %vm189, %v2319, 0
    %2326 = vmatprep.subr.bf16.mxu0 0
    %2327 = vmatpush1.bf16.xpose.msra.mxu0 %v2324
    %2328 = vmatprep.subr.bf16.mxu0 0
    %2329 = vmatpush1.bf16.xpose.msra.mxu0 0
    %2330 = vmatprep.subr.bf16.mxu0 0
    %2331 = vmatpush1.bf16.xpose.msra.mxu0 0
    %2332 = vmatprep.subr.bf16.mxu0 0
    %2333 = vmatpush1.bf16.xpose.msra.mxu0 0
    %2334 = vmatprep.subr.bf16.mxu0 0
    %2335 = vmatpush1.bf16.xpose.msra.mxu0 0
    %2336 = vmatprep.subr.bf16.mxu0 0
    %2337 = vmatpush1.bf16.xpose.msra.mxu0 0
    %2338 = vmatprep.subr.bf16.mxu0 0
    %2339 = vmatpush1.bf16.xpose.msra.mxu0 0
    %2340 = vmatprep.subr.bf16.mxu0 0
    %2341 = vmatpush1.bf16.xpose.msra.mxu0 0
    %2342 = vmatprep.subr.bf16.mxu0 0
    %2343 = vmatpush1.bf16.xpose.msra.mxu0 0
    %2344 = vmatprep.subr.bf16.mxu0 0
    %2345 = vmatpush1.bf16.xpose.msra.mxu0 0
    %2346 = vmatprep.subr.bf16.mxu0 0
    %2347 = vmatpush1.bf16.xpose.msra.mxu0 0
    %2348 = vmatprep.subr.bf16.mxu0 0
    %2349 = vmatpush1.bf16.xpose.msra.mxu0 0
    %2350 = vmatprep.subr.bf16.mxu0 0
    %2351 = vmatpush1.bf16.xpose.msra.mxu0 0
    %2352 = vmatprep.subr.bf16.mxu0 0
    %2353 = vmatpush1.bf16.xpose.msra.mxu0 0
    %2354 = vmatprep.subr.bf16.mxu0 0
    %2355 = vmatpush1.bf16.xpose.msra.mxu0 0
    %2356 = vmatprep.subr.bf16.mxu0 0
    %2357 = vmatpush1.bf16.xpose.msra.mxu0 0
    %2358 = vmatprep.mubr.bf16.mxu0 0
    %2359 = vmatmul.mubr.bf16.gmra.mrb[0].mxu0 %v2321
    %v2360 = vpop.f32.mrb[0].mxu0
    %v2361 = vadd.f32 0.0, %v2360
    %v2362 = vpop.f32.mrb[0].mxu0
    %v2363 = vpop.f32.mrb[0].mxu0
    %v2364 = vpop.f32.mrb[0].mxu0
    %2365 = vdwg.mxu0
    %v2366 = vsel %vm40, -inf, %v2361
    %v2367 = vsel %vm237, %v2366, -inf
    %2368 = vmax.xlane.f32.xlu0 %v2367
    %v2369 = vpop.xlane.xlu0 %2368
    %v2370 = vsub.f32 %v2366, %v2369
    %v2371 = vmul.f32 %v2370, 1.442695
    %v2372 = vpow.pop %v2371
    %v2373 = vsel %vm237, %v2372, 0.0
    %2374 = vadd.xlane.f32.xlu0 %v2373
    %v2375 = vpop.xlane.xlu0 %2374
    %v2376 = vrcp.pop %v2375
    %v2377 = vmul.f32 %v2372, %v2376
    %v2378 = vpack.c.bf16 %v2377, %v2377
    %2379 = vrot.lane.b32.xlu0 %v1834, 96
    %v2380 = vpop.permute.xlu0 %2379
    %v2382 = vsel %vm237, %v2378, 0
    %v2385 = vsel %vm253, %v2380, 0
    %2387 = vmatprep.subr.bf16.mxu0 0
    %2388 = vmatpush1.bf16.msra.mxu0 %v2385
    %2389 = vmatprep.subr.bf16.mxu0 0
    %2390 = vmatpush1.bf16.msra.mxu0 0
    %2391 = vmatprep.subr.bf16.mxu0 0
    %2392 = vmatpush1.bf16.msra.mxu0 0
    %2393 = vmatprep.subr.bf16.mxu0 0
    %2394 = vmatpush1.bf16.msra.mxu0 0
    %2395 = vmatprep.subr.bf16.mxu0 0
    %2396 = vmatpush1.bf16.msra.mxu0 0
    %2397 = vmatprep.subr.bf16.mxu0 0
    %2398 = vmatpush1.bf16.msra.mxu0 0
    %2399 = vmatprep.subr.bf16.mxu0 0
    %2400 = vmatpush1.bf16.msra.mxu0 0
    %2401 = vmatprep.subr.bf16.mxu0 0
    %2402 = vmatpush1.bf16.msra.mxu0 0
    %2403 = vmatprep.subr.bf16.mxu0 0
    %2404 = vmatpush1.bf16.msra.mxu0 0
    %2405 = vmatprep.subr.bf16.mxu0 0
    %2406 = vmatpush1.bf16.msra.mxu0 0
    %2407 = vmatprep.subr.bf16.mxu0 0
    %2408 = vmatpush1.bf16.msra.mxu0 0
    %2409 = vmatprep.subr.bf16.mxu0 0
    %2410 = vmatpush1.bf16.msra.mxu0 0
    %2411 = vmatprep.subr.bf16.mxu0 0
    %2412 = vmatpush1.bf16.msra.mxu0 0
    %2413 = vmatprep.subr.bf16.mxu0 0
    %2414 = vmatpush1.bf16.msra.mxu0 0
    %2415 = vmatprep.subr.bf16.mxu0 0
    %2416 = vmatpush1.bf16.msra.mxu0 0
    %2417 = vmatprep.subr.bf16.mxu0 0
    %2418 = vmatpush1.bf16.msra.mxu0 0
    %2419 = vmatprep.mubr.bf16.mxu0 0
    %2420 = vmatmul.mubr.bf16.gmra.mrb[0].mxu0 %v2382
    %v2421 = vpop.f32.mrb[0].mxu0
    %v2422 = vadd.f32 0.0, %v2421
    %v2423 = vpop.f32.mrb[0].mxu0
    %v2424 = vpop.f32.mrb[0].mxu0
    %v2425 = vpop.f32.mrb[0].mxu0
    %2426 = vdwg.mxu0
    %v2427 = vpack.c.bf16 %v2422, %v2311
    %v2430 = vunpack.c.l.b16 %v1659
    %v2431 = vunpack.c.l.b16 %v1660
    %v2432 = vpack.c.b16 %v2431, %v2430
    %v2435 = vsel %vm189, %v2427, 0
    %2437 = vmatprep.subr.bf16.mxu0 0
    %2438 = vmatpush1.bf16.msra.mxu0 %v2432
    %2439 = vmatprep.subr.bf16.mxu0 0
    %2440 = vmatpush1.bf16.msra.mxu0 0
    %2441 = vmatprep.subr.bf16.mxu0 0
    %2442 = vmatpush1.bf16.msra.mxu0 0
    %2443 = vmatprep.subr.bf16.mxu0 0
    %2444 = vmatpush1.bf16.msra.mxu0 0
    %2445 = vmatprep.subr.bf16.mxu0 0
    %2446 = vmatpush1.bf16.msra.mxu0 0
    %2447 = vmatprep.subr.bf16.mxu0 0
    %2448 = vmatpush1.bf16.msra.mxu0 0
    %2449 = vmatprep.subr.bf16.mxu0 0
    %2450 = vmatpush1.bf16.msra.mxu0 0
    %2451 = vmatprep.subr.bf16.mxu0 0
    %2452 = vmatpush1.bf16.msra.mxu0 0
    %2453 = vmatprep.subr.bf16.mxu0 0
    %2454 = vmatpush1.bf16.msra.mxu0 0
    %2455 = vmatprep.subr.bf16.mxu0 0
    %2456 = vmatpush1.bf16.msra.mxu0 0
    %2457 = vmatprep.subr.bf16.mxu0 0
    %2458 = vmatpush1.bf16.msra.mxu0 0
    %2459 = vmatprep.subr.bf16.mxu0 0
    %2460 = vmatpush1.bf16.msra.mxu0 0
    %2461 = vmatprep.subr.bf16.mxu0 0
    %2462 = vmatpush1.bf16.msra.mxu0 0
    %2463 = vmatprep.subr.bf16.mxu0 0
    %2464 = vmatpush1.bf16.msra.mxu0 0
    %2465 = vmatprep.subr.bf16.mxu0 0
    %2466 = vmatpush1.bf16.msra.mxu0 0
    %2467 = vmatprep.subr.bf16.mxu0 0
    %2468 = vmatpush1.bf16.msra.mxu0 0
    %2469 = vmatprep.mubr.bf16.mxu0 0
    %2470 = vmatmul.mubr.bf16.gmra.mrb[0].mxu0 %v2435
    %v2471 = vpop.f32.mrb[0].mxu0
    %v2472 = vadd.f32 0.0, %v2471
    %v2473 = vpop.f32.mrb[0].mxu0
    %v2474 = vpop.f32.mrb[0].mxu0
    %v2475 = vadd.f32 0.0, %v2474
    %v2476 = vpop.f32.mrb[0].mxu0
    %2477 = vdwg.mxu0
    %v2478 = vadd.f32 %v2199, %v2472
    %v2479 = vadd.f32 %v2202, %v2475
    %2480 = vrot.lane.b32.xlu0 %v1652, 80
    %v2481 = vpop.permute.xlu0 %2480
    %2482 = vrot.lane.b32.xlu0 %v1652, 16
    %v2483 = vpop.permute.xlu0 %2482
    %v2485 = vsel %vm189, %v2481, 0
    %v2488 = vsel %vm189, %v2483, 0
    %2490 = vmatprep.subr.bf16.mxu0 0
    %2491 = vmatpush1.bf16.xpose.msra.mxu0 %v2488
    %2492 = vmatprep.subr.bf16.mxu0 0
    %2493 = vmatpush1.bf16.xpose.msra.mxu0 0
    %2494 = vmatprep.subr.bf16.mxu0 0
    %2495 = vmatpush1.bf16.xpose.msra.mxu0 0
    %2496 = vmatprep.subr.bf16.mxu0 0
    %2497 = vmatpush1.bf16.xpose.msra.mxu0 0
    %2498 = vmatprep.subr.bf16.mxu0 0
    %2499 = vmatpush1.bf16.xpose.msra.mxu0 0
    %2500 = vmatprep.subr.bf16.mxu0 0
    %2501 = vmatpush1.bf16.xpose.msra.mxu0 0
    %2502 = vmatprep.subr.bf16.mxu0 0
    %2503 = vmatpush1.bf16.xpose.msra.mxu0 0
    %2504 = vmatprep.subr.bf16.mxu0 0
    %2505 = vmatpush1.bf16.xpose.msra.mxu0 0
    %2506 = vmatprep.subr.bf16.mxu0 0
    %2507 = vmatpush1.bf16.xpose.msra.mxu0 0
    %2508 = vmatprep.subr.bf16.mxu0 0
    %2509 = vmatpush1.bf16.xpose.msra.mxu0 0
    %2510 = vmatprep.subr.bf16.mxu0 0
    %2511 = vmatpush1.bf16.xpose.msra.mxu0 0
    %2512 = vmatprep.subr.bf16.mxu0 0
    %2513 = vmatpush1.bf16.xpose.msra.mxu0 0
    %2514 = vmatprep.subr.bf16.mxu0 0
    %2515 = vmatpush1.bf16.xpose.msra.mxu0 0
    %2516 = vmatprep.subr.bf16.mxu0 0
    %2517 = vmatpush1.bf16.xpose.msra.mxu0 0
    %2518 = vmatprep.subr.bf16.mxu0 0
    %2519 = vmatpush1.bf16.xpose.msra.mxu0 0
    %2520 = vmatprep.subr.bf16.mxu0 0
    %2521 = vmatpush1.bf16.xpose.msra.mxu0 0
    %2522 = vmatprep.mubr.bf16.mxu0 0
    %2523 = vmatmul.mubr.bf16.gmra.mrb[0].mxu0 %v2485
    %v2524 = vpop.f32.mrb[0].mxu0
    %v2525 = vadd.f32 0.0, %v2524
    %v2526 = vpop.f32.mrb[0].mxu0
    %v2527 = vpop.f32.mrb[0].mxu0
    %v2528 = vpop.f32.mrb[0].mxu0
    %2529 = vdwg.mxu0
    %v2530 = vsel %vm40, -inf, %v2525
    %v2531 = vsel %vm237, %v2530, -inf
    %2532 = vmax.xlane.f32.xlu0 %v2531
    %v2533 = vpop.xlane.xlu0 %2532
    %v2534 = vsub.f32 %v2530, %v2533
    %v2535 = vmul.f32 %v2534, 1.442695
    %v2536 = vpow.pop %v2535
    %v2537 = vsel %vm237, %v2536, 0.0
    %2538 = vadd.xlane.f32.xlu0 %v2537
    %v2539 = vpop.xlane.xlu0 %2538
    %v2540 = vrcp.pop %v2539
    %v2541 = vmul.f32 %v2536, %v2540
    %v2542 = vpack.c.bf16 %v2541, %v2541
    %2543 = vrot.lane.b32.xlu0 %v1653, 80
    %v2544 = vpop.permute.xlu0 %2543
    %v2546 = vsel %vm237, %v2542, 0
    %v2549 = vsel %vm253, %v2544, 0
    %2551 = vmatprep.subr.bf16.mxu0 0
    %2552 = vmatpush1.bf16.msra.mxu0 %v2549
    %2553 = vmatprep.subr.bf16.mxu0 0
    %2554 = vmatpush1.bf16.msra.mxu0 0
    %2555 = vmatprep.subr.bf16.mxu0 0
    %2556 = vmatpush1.bf16.msra.mxu0 0
    %2557 = vmatprep.subr.bf16.mxu0 0
    %2558 = vmatpush1.bf16.msra.mxu0 0
    %2559 = vmatprep.subr.bf16.mxu0 0
    %2560 = vmatpush1.bf16.msra.mxu0 0
    %2561 = vmatprep.subr.bf16.mxu0 0
    %2562 = vmatpush1.bf16.msra.mxu0 0
    %2563 = vmatprep.subr.bf16.mxu0 0
    %2564 = vmatpush1.bf16.msra.mxu0 0
    %2565 = vmatprep.subr.bf16.mxu0 0
    %2566 = vmatpush1.bf16.msra.mxu0 0
    %2567 = vmatprep.subr.bf16.mxu0 0
    %2568 = vmatpush1.bf16.msra.mxu0 0
    %2569 = vmatprep.subr.bf16.mxu0 0
    %2570 = vmatpush1.bf16.msra.mxu0 0
    %2571 = vmatprep.subr.bf16.mxu0 0
    %2572 = vmatpush1.bf16.msra.mxu0 0
    %2573 = vmatprep.subr.bf16.mxu0 0
    %2574 = vmatpush1.bf16.msra.mxu0 0
    %2575 = vmatprep.subr.bf16.mxu0 0
    %2576 = vmatpush1.bf16.msra.mxu0 0
    %2577 = vmatprep.subr.bf16.mxu0 0
    %2578 = vmatpush1.bf16.msra.mxu0 0
    %2579 = vmatprep.subr.bf16.mxu0 0
    %2580 = vmatpush1.bf16.msra.mxu0 0
    %2581 = vmatprep.subr.bf16.mxu0 0
    %2582 = vmatpush1.bf16.msra.mxu0 0
    %2583 = vmatprep.mubr.bf16.mxu0 0
    %2584 = vmatmul.mubr.bf16.gmra.mrb[0].mxu0 %v2546
    %v2585 = vpop.f32.mrb[0].mxu0
    %v2586 = vadd.f32 0.0, %v2585
    %v2587 = vpop.f32.mrb[0].mxu0
    %v2588 = vpop.f32.mrb[0].mxu0
    %v2589 = vpop.f32.mrb[0].mxu0
    %2590 = vdwg.mxu0
    %2591 = vrot.lane.b32.xlu0 %v1771, 80
    %v2592 = vpop.permute.xlu0 %2591
    %2593 = vrot.lane.b32.xlu0 %v1771, 16
    %v2594 = vpop.permute.xlu0 %2593
    %v2596 = vsel %vm189, %v2592, 0
    %v2599 = vsel %vm189, %v2594, 0
    %2601 = vmatprep.subr.bf16.mxu0 0
    %2602 = vmatpush1.bf16.xpose.msra.mxu0 %v2599
    %2603 = vmatprep.subr.bf16.mxu0 0
    %2604 = vmatpush1.bf16.xpose.msra.mxu0 0
    %2605 = vmatprep.subr.bf16.mxu0 0
    %2606 = vmatpush1.bf16.xpose.msra.mxu0 0
    %2607 = vmatprep.subr.bf16.mxu0 0
    %2608 = vmatpush1.bf16.xpose.msra.mxu0 0
    %2609 = vmatprep.subr.bf16.mxu0 0
    %2610 = vmatpush1.bf16.xpose.msra.mxu0 0
    %2611 = vmatprep.subr.bf16.mxu0 0
    %2612 = vmatpush1.bf16.xpose.msra.mxu0 0
    %2613 = vmatprep.subr.bf16.mxu0 0
    %2614 = vmatpush1.bf16.xpose.msra.mxu0 0
    %2615 = vmatprep.subr.bf16.mxu0 0
    %2616 = vmatpush1.bf16.xpose.msra.mxu0 0
    %2617 = vmatprep.subr.bf16.mxu0 0
    %2618 = vmatpush1.bf16.xpose.msra.mxu0 0
    %2619 = vmatprep.subr.bf16.mxu0 0
    %2620 = vmatpush1.bf16.xpose.msra.mxu0 0
    %2621 = vmatprep.subr.bf16.mxu0 0
    %2622 = vmatpush1.bf16.xpose.msra.mxu0 0
    %2623 = vmatprep.subr.bf16.mxu0 0
    %2624 = vmatpush1.bf16.xpose.msra.mxu0 0
    %2625 = vmatprep.subr.bf16.mxu0 0
    %2626 = vmatpush1.bf16.xpose.msra.mxu0 0
    %2627 = vmatprep.subr.bf16.mxu0 0
    %2628 = vmatpush1.bf16.xpose.msra.mxu0 0
    %2629 = vmatprep.subr.bf16.mxu0 0
    %2630 = vmatpush1.bf16.xpose.msra.mxu0 0
    %2631 = vmatprep.subr.bf16.mxu0 0
    %2632 = vmatpush1.bf16.xpose.msra.mxu0 0
    %2633 = vmatprep.mubr.bf16.mxu0 0
    %2634 = vmatmul.mubr.bf16.gmra.mrb[0].mxu0 %v2596
    %v2635 = vpop.f32.mrb[0].mxu0
    %v2636 = vadd.f32 0.0, %v2635
    %v2637 = vpop.f32.mrb[0].mxu0
    %v2638 = vpop.f32.mrb[0].mxu0
    %v2639 = vpop.f32.mrb[0].mxu0
    %2640 = vdwg.mxu0
    %v2641 = vsel %vm40, -inf, %v2636
    %v2642 = vsel %vm237, %v2641, -inf
    %2643 = vmax.xlane.f32.xlu0 %v2642
    %v2644 = vpop.xlane.xlu0 %2643
    %v2645 = vsub.f32 %v2641, %v2644
    %v2646 = vmul.f32 %v2645, 1.442695
    %v2647 = vpow.pop %v2646
    %v2648 = vsel %vm237, %v2647, 0.0
    %2649 = vadd.xlane.f32.xlu0 %v2648
    %v2650 = vpop.xlane.xlu0 %2649
    %v2651 = vrcp.pop %v2650
    %v2652 = vmul.f32 %v2647, %v2651
    %v2653 = vpack.c.bf16 %v2652, %v2652
    %2654 = vrot.lane.b32.xlu0 %v1834, 80
    %v2655 = vpop.permute.xlu0 %2654
    %v2657 = vsel %vm237, %v2653, 0
    %v2660 = vsel %vm253, %v2655, 0
    %2662 = vmatprep.subr.bf16.mxu0 0
    %2663 = vmatpush1.bf16.msra.mxu0 %v2660
    %2664 = vmatprep.subr.bf16.mxu0 0
    %2665 = vmatpush1.bf16.msra.mxu0 0
    %2666 = vmatprep.subr.bf16.mxu0 0
    %2667 = vmatpush1.bf16.msra.mxu0 0
    %2668 = vmatprep.subr.bf16.mxu0 0
    %2669 = vmatpush1.bf16.msra.mxu0 0
    %2670 = vmatprep.subr.bf16.mxu0 0
    %2671 = vmatpush1.bf16.msra.mxu0 0
    %2672 = vmatprep.subr.bf16.mxu0 0
    %2673 = vmatpush1.bf16.msra.mxu0 0
    %2674 = vmatprep.subr.bf16.mxu0 0
    %2675 = vmatpush1.bf16.msra.mxu0 0
    %2676 = vmatprep.subr.bf16.mxu0 0
    %2677 = vmatpush1.bf16.msra.mxu0 0
    %2678 = vmatprep.subr.bf16.mxu0 0
    %2679 = vmatpush1.bf16.msra.mxu0 0
    %2680 = vmatprep.subr.bf16.mxu0 0
    %2681 = vmatpush1.bf16.msra.mxu0 0
    %2682 = vmatprep.subr.bf16.mxu0 0
    %2683 = vmatpush1.bf16.msra.mxu0 0
    %2684 = vmatprep.subr.bf16.mxu0 0
    %2685 = vmatpush1.bf16.msra.mxu0 0
    %2686 = vmatprep.subr.bf16.mxu0 0
    %2687 = vmatpush1.bf16.msra.mxu0 0
    %2688 = vmatprep.subr.bf16.mxu0 0
    %2689 = vmatpush1.bf16.msra.mxu0 0
    %2690 = vmatprep.subr.bf16.mxu0 0
    %2691 = vmatpush1.bf16.msra.mxu0 0
    %2692 = vmatprep.subr.bf16.mxu0 0
    %2693 = vmatpush1.bf16.msra.mxu0 0
    %2694 = vmatprep.mubr.bf16.mxu0 0
    %2695 = vmatmul.mubr.bf16.gmra.mrb[0].mxu0 %v2657
    %v2696 = vpop.f32.mrb[0].mxu0
    %v2697 = vadd.f32 0.0, %v2696
    %v2698 = vpop.f32.mrb[0].mxu0
    %v2699 = vpop.f32.mrb[0].mxu0
    %v2700 = vpop.f32.mrb[0].mxu0
    %2701 = vdwg.mxu0
    %v2702 = vpack.c.bf16 %v2697, %v2586
    %v2705 = vunpack.c.l.b16 %v1661
    %v2706 = vunpack.c.l.b16 %v1662
    %v2707 = vpack.c.b16 %v2706, %v2705
    %v2710 = vsel %vm189, %v2702, 0
    %2712 = vmatprep.subr.bf16.mxu0 0
    %2713 = vmatpush1.bf16.msra.mxu0 %v2707
    %2714 = vmatprep.subr.bf16.mxu0 0
    %2715 = vmatpush1.bf16.msra.mxu0 0
    %2716 = vmatprep.subr.bf16.mxu0 0
    %2717 = vmatpush1.bf16.msra.mxu0 0
    %2718 = vmatprep.subr.bf16.mxu0 0
    %2719 = vmatpush1.bf16.msra.mxu0 0
    %2720 = vmatprep.subr.bf16.mxu0 0
    %2721 = vmatpush1.bf16.msra.mxu0 0
    %2722 = vmatprep.subr.bf16.mxu0 0
    %2723 = vmatpush1.bf16.msra.mxu0 0
    %2724 = vmatprep.subr.bf16.mxu0 0
    %2725 = vmatpush1.bf16.msra.mxu0 0
    %2726 = vmatprep.subr.bf16.mxu0 0
    %2727 = vmatpush1.bf16.msra.mxu0 0
    %2728 = vmatprep.subr.bf16.mxu0 0
    %2729 = vmatpush1.bf16.msra.mxu0 0
    %2730 = vmatprep.subr.bf16.mxu0 0
    %2731 = vmatpush1.bf16.msra.mxu0 0
    %2732 = vmatprep.subr.bf16.mxu0 0
    %2733 = vmatpush1.bf16.msra.mxu0 0
    %2734 = vmatprep.subr.bf16.mxu0 0
    %2735 = vmatpush1.bf16.msra.mxu0 0
    %2736 = vmatprep.subr.bf16.mxu0 0
    %2737 = vmatpush1.bf16.msra.mxu0 0
    %2738 = vmatprep.subr.bf16.mxu0 0
    %2739 = vmatpush1.bf16.msra.mxu0 0
    %2740 = vmatprep.subr.bf16.mxu0 0
    %2741 = vmatpush1.bf16.msra.mxu0 0
    %2742 = vmatprep.subr.bf16.mxu0 0
    %2743 = vmatpush1.bf16.msra.mxu0 0
    %2744 = vmatprep.mubr.bf16.mxu0 0
    %2745 = vmatmul.mubr.bf16.gmra.mrb[0].mxu0 %v2710
    %v2746 = vpop.f32.mrb[0].mxu0
    %v2747 = vadd.f32 0.0, %v2746
    %v2748 = vpop.f32.mrb[0].mxu0
    %v2749 = vpop.f32.mrb[0].mxu0
    %v2750 = vadd.f32 0.0, %v2749
    %v2751 = vpop.f32.mrb[0].mxu0
    %2752 = vdwg.mxu0
    %v2753 = vadd.f32 %v2478, %v2747
    %v2754 = vadd.f32 %v2479, %v2750
    %v2755 = vadd.f32 %v1515, %v2753
    %v2756 = vadd.f32 %v1516, %v2754
    %v2757 = vld [vmem:[%s7 + $0x5] ss:$0 sm:$0xff]
    %v2758 = vadd.f32 %v2755, %v2757
    %v2759 = vadd.f32 %v2756, %v2757
    %v2760 = vsel %vm41, %v2758, 0.0
    %2761 = vadd.xlane.f32.xlu0 %v2760
    %v2762 = vpop.xlane.xlu0 %2761
    %v2763 = vsel %vm41, %v2759, 0.0
    %2764 = vadd.xlane.f32.xlu0 %v2763
    %v2765 = vpop.xlane.xlu0 %2764
    %v2766 = vmul.f32 %v2762, %v48
    %v2767 = vmul.f32 %v2765, %v48
    %v2768 = vsub.f32 %v2758, %v2766
    %v2769 = vsub.f32 %v2759, %v2767
    %v2770 = vmul.f32 %v2768, %v2768
    %v2771 = vmul.f32 %v2769, %v2769
    %v2772 = vsel %vm41, %v2770, 0.0
    %2773 = vadd.xlane.f32.xlu0 %v2772
    %v2774 = vpop.xlane.xlu0 %2773
    %v2775 = vsel %vm41, %v2771, 0.0
    %2776 = vadd.xlane.f32.xlu0 %v2775
    %v2777 = vpop.xlane.xlu0 %2776
    %v2778 = vmul.f32 %v2774, %v48
    %v2779 = vmul.f32 %v2777, %v48
    %v2780 = vadd.f32 %v2778, 1e-05
    %v2781 = vadd.f32 %v2779, 1e-05
    %v2782 = vrsqrt.pop %v2780
    %v2783 = vrsqrt.pop %v2781
    %v2784 = vmul.f32 %v2768, %v2782
    %v2785 = vmul.f32 %v2769, %v2783
    %v2786 = vpack.c.bf16 %v2785, %v2784
    %s2787 = scalar_lea.vmem %s4, 32
    %v2788 = vld [vmem:[%s2787] sm:$0xf]
    %v2789 = vld [vmem:[%s2787 + $0x4] sm:$0xf]
    %v2790 = vld [vmem:[%s2787 + $0x8] sm:$0xf]
    %v2791 = vld [vmem:[%s2787 + $0xc] sm:$0xf]
    %v2792 = vld [vmem:[%s2787 + $0x10] sm:$0xf]
    %v2793 = vld [vmem:[%s2787 + $0x14] sm:$0xf]
    %v2794 = vld [vmem:[%s2787 + $0x18] sm:$0xf]
    %v2795 = vld [vmem:[%s2787 + $0x1c] sm:$0xf]
    %v2796 = vld [vmem:[%s7 + $0x6] ss:$0 sm:$0xff]
    %v2805 = vunpack.c.l.b16 %v2788
    %v2806 = vunpack.c.l.b16 %v2789
    %v2807 = vunpack.c.l.b16 %v2790
    %v2808 = vunpack.c.l.b16 %v2791
    %v2809 = vunpack.c.l.b16 %v2792
    %v2810 = vunpack.c.l.b16 %v2793
    %v2811 = vunpack.c.l.b16 %v2794
    %v2812 = vunpack.c.l.b16 %v2795
    %v2813 = vpack.c.b16 %v2806, %v2805
    %v2814 = vpack.c.b16 %v2808, %v2807
    %v2815 = vpack.c.b16 %v2810, %v2809
    %v2816 = vpack.c.b16 %v2812, %v2811
    %v2822 = vsel %vm41, %v2786, 0
    %2824 = vmatprep.subr.bf16.mxu0 0
    %2825 = vmatpush1.bf16.msra.mxu0 %v2813
    %2826 = vmatprep.subr.bf16.mxu0 0
    %2827 = vmatpush1.bf16.msra.mxu0 %v2814
    %2828 = vmatprep.subr.bf16.mxu0 0
    %2829 = vmatpush1.bf16.msra.mxu0 %v2815
    %2830 = vmatprep.subr.bf16.mxu0 0
    %2831 = vmatpush1.bf16.msra.mxu0 %v2816
    %2832 = vmatprep.subr.bf16.mxu0 0
    %2833 = vmatpush1.bf16.msra.mxu0 0
    %2834 = vmatprep.subr.bf16.mxu0 0
    %2835 = vmatpush1.bf16.msra.mxu0 0
    %2836 = vmatprep.subr.bf16.mxu0 0
    %2837 = vmatpush1.bf16.msra.mxu0 0
    %2838 = vmatprep.subr.bf16.mxu0 0
    %2839 = vmatpush1.bf16.msra.mxu0 0
    %2840 = vmatprep.subr.bf16.mxu0 0
    %2841 = vmatpush1.bf16.msra.mxu0 0
    %2842 = vmatprep.subr.bf16.mxu0 0
    %2843 = vmatpush1.bf16.msra.mxu0 0
    %2844 = vmatprep.subr.bf16.mxu0 0
    %2845 = vmatpush1.bf16.msra.mxu0 0
    %2846 = vmatprep.subr.bf16.mxu0 0
    %2847 = vmatpush1.bf16.msra.mxu0 0
    %2848 = vmatprep.subr.bf16.mxu0 0
    %2849 = vmatpush1.bf16.msra.mxu0 0
    %2850 = vmatprep.subr.bf16.mxu0 0
    %2851 = vmatpush1.bf16.msra.mxu0 0
    %2852 = vmatprep.subr.bf16.mxu0 0
    %2853 = vmatpush1.bf16.msra.mxu0 0
    %2854 = vmatprep.subr.bf16.mxu0 0
    %2855 = vmatpush1.bf16.msra.mxu0 0
    %2856 = vmatprep.mubr.bf16.mxu0 0
    %2857 = vmatmul.mubr.bf16.gmra.mrb[0].mxu0 %v2822
    %v2858 = vpop.f32.mrb[0].mxu0
    %v2859 = vadd.f32 %v2796, %v2858
    %v2860 = vpop.f32.mrb[0].mxu0
    %v2861 = vpop.f32.mrb[0].mxu0
    %v2862 = vadd.f32 %v2796, %v2861
    %v2863 = vpop.f32.mrb[0].mxu0
    %2864 = vdwg.mxu0
    %v2865 = vmul.f32 %v2859, 0.5
    %v2866 = vmul.f32 %v2862, 0.5
    %v2867 = vmul.f32 %v2859, 0.044715
    %v2868 = vmul.f32 %v2862, 0.044715
    %v2869 = vmul.f32 %v2867, %v2859
    %v2870 = vmul.f32 %v2868, %v2862
    %v2871 = vmul.f32 %v2869, %v2859
    %v2872 = vmul.f32 %v2870, %v2862
    %v2873 = vadd.f32 %v2859, %v2871
    %v2874 = vadd.f32 %v2862, %v2872
    %v2875 = vmul.f32 %v2873, 0.7978846
    %v2876 = vmul.f32 %v2874, 0.7978846
    %v2877 = vtanh.pop %v2875
    %v2878 = vtanh.pop %v2876
    %v2879 = vadd.f32 %v2877, 1.0
    %v2880 = vadd.f32 %v2878, 1.0
    %v2881 = vmul.f32 %v2865, %v2879
    %v2882 = vmul.f32 %v2866, %v2880
    %v2883 = vpack.c.bf16 %v2882, %v2881
    %s2884 = scalar_lea.vmem %s5, 64
    %v2885 = vld [vmem:[%s2884] sm:$0xf]
    %v2886 = vld [vmem:[%s2884 + $0x4] sm:$0xf]
    %v2887 = vld [vmem:[%s2884 + $0x8] sm:$0xf]
    %v2888 = vld [vmem:[%s2884 + $0xc] sm:$0xf]
    %v2889 = vld [vmem:[%s2884 + $0x10] sm:$0xf]
    %v2890 = vld [vmem:[%s2884 + $0x14] sm:$0xf]
    %v2891 = vld [vmem:[%s2884 + $0x18] sm:$0xf]
    %v2892 = vld [vmem:[%s2884 + $0x1c] sm:$0xf]
    %v2893 = vld [vmem:[%s2884 + $0x20] sm:$0xf]
    %v2894 = vld [vmem:[%s2884 + $0x24] sm:$0xf]
    %v2895 = vld [vmem:[%s2884 + $0x28] sm:$0xf]
    %v2896 = vld [vmem:[%s2884 + $0x2c] sm:$0xf]
    %v2897 = vld [vmem:[%s2884 + $0x30] sm:$0xf]
    %v2898 = vld [vmem:[%s2884 + $0x34] sm:$0xf]
    %v2899 = vld [vmem:[%s2884 + $0x38] sm:$0xf]
    %v2900 = vld [vmem:[%s2884 + $0x3c] sm:$0xf]
    %v2901 = vld [vmem:[%s7 + $0x7] ss:$0 sm:$0xff]
    %v2918 = vunpack.c.l.b16 %v2885
    %v2919 = vunpack.c.l.b16 %v2886
    %v2920 = vunpack.c.l.b16 %v2887
    %v2921 = vunpack.c.l.b16 %v2888
    %v2922 = vunpack.c.l.b16 %v2889
    %v2923 = vunpack.c.l.b16 %v2890
    %v2924 = vunpack.c.l.b16 %v2891
    %v2925 = vunpack.c.l.b16 %v2892
    %v2926 = vunpack.c.l.b16 %v2893
    %v2927 = vunpack.c.l.b16 %v2894
    %v2928 = vunpack.c.l.b16 %v2895
    %v2929 = vunpack.c.l.b16 %v2896
    %v2930 = vunpack.c.l.b16 %v2897
    %v2931 = vunpack.c.l.b16 %v2898
    %v2932 = vunpack.c.l.b16 %v2899
    %v2933 = vunpack.c.l.b16 %v2900
    %v2934 = vpack.c.b16 %v2919, %v2918
    %v2935 = vpack.c.b16 %v2921, %v2920
    %v2936 = vpack.c.b16 %v2923, %v2922
    %v2937 = vpack.c.b16 %v2925, %v2924
    %v2938 = vpack.c.b16 %v2927, %v2926
    %v2939 = vpack.c.b16 %v2929, %v2928
    %v2940 = vpack.c.b16 %v2931, %v2930
    %v2941 = vpack.c.b16 %v2933, %v2932
    %2950 = vmatprep.subr.bf16.mxu0 0
    %2951 = vmatpush1.bf16.msra.mxu0 %v2934
    %2952 = vmatprep.subr.bf16.mxu0 0
    %2953 = vmatpush1.bf16.msra.mxu0 %v2935
    %2954 = vmatprep.subr.bf16.mxu0 0
    %2955 = vmatpush1.bf16.msra.mxu0 %v2936
    %2956 = vmatprep.subr.bf16.mxu0 0
    %2957 = vmatpush1.bf16.msra.mxu0 %v2937
    %2958 = vmatprep.subr.bf16.mxu0 0
    %2959 = vmatpush1.bf16.msra.mxu0 %v2938
    %2960 = vmatprep.subr.bf16.mxu0 0
    %2961 = vmatpush1.bf16.msra.mxu0 %v2939
    %2962 = vmatprep.subr.bf16.mxu0 0
    %2963 = vmatpush1.bf16.msra.mxu0 %v2940
    %2964 = vmatprep.subr.bf16.mxu0 0
    %2965 = vmatpush1.bf16.msra.mxu0 %v2941
    %2966 = vmatprep.subr.bf16.mxu0 0
    %2967 = vmatpush1.bf16.msra.mxu0 0
    %2968 = vmatprep.subr.bf16.mxu0 0
    %2969 = vmatpush1.bf16.msra.mxu0 0
    %2970 = vmatprep.subr.bf16.mxu0 0
    %2971 = vmatpush1.bf16.msra.mxu0 0
    %2972 = vmatprep.subr.bf16.mxu0 0
    %2973 = vmatpush1.bf16.msra.mxu0 0
    %2974 = vmatprep.subr.bf16.mxu0 0
    %2975 = vmatpush1.bf16.msra.mxu0 0
    %2976 = vmatprep.subr.bf16.mxu0 0
    %2977 = vmatpush1.bf16.msra.mxu0 0
    %2978 = vmatprep.subr.bf16.mxu0 0
    %2979 = vmatpush1.bf16.msra.mxu0 0
    %2980 = vmatprep.subr.bf16.mxu0 0
    %2981 = vmatpush1.bf16.msra.mxu0 0
    %2982 = vmatprep.mubr.bf16.mxu0 0
    %2983 = vmatmul.mubr.bf16.gmra.mrb[0].mxu0 %v2883
    %v2984 = vpop.f32.mrb[0].mxu0
    %v2985 = vadd.f32 %v2901, %v2984
    %v2986 = vpop.f32.mrb[0].mxu0
    %v2987 = vpop.f32.mrb[0].mxu0
    %v2988 = vadd.f32 %v2901, %v2987
    %v2989 = vpop.f32.mrb[0].mxu0
    %2990 = vdwg.mxu0
    %v2991 = vadd.f32 %v2758, %v2985
    %v2992 = vadd.f32 %v2759, %v2988
    %v2993 = vsel %vm41, %v2991, 0.0
    %2994 = vadd.xlane.f32.xlu0 %v2993
    %v2995 = vpop.xlane.xlu0 %2994
    %v2996 = vsel %vm41, %v2992, 0.0
    %2997 = vadd.xlane.f32.xlu0 %v2996
    %v2998 = vpop.xlane.xlu0 %2997
    %v2999 = vmul.f32 %v2995, %v48
    %v3000 = vmul.f32 %v2998, %v48
    %v3001 = vsub.f32 %v2991, %v2999
    %v3002 = vsub.f32 %v2992, %v3000
    %v3003 = vmul.f32 %v3001, %v3001
    %v3004 = vmul.f32 %v3002, %v3002
    %v3005 = vsel %vm41, %v3003, 0.0
    %3006 = vadd.xlane.f32.xlu0 %v3005
    %v3007 = vpop.xlane.xlu0 %3006
    %v3008 = vsel %vm41, %v3004, 0.0
    %3009 = vadd.xlane.f32.xlu0 %v3008
    %v3010 = vpop.xlane.xlu0 %3009
    %v3011 = vmul.f32 %v3007, %v48
    %v3012 = vmul.f32 %v3010, %v48
    %v3013 = vadd.f32 %v3011, 1e-05
    %v3014 = vadd.f32 %v3012, 1e-05
    %v3015 = vrsqrt.pop %v3013
    %v3016 = vrsqrt.pop %v3014
    %v3017 = vmul.f32 %v3001, %v3015
    %v3018 = vmul.f32 %v3002, %v3016
    %v3019 = vpack.c.bf16 %v3018, %v3017
    %v3020 = vld [vmem:[%s6] sm:$0xf]
    %v3021 = vld [vmem:[%s6 + $0x4] sm:$0xf]
    %v3022 = vld [vmem:[%s6 + $0x8] sm:$0xf]
    %v3023 = vld [vmem:[%s6 + $0xc] sm:$0xf]
    %v3024 = vld [vmem:[%s6 + $0x10] sm:$0xf]
    %v3025 = vld [vmem:[%s6 + $0x14] sm:$0xf]
    %v3026 = vld [vmem:[%s6 + $0x18] sm:$0xf]
    %v3027 = vld [vmem:[%s6 + $0x1c] sm:$0xf]
    %v3028 = vld [vmem:[%s7 + $0x10] ss:$0 sm:$0xff]
    %v3037 = vunpack.c.l.b16 %v3020
    %v3038 = vunpack.c.l.b16 %v3021
    %v3039 = vunpack.c.l.b16 %v3022
    %v3040 = vunpack.c.l.b16 %v3023
    %v3041 = vunpack.c.l.b16 %v3024
    %v3042 = vunpack.c.l.b16 %v3025
    %v3043 = vunpack.c.l.b16 %v3026
    %v3044 = vunpack.c.l.b16 %v3027
    %v3045 = vpack.c.b16 %v3038, %v3037
    %v3046 = vpack.c.b16 %v3040, %v3039
    %v3047 = vpack.c.b16 %v3042, %v3041
    %v3048 = vpack.c.b16 %v3044, %v3043
    %v3054 = vsel %vm41, %v3019, 0
    %3056 = vmatprep.subr.bf16.mxu0 0
    %3057 = vmatpush1.bf16.msra.mxu0 %v3045
    %3058 = vmatprep.subr.bf16.mxu0 0
    %3059 = vmatpush1.bf16.msra.mxu0 %v3046
    %3060 = vmatprep.subr.bf16.mxu0 0
    %3061 = vmatpush1.bf16.msra.mxu0 %v3047
    %3062 = vmatprep.subr.bf16.mxu0 0
    %3063 = vmatpush1.bf16.msra.mxu0 %v3048
    %3064 = vmatprep.subr.bf16.mxu0 0
    %3065 = vmatpush1.bf16.msra.mxu0 0
    %3066 = vmatprep.subr.bf16.mxu0 0
    %3067 = vmatpush1.bf16.msra.mxu0 0
    %3068 = vmatprep.subr.bf16.mxu0 0
    %3069 = vmatpush1.bf16.msra.mxu0 0
    %3070 = vmatprep.subr.bf16.mxu0 0
    %3071 = vmatpush1.bf16.msra.mxu0 0
    %3072 = vmatprep.subr.bf16.mxu0 0
    %3073 = vmatpush1.bf16.msra.mxu0 0
    %3074 = vmatprep.subr.bf16.mxu0 0
    %3075 = vmatpush1.bf16.msra.mxu0 0
    %3076 = vmatprep.subr.bf16.mxu0 0
    %3077 = vmatpush1.bf16.msra.mxu0 0
    %3078 = vmatprep.subr.bf16.mxu0 0
    %3079 = vmatpush1.bf16.msra.mxu0 0
    %3080 = vmatprep.subr.bf16.mxu0 0
    %3081 = vmatpush1.bf16.msra.mxu0 0
    %3082 = vmatprep.subr.bf16.mxu0 0
    %3083 = vmatpush1.bf16.msra.mxu0 0
    %3084 = vmatprep.subr.bf16.mxu0 0
    %3085 = vmatpush1.bf16.msra.mxu0 0
    %3086 = vmatprep.subr.bf16.mxu0 0
    %3087 = vmatpush1.bf16.msra.mxu0 0
    %3088 = vmatprep.mubr.bf16.mxu0 0
    %3089 = vmatmul.mubr.bf16.gmra.mrb[0].mxu0 %v3054
    %v3090 = vpop.f32.mrb[0].mxu0
    %v3091 = vadd.f32 %v3028, %v3090
    %v3092 = vpop.f32.mrb[0].mxu0
    %v3093 = vpop.f32.mrb[0].mxu0
    %v3094 = vadd.f32 %v3028, %v3093
    %v3095 = vpop.f32.mrb[0].mxu0
    %3096 = vdwg.mxu0
    %3097 = vst [vmem:[#allocation2] sm:$0xff] %v3091
    %3098 = vst [vmem:[#allocation2 + $0x8] sm:$0xff] %v3094
    %v3099 = vld [vmem:[%s1] sm:$0xff]
    %v3100 = vld [vmem:[%s1 + $0x8] sm:$0xff]
    %3101 = vmax.xlane.f32.xlu0 %v3091
    %v3102 = vpop.xlane.xlu0 %3101
    %3103 = vmax.xlane.f32.xlu0 %v3094
    %v3104 = vpop.xlane.xlu0 %3103
    %v3105 = vsub.f32 %v3091, %v3102
    %v3106 = vsub.f32 %v3094, %v3104
    %v3107 = vmul.f32 %v3105, 1.442695
    %v3108 = vpow.pop %v3107
    %v3109 = vmul.f32 %v3106, 1.442695
    %v3110 = vpow.pop %v3109
    %3111 = vadd.xlane.f32.xlu0 %v3108
    %v3112 = vpop.xlane.xlu0 %3111
    %3113 = vadd.xlane.f32.xlu0 %v3110
    %v3114 = vpop.xlane.xlu0 %3113
    %v3115 = vlog2.pop %v3112
    %v3116 = vmul.f32 %v3115, 0.6931472
    %v3117 = vlog2.pop %v3114
    %v3118 = vmul.f32 %v3117, 0.6931472
    %v3119 = vadd.f32 %v3116, %v3102
    %v3120 = vadd.f32 %v3118, %v3104
    %3121 = vset.pattern.permute.xlu0 0
    %3122 = vperm.xlu0 %3121, %v3099
    %v3123 = vpop.permute.xlu0 %3122
    %3124 = vset.pattern.permute.xlu0 0
    %3125 = vperm.xlu0 %3124, %v3100
    %v3126 = vpop.permute.xlu0 %3125
    %vm3127 = vcmp.eq.s32.totalorder %v39, %v3123
    %vm3128 = vcmp.eq.s32.totalorder %v39, %v3126
    %v3129 = vsel %vm3127, %v3091, 0.0
    %v3130 = vsel %vm3128, %v3094, 0.0
    %3131 = vadd.xlane.f32.xlu0 %v3129
    %v3132 = vpop.xlane.xlu0 %3131
    %3133 = vadd.xlane.f32.xlu0 %v3130
    %v3134 = vpop.xlane.xlu0 %3133
    %v3135 = vsub.f32 %v3119, %v3132
    %v3136 = vsub.f32 %v3120, %v3134
    %vm3137 = vcmask 7168
    %v3138 = vsel %vm3137, %v3135, 0.0
    %v3139 = vsel %vm3137, %v3136, 0.0
    %v3140 = vadd.f32 %v3138, %v3139
    %3141 = vadd.xlane.f32.xlu0 %v3140
    %v3142 = vpop.xlane.xlu0 %3141
    %v3143 = vrot.slane %v3142, 4
    %v3144 = vadd.f32 %v3142, %v3143
    %v3145 = vrot.slane %v3144, 2
    %v3146 = vadd.f32 %v3144, %v3145
    %v3147 = vrot.slane %v3146, 1
    %v3148 = vadd.f32 %v3146, %v3147
    %s3149 = vtos %v3148
    %v3150 = vrcp.pop 16.0
    %s3151 = vtos %v3150
    %s3152 = smul.f32 %s3149, %s3151
    %v3153 = vstv %s3152
    %vm3154 = vcmask 0
    %3155 = vst.msk [vmem:[#allocation4] sm:$0x1] %vm3154, %v3153
    // Predicated region
    $region34: #{gpt_forward.1} parent=1 // pred_check
      _
    $region35: #{gpt_forward.1} parent=1 // pred_check_branch
      %3157 = sbr.rel (0) target = $region37
    $region36: #{gpt_forward.1} parent=1 // pred_region
      %s3159 = ssub.s32 256, 256
      %3160 = vsyncadd [#allocation3], %s3159
      %s3161 = sshll.u32 [#allocation2], 4
      %s3162 = int_to_ptr.vmem [resolvable:$true] %s3161
      %3167 = dma.vmem_to_hbm [thread:$0]  %s3162, 256, %s8, [#allocation3], 128, 128, 8
    $region37: #{gpt_forward.1} parent=1 // pred_fallthru
      _
    // Predicated region
    $region38: #{gpt_forward.1} parent=1 // pred_check
      _
    $region39: #{gpt_forward.1} parent=1 // pred_check_branch
      %3169 = sbr.rel (0) target = $region41
    $region40: #{gpt_forward.1} parent=1 // pred_region
      %s3171 = ssub.s32 16, 16
      %3172 = vsyncadd [#allocation5], %s3171
      %s3174 = sshll.u32 [#allocation4], 4
      %s3175 = int_to_ptr.vmem [resolvable:$true] %s3174
      %3177 = dma.vmem_to_hbm [thread:$0]  %s3175, 16, %s9, [#allocation5]
    $region41: #{gpt_forward.1} parent=1 // pred_fallthru
      _
    // Predicated region
    $region42: #{gpt_forward.1} parent=1 // pred_check
      _
    $region43: #{gpt_forward.1} parent=1 // pred_check_branch
      %3179 = sbr.rel (0) target = $region45
    $region44: #{gpt_forward.1} parent=1 // pred_region
      %3180 = dma.done [#allocation3], 256
    $region45: #{gpt_forward.1} parent=1 // pred_fallthru
      _
    // Predicated region
    $region46: #{gpt_forward.1} parent=1 // pred_check
      _
    $region47: #{gpt_forward.1} parent=1 // pred_check_branch
      %3182 = sbr.rel (0) target = $region49
    $region48: #{gpt_forward.1} parent=1 // pred_region
      %3183 = dma.done [#allocation5], 16
    $region49: #{gpt_forward.1} parent=1 // pred_fallthru
      _
    %3184 = vsyncpa [#allocation3], 1
    %3185 = vsyncpa [#allocation5], 1

</llo_original>
